<compile_context>
chip_gen: v5e
topology: v5e:2x2
jax: 0.10.0
libtpu: 0.0.40
codegen_flags: <defaults>
</compile_context>

<pallas_src>
import jax
import jax.numpy as jnp
import numpy as np
from jax import lax
from jax.experimental import pallas as pl
from jax.experimental.pallas import tpu as pltpu

STATE_DIM = 2  # ODEFunc hard-codes a 2-D state


def _lsode_kernel(ts_ref,                                     # scalar prefetch: (T,) f32 in SMEM
                  x_ref, w1_ref, b1_ref, w2_ref, b2_ref, w3_ref, b3_ref,
                  z_ref):                                     # out block: (T, N, D) full trajectory
    T, N, D = z_ref.shape
    H = w1_ref.shape[1]

    # ---- hoisted loop invariants (loads + bias broadcasts), read exactly once ----
    w1 = w1_ref[...]                                  # (D, H)
    w2 = w2_ref[...]                                  # (H, H)
    w3 = w3_ref[...]                                  # (H, D)
    b1 = jnp.broadcast_to(b1_ref[...], (N, H))        # pre-broadcast: no per-eval broadcast_in_dim
    b2 = jnp.broadcast_to(b2_ref[...], (N, H))
    b3 = jnp.broadcast_to(b3_ref[...], (N, D))

    def ode_f(y):
        # Linear(2,H) -> tanh : single MXU issue instead of two cross-lane broadcasts.
        h1 = jnp.tanh(jnp.dot(y, w1, preferred_element_type=jnp.float32) + b1)
        # Linear(H,H) -> tanh : MXU.
        h2 = jnp.tanh(jnp.dot(h1, w2, preferred_element_type=jnp.float32) + b2)
        # Linear(H,2) : MXU (replaces two XLU lane reductions + a lane concat).
        d = jnp.dot(h2, w3, preferred_element_type=jnp.float32) + b3
        # Rotation d[:,0] += -0.5*y[:,1]; d[:,1] += 0.5*y[:,0]: kept exact in f32 on
        # the VPU/XLU so no MXU bf16 truncation of y enters the time recurrence.
        # TODO(synk): swap to pltpu.roll(y, 1, axis=-1) * hoisted_sign once roll's
        # lowering on a 2-lane minor dim is verified; saves ~2 XLU ops per eval.
        return d + jnp.concatenate([-0.5 * y[:, 1:2], 0.5 * y[:, 0:1]], axis=-1)

    y0 = x_ref[...]
    z_ref[0] = y0                      # odeint returns the initial condition as z[0]

    def step(i, y):
        # dt from SMEM scalars (scalar ALU); fold the RK constants once per step.
        dt = ts_ref[i] - ts_ref[i - 1]
        dt3 = dt * (1.0 / 3.0)
        dt8 = dt * 0.125
        # torchdiffeq method='rk4' uses rk4_alt_step_func (the 3/8 rule).
        k1 = ode_f(y)
        a = dt3 * k1                   # dt*k1/3
        k2 = ode_f(y + a)
        b = dt * k2
        k3 = ode_f(y + (b - a))                       # y + dt*(k2 - k1/3)
        k4 = ode_f(y + (3.0 * a - b + dt * k3))       # y + dt*(k1 - k2 + k3)
        y_new = y + dt8 * (k1 + 3.0 * (k2 + k3) + k4)
        z_ref[i] = y_new
        return y_new

    # Short, fixed trip count: fully unroll so the scheduler sees across iterations.
    lax.fori_loop(1, T, step, y0, unroll=True)
    # TODO(synk): if per-dot weight-push latency shows up in the bundle dump,
    # stage w2/w3 once via pltpu.matmul_push_rhs and use matmul_acc_lhs/pop.


def latent_sode_forward(x, time_steps, params):
    """Pallas equivalent of LatentSODE.forward(x, time_steps) -> (z, None, None)."""
    w1, b1, w2, b2, w3, b3 = params
    N, D = x.shape
    H = w1.shape[1]
    T = time_steps.shape[0]

    # Single grid point: operands land in VMEM once and the whole (T, N, D)
    # trajectory is written back once.
    z = pl.pallas_call(
        _lsode_kernel,
        out_shape=jax.ShapeDtypeStruct((T, N, D), jnp.float32),
        grid_spec=pltpu.PrefetchScalarGridSpec(
            num_scalar_prefetch=1,          # time_steps -> SMEM
            grid=(1,),
            in_specs=[
                pl.BlockSpec((N, D), lambda i, _ts: (0, 0)),   # x
                pl.BlockSpec((D, H), lambda i, _ts: (0, 0)),   # w1
                pl.BlockSpec((1, H), lambda i, _ts: (0, 0)),   # b1
                pl.BlockSpec((H, H), lambda i, _ts: (0, 0)),   # w2
                pl.BlockSpec((1, H), lambda i, _ts: (0, 0)),   # b2
                pl.BlockSpec((H, D), lambda i, _ts: (0, 0)),   # w3
                pl.BlockSpec((1, D), lambda i, _ts: (0, 0)),   # b3
            ],
            out_specs=pl.BlockSpec((T, N, D), lambda i, _ts: (0, 0, 0)),
        ),
        compiler_params=pltpu.CompilerParams(
            dimension_semantics=("arbitrary",)),
    )(time_steps.astype(jnp.float32), x, w1, b1, w2, b2, w3, b3)
    # TODO(synk): for large batch N on v7x, add a batch grid axis marked
    # "parallel" (dual TensorCore) and make the trajectory layout lane-dense
    # (large axis last, multiple of 128); chunk the time axis / set
    # vmem_limit_bytes if T*N*D*4B approaches tens of MiB (v7x VMEM = 64 MiB).
    return z, None, None


def init_params(key, hidden_dim):
    """Deterministic ODEFunc parameters (torch.nn.Linear-style uniform init)."""
    H = hidden_dim
    k1, k2, k3, kb1, kb2 = jax.random.split(key, 5)

    def lin(k, fan_in, shape):
        bound = 1.0 / float(np.sqrt(fan_in))
        return jax.random.uniform(k, shape, jnp.float32, -bound, bound)

    w1 = lin(k1, STATE_DIM, (STATE_DIM, H))
    b1 = lin(kb1, STATE_DIM, (1, H))
    w2 = lin(k2, H, (H, H))
    b2 = lin(kb2, H, (1, H))
    w3 = lin(k3, H, (H, STATE_DIM))
    b3 = jnp.full((1, STATE_DIM), 0.1, dtype=jnp.float32)   # net[-1].bias.fill_(0.1)
    # TODO(synk): Encoder/Decoder params omitted — unused by LatentSODE.forward.
    return (w1, b1, w2, b2, w3, b3)


def _ref_forward(x, ts, params):
    """Pure-JAX f32 ground truth: same 3/8-rule RK4 stepping, dots at HIGHEST
    precision so the kernel-vs-reference diff is only the kernel's MXU rounding."""
    w1, b1, w2, b2, w3, b3 = params
    hp = jax.lax.Precision.HIGHEST

    def f(y):
        h1 = jnp.tanh(jnp.dot(y, w1, precision=hp) + b1)
        h2 = jnp.tanh(jnp.dot(h1, w2, precision=hp) + b2)
        d = jnp.dot(h2, w3, precision=hp) + b3
        return d + jnp.concatenate([-0.5 * y[:, 1:2], 0.5 * y[:, 0:1]], axis=-1)

    zs = [x]
    y = x
    for i in range(1, ts.shape[0]):
        dt = ts[i] - ts[i - 1]
        k1 = f(y)
        k2 = f(y + dt * k1 / 3.0)
        k3 = f(y + dt * (k2 - k1 / 3.0))
        k4 = f(y + dt * (k1 - k2 + k3))
        y = y + (k1 + 3.0 * (k2 + k3) + k4) * dt * 0.125
        zs.append(y)
    return jnp.stack(zs)


if __name__ == "__main__":
    N = 8            # batch of ODE states
    H = 32           # hidden_dim
    T = 8            # number of time steps

    key = jax.random.PRNGKey(0)
    kx, kp = jax.random.split(key)
    x = jax.random.normal(kx, (N, STATE_DIM), dtype=jnp.float32)
    time_steps = jnp.linspace(0.0, 1.0, T, dtype=jnp.float32)
    params = init_params(kp, H)

    z, mu, logvar = latent_sode_forward(x, time_steps, params)
    z = jax.block_until_ready(z)

    z_ref = _ref_forward(x, time_steps, params)
    # 2e-3 tolerance absorbs default-precision MXU rounding of the three in-kernel
    # dots compounding over the T-step recurrence (ref is full-f32 HIGHEST);
    # semantic errors (wrong RK coefficients / weights / rotation signs) are >> 1e-2.
    np.testing.assert_allclose(np.asarray(z), np.asarray(z_ref), rtol=2e-3, atol=2e-3)

    print("KERNEL_OK")
</pallas_src>

<mosaic_0001>
module attributes {stable_mosaic.version = 11 : i64} {
  func.func @_lsode_kernel(%arg0: i32, %arg1: memref<8xf32, #tpu.memory_space<smem>>, %arg2: memref<8x2xf32, #tpu.memory_space<vmem>>, %arg3: memref<2x32xf32, #tpu.memory_space<vmem>>, %arg4: memref<1x32xf32, #tpu.memory_space<vmem>>, %arg5: memref<32x32xf32, #tpu.memory_space<vmem>>, %arg6: memref<1x32xf32, #tpu.memory_space<vmem>>, %arg7: memref<32x2xf32, #tpu.memory_space<vmem>>, %arg8: memref<1x2xf32, #tpu.memory_space<vmem>>, %arg9: memref<8x8x2xf32, #tpu.memory_space<vmem>>) attributes {dimension_semantics = [#tpu.dimension_semantics<arbitrary>], iteration_bounds = array<i64: 1>, scalar_prefetch = 1 : i64, scratch_operands = 0 : i64, tpu.core_type = #tpu.core_type<tc>, window_params = [{pipeline_mode = #tpu.pipeline_mode<synchronous>, transform_indices = @transform_0, window_bounds = array<i64: 8, 2>}, {pipeline_mode = #tpu.pipeline_mode<synchronous>, transform_indices = @transform_1, window_bounds = array<i64: 2, 32>}, {pipeline_mode = #tpu.pipeline_mode<synchronous>, transform_indices = @transform_2, window_bounds = array<i64: 1, 32>}, {pipeline_mode = #tpu.pipeline_mode<synchronous>, transform_indices = @transform_3, window_bounds = array<i64: 32, 32>}, {pipeline_mode = #tpu.pipeline_mode<synchronous>, transform_indices = @transform_4, window_bounds = array<i64: 1, 32>}, {pipeline_mode = #tpu.pipeline_mode<synchronous>, transform_indices = @transform_5, window_bounds = array<i64: 32, 2>}, {pipeline_mode = #tpu.pipeline_mode<synchronous>, transform_indices = @transform_6, window_bounds = array<i64: 1, 2>}, {pipeline_mode = #tpu.pipeline_mode<synchronous>, transform_indices = @transform_7, window_bounds = array<i64: 8, 8, 2>}]} {
    %c0 = arith.constant 0 : index
    %c0_0 = arith.constant 0 : index
    %0 = vector.load %arg3[%c0, %c0_0] : memref<2x32xf32, #tpu.memory_space<vmem>>, vector<2x32xf32>
    %c0_1 = arith.constant 0 : index
    %c0_2 = arith.constant 0 : index
    %1 = vector.load %arg5[%c0_1, %c0_2] : memref<32x32xf32, #tpu.memory_space<vmem>>, vector<32x32xf32>
    %c0_3 = arith.constant 0 : index
    %c0_4 = arith.constant 0 : index
    %2 = vector.load %arg7[%c0_3, %c0_4] : memref<32x2xf32, #tpu.memory_space<vmem>>, vector<32x2xf32>
    %c0_5 = arith.constant 0 : index
    %c0_6 = arith.constant 0 : index
    %3 = vector.load %arg4[%c0_5, %c0_6] : memref<1x32xf32, #tpu.memory_space<vmem>>, vector<1x32xf32>
    %4 = vector.shape_cast %3 : vector<1x32xf32> to vector<1x32xf32>
    %5 = vector.broadcast %4 : vector<1x32xf32> to vector<8x32xf32>
    %c0_7 = arith.constant 0 : index
    %c0_8 = arith.constant 0 : index
    %6 = vector.load %arg6[%c0_7, %c0_8] : memref<1x32xf32, #tpu.memory_space<vmem>>, vector<1x32xf32>
    %7 = vector.shape_cast %6 : vector<1x32xf32> to vector<1x32xf32>
    %8 = vector.broadcast %7 : vector<1x32xf32> to vector<8x32xf32>
    %c0_9 = arith.constant 0 : index
    %c0_10 = arith.constant 0 : index
    %9 = vector.load %arg8[%c0_9, %c0_10] : memref<1x2xf32, #tpu.memory_space<vmem>>, vector<1x2xf32>
    %10 = vector.shape_cast %9 : vector<1x2xf32> to vector<1x2xf32>
    %11 = vector.broadcast %10 : vector<1x2xf32> to vector<8x2xf32>
    %c0_11 = arith.constant 0 : index
    %c0_12 = arith.constant 0 : index
    %12 = vector.load %arg2[%c0_11, %c0_12] : memref<8x2xf32, #tpu.memory_space<vmem>>, vector<8x2xf32>
    %c0_13 = arith.constant 0 : index
    %c0_14 = arith.constant 0 : index
    %c0_15 = arith.constant 0 : index
    %13 = vector.load %arg9[%c0_13, %c0_14, %c0_15] : memref<8x8x2xf32, #tpu.memory_space<vmem>>, vector<1x8x2xf32>
    %14 = vector.shape_cast %13 : vector<1x8x2xf32> to vector<8x2xf32>
    %15 = vector.shape_cast %12 : vector<8x2xf32> to vector<1x8x2xf32>
    tpu.vector_store %arg9[%c0_13, %c0_14, %c0_15], %15 {strides = array<i32>} : memref<8x8x2xf32, #tpu.memory_space<vmem>>, vector<1x8x2xf32>,
    %c1_i32 = arith.constant 1 : i32
    %16 = arith.index_cast %c1_i32 : i32 to index
    %17 = memref.load %arg1[%16] : memref<8xf32, #tpu.memory_space<smem>>
    %c1_i32_16 = arith.constant 1 : i32
    %18 = arith.subi %c1_i32, %c1_i32_16 : i32
    %19 = arith.index_cast %18 : i32 to index
    %20 = memref.load %arg1[%19] : memref<8xf32, #tpu.memory_space<smem>>
    %21 = arith.subf %17, %20 : f32
    %cst = arith.constant 0.333333343 : f32
    %22 = arith.mulf %21, %cst : f32
    %cst_17 = arith.constant 1.250000e-01 : f32
    %23 = arith.mulf %21, %cst_17 : f32
    %cst_18 = arith.constant dense<0.000000e+00> : vector<8x32xf32>
    %24 = tpu.matmul %12, %0, %cst_18 {dimension_numbers = #tpu.dot_dimension_numbers<[1], [0], [0], [1], [0, 0, 1, 1], [], []>} : vector<8x2xf32>, vector<2x32xf32>, vector<8x32xf32> -> vector<8x32xf32>
    %25 = arith.addf %24, %5 : vector<8x32xf32>
    %26 = math.tanh %25 : vector<8x32xf32>
    %cst_19 = arith.constant dense<0.000000e+00> : vector<8x32xf32>
    %27 = tpu.matmul %26, %1, %cst_19 {dimension_numbers = #tpu.dot_dimension_numbers<[1], [0], [0], [1], [0, 0, 1, 1], [], []>} : vector<8x32xf32>, vector<32x32xf32>, vector<8x32xf32> -> vector<8x32xf32>
    %28 = arith.addf %27, %8 : vector<8x32xf32>
    %29 = math.tanh %28 : vector<8x32xf32>
    %cst_20 = arith.constant dense<0.000000e+00> : vector<8x2xf32>
    %30 = tpu.matmul %29, %2, %cst_20 {dimension_numbers = #tpu.dot_dimension_numbers<[1], [0], [0], [1], [0, 0, 1, 1], [], []>} : vector<8x32xf32>, vector<32x2xf32>, vector<8x2xf32> -> vector<8x2xf32>
    %31 = arith.addf %30, %11 : vector<8x2xf32>
    %32 = vector.extract_strided_slice %12 {offsets = [0, 1], sizes = [8, 1], strides = [1, 1]} : vector<8x2xf32> to vector<8x1xf32>
    %cst_21 = arith.constant -5.000000e-01 : f32
    %33 = vector.broadcast %cst_21 : f32 to vector<8x1xf32>
    %34 = arith.mulf %33, %32 : vector<8x1xf32>
    %35 = vector.extract_strided_slice %12 {offsets = [0, 0], sizes = [8, 1], strides = [1, 1]} : vector<8x2xf32> to vector<8x1xf32>
    %cst_22 = arith.constant 5.000000e-01 : f32
    %36 = vector.broadcast %cst_22 : f32 to vector<8x1xf32>
    %37 = arith.mulf %36, %35 : vector<8x1xf32>
    %38 = tpu.concatenate %34, %37 in 1 : vector<8x1xf32>, vector<8x1xf32> -> vector<8x2xf32>
    %39 = arith.addf %31, %38 : vector<8x2xf32>
    %40 = vector.broadcast %22 : f32 to vector<8x2xf32>
    %41 = arith.mulf %40, %39 : vector<8x2xf32>
    %42 = arith.addf %12, %41 : vector<8x2xf32>
    %cst_23 = arith.constant dense<0.000000e+00> : vector<8x32xf32>
    %43 = tpu.matmul %42, %0, %cst_23 {dimension_numbers = #tpu.dot_dimension_numbers<[1], [0], [0], [1], [0, 0, 1, 1], [], []>} : vector<8x2xf32>, vector<2x32xf32>, vector<8x32xf32> -> vector<8x32xf32>
    %44 = arith.addf %43, %5 : vector<8x32xf32>
    %45 = math.tanh %44 : vector<8x32xf32>
    %cst_24 = arith.constant dense<0.000000e+00> : vector<8x32xf32>
    %46 = tpu.matmul %45, %1, %cst_24 {dimension_numbers = #tpu.dot_dimension_numbers<[1], [0], [0], [1], [0, 0, 1, 1], [], []>} : vector<8x32xf32>, vector<32x32xf32>, vector<8x32xf32> -> vector<8x32xf32>
    %47 = arith.addf %46, %8 : vector<8x32xf32>
    %48 = math.tanh %47 : vector<8x32xf32>
    %cst_25 = arith.constant dense<0.000000e+00> : vector<8x2xf32>
    %49 = tpu.matmul %48, %2, %cst_25 {dimension_numbers = #tpu.dot_dimension_numbers<[1], [0], [0], [1], [0, 0, 1, 1], [], []>} : vector<8x32xf32>, vector<32x2xf32>, vector<8x2xf32> -> vector<8x2xf32>
    %50 = arith.addf %49, %11 : vector<8x2xf32>
    %51 = vector.extract_strided_slice %42 {offsets = [0, 1], sizes = [8, 1], strides = [1, 1]} : vector<8x2xf32> to vector<8x1xf32>
    %cst_26 = arith.constant -5.000000e-01 : f32
    %52 = vector.broadcast %cst_26 : f32 to vector<8x1xf32>
    %53 = arith.mulf %52, %51 : vector<8x1xf32>
    %54 = vector.extract_strided_slice %42 {offsets = [0, 0], sizes = [8, 1], strides = [1, 1]} : vector<8x2xf32> to vector<8x1xf32>
    %cst_27 = arith.constant 5.000000e-01 : f32
    %55 = vector.broadcast %cst_27 : f32 to vector<8x1xf32>
    %56 = arith.mulf %55, %54 : vector<8x1xf32>
    %57 = tpu.concatenate %53, %56 in 1 : vector<8x1xf32>, vector<8x1xf32> -> vector<8x2xf32>
    %58 = arith.addf %50, %57 : vector<8x2xf32>
    %59 = vector.broadcast %21 : f32 to vector<8x2xf32>
    %60 = arith.mulf %59, %58 : vector<8x2xf32>
    %61 = arith.subf %60, %41 : vector<8x2xf32>
    %62 = arith.addf %12, %61 : vector<8x2xf32>
    %cst_28 = arith.constant dense<0.000000e+00> : vector<8x32xf32>
    %63 = tpu.matmul %62, %0, %cst_28 {dimension_numbers = #tpu.dot_dimension_numbers<[1], [0], [0], [1], [0, 0, 1, 1], [], []>} : vector<8x2xf32>, vector<2x32xf32>, vector<8x32xf32> -> vector<8x32xf32>
    %64 = arith.addf %63, %5 : vector<8x32xf32>
    %65 = math.tanh %64 : vector<8x32xf32>
    %cst_29 = arith.constant dense<0.000000e+00> : vector<8x32xf32>
    %66 = tpu.matmul %65, %1, %cst_29 {dimension_numbers = #tpu.dot_dimension_numbers<[1], [0], [0], [1], [0, 0, 1, 1], [], []>} : vector<8x32xf32>, vector<32x32xf32>, vector<8x32xf32> -> vector<8x32xf32>
    %67 = arith.addf %66, %8 : vector<8x32xf32>
    %68 = math.tanh %67 : vector<8x32xf32>
    %cst_30 = arith.constant dense<0.000000e+00> : vector<8x2xf32>
    %69 = tpu.matmul %68, %2, %cst_30 {dimension_numbers = #tpu.dot_dimension_numbers<[1], [0], [0], [1], [0, 0, 1, 1], [], []>} : vector<8x32xf32>, vector<32x2xf32>, vector<8x2xf32> -> vector<8x2xf32>
    %70 = arith.addf %69, %11 : vector<8x2xf32>
    %71 = vector.extract_strided_slice %62 {offsets = [0, 1], sizes = [8, 1], strides = [1, 1]} : vector<8x2xf32> to vector<8x1xf32>
    %cst_31 = arith.constant -5.000000e-01 : f32
    %72 = vector.broadcast %cst_31 : f32 to vector<8x1xf32>
    %73 = arith.mulf %72, %71 : vector<8x1xf32>
    %74 = vector.extract_strided_slice %62 {offsets = [0, 0], sizes = [8, 1], strides = [1, 1]} : vector<8x2xf32> to vector<8x1xf32>
    %cst_32 = arith.constant 5.000000e-01 : f32
    %75 = vector.broadcast %cst_32 : f32 to vector<8x1xf32>
    %76 = arith.mulf %75, %74 : vector<8x1xf32>
    %77 = tpu.concatenate %73, %76 in 1 : vector<8x1xf32>, vector<8x1xf32> -> vector<8x2xf32>
    %78 = arith.addf %70, %77 : vector<8x2xf32>
    %cst_33 = arith.constant 3.000000e+00 : f32
    %79 = vector.broadcast %cst_33 : f32 to vector<8x2xf32>
    %80 = arith.mulf %79, %41 : vector<8x2xf32>
    %81 = arith.subf %80, %60 : vector<8x2xf32>
    %82 = vector.broadcast %21 : f32 to vector<8x2xf32>
    %83 = arith.mulf %82, %78 : vector<8x2xf32>
    %84 = arith.addf %81, %83 : vector<8x2xf32>
    %85 = arith.addf %12, %84 : vector<8x2xf32>
    %cst_34 = arith.constant dense<0.000000e+00> : vector<8x32xf32>
    %86 = tpu.matmul %85, %0, %cst_34 {dimension_numbers = #tpu.dot_dimension_numbers<[1], [0], [0], [1], [0, 0, 1, 1], [], []>} : vector<8x2xf32>, vector<2x32xf32>, vector<8x32xf32> -> vector<8x32xf32>
    %87 = arith.addf %86, %5 : vector<8x32xf32>
    %88 = math.tanh %87 : vector<8x32xf32>
    %cst_35 = arith.constant dense<0.000000e+00> : vector<8x32xf32>
    %89 = tpu.matmul %88, %1, %cst_35 {dimension_numbers = #tpu.dot_dimension_numbers<[1], [0], [0], [1], [0, 0, 1, 1], [], []>} : vector<8x32xf32>, vector<32x32xf32>, vector<8x32xf32> -> vector<8x32xf32>
    %90 = arith.addf %89, %8 : vector<8x32xf32>
    %91 = math.tanh %90 : vector<8x32xf32>
    %cst_36 = arith.constant dense<0.000000e+00> : vector<8x2xf32>
    %92 = tpu.matmul %91, %2, %cst_36 {dimension_numbers = #tpu.dot_dimension_numbers<[1], [0], [0], [1], [0, 0, 1, 1], [], []>} : vector<8x32xf32>, vector<32x2xf32>, vector<8x2xf32> -> vector<8x2xf32>
    %93 = arith.addf %92, %11 : vector<8x2xf32>
    %94 = vector.extract_strided_slice %85 {offsets = [0, 1], sizes = [8, 1], strides = [1, 1]} : vector<8x2xf32> to vector<8x1xf32>
    %cst_37 = arith.constant -5.000000e-01 : f32
    %95 = vector.broadcast %cst_37 : f32 to vector<8x1xf32>
    %96 = arith.mulf %95, %94 : vector<8x1xf32>
    %97 = vector.extract_strided_slice %85 {offsets = [0, 0], sizes = [8, 1], strides = [1, 1]} : vector<8x2xf32> to vector<8x1xf32>
    %cst_38 = arith.constant 5.000000e-01 : f32
    %98 = vector.broadcast %cst_38 : f32 to vector<8x1xf32>
    %99 = arith.mulf %98, %97 : vector<8x1xf32>
    %100 = tpu.concatenate %96, %99 in 1 : vector<8x1xf32>, vector<8x1xf32> -> vector<8x2xf32>
    %101 = arith.addf %93, %100 : vector<8x2xf32>
    %102 = arith.addf %58, %78 : vector<8x2xf32>
    %cst_39 = arith.constant 3.000000e+00 : f32
    %103 = vector.broadcast %cst_39 : f32 to vector<8x2xf32>
    %104 = arith.mulf %103, %102 : vector<8x2xf32>
    %105 = arith.addf %39, %104 : vector<8x2xf32>
    %106 = arith.addf %105, %101 : vector<8x2xf32>
    %107 = vector.broadcast %23 : f32 to vector<8x2xf32>
    %108 = arith.mulf %107, %106 : vector<8x2xf32>
    %109 = arith.addf %12, %108 : vector<8x2xf32>
    %110 = arith.index_cast %c1_i32 : i32 to index
    %c0_40 = arith.constant 0 : index
    %c0_41 = arith.constant 0 : index
    %111 = vector.load %arg9[%110, %c0_40, %c0_41] : memref<8x8x2xf32, #tpu.memory_space<vmem>>, vector<1x8x2xf32>
    %112 = vector.shape_cast %111 : vector<1x8x2xf32> to vector<8x2xf32>
    %113 = vector.shape_cast %109 : vector<8x2xf32> to vector<1x8x2xf32>
    tpu.vector_store %arg9[%110, %c0_40, %c0_41], %113 {strides = array<i32>} : memref<8x8x2xf32, #tpu.memory_space<vmem>>, vector<1x8x2xf32>,
    %c2_i32 = arith.constant 2 : i32
    %114 = arith.index_cast %c2_i32 : i32 to index
    %115 = memref.load %arg1[%114] : memref<8xf32, #tpu.memory_space<smem>>
    %c1_i32_42 = arith.constant 1 : i32
    %116 = arith.subi %c2_i32, %c1_i32_42 : i32
    %117 = arith.index_cast %116 : i32 to index
    %118 = memref.load %arg1[%117] : memref<8xf32, #tpu.memory_space<smem>>
    %119 = arith.subf %115, %118 : f32
    %cst_43 = arith.constant 0.333333343 : f32
    %120 = arith.mulf %119, %cst_43 : f32
    %cst_44 = arith.constant 1.250000e-01 : f32
    %121 = arith.mulf %119, %cst_44 : f32
    %cst_45 = arith.constant dense<0.000000e+00> : vector<8x32xf32>
    %122 = tpu.matmul %109, %0, %cst_45 {dimension_numbers = #tpu.dot_dimension_numbers<[1], [0], [0], [1], [0, 0, 1, 1], [], []>} : vector<8x2xf32>, vector<2x32xf32>, vector<8x32xf32> -> vector<8x32xf32>
    %123 = arith.addf %122, %5 : vector<8x32xf32>
    %124 = math.tanh %123 : vector<8x32xf32>
    %cst_46 = arith.constant dense<0.000000e+00> : vector<8x32xf32>
    %125 = tpu.matmul %124, %1, %cst_46 {dimension_numbers = #tpu.dot_dimension_numbers<[1], [0], [0], [1], [0, 0, 1, 1], [], []>} : vector<8x32xf32>, vector<32x32xf32>, vector<8x32xf32> -> vector<8x32xf32>
    %126 = arith.addf %125, %8 : vector<8x32xf32>
    %127 = math.tanh %126 : vector<8x32xf32>
    %cst_47 = arith.constant dense<0.000000e+00> : vector<8x2xf32>
    %128 = tpu.matmul %127, %2, %cst_47 {dimension_numbers = #tpu.dot_dimension_numbers<[1], [0], [0], [1], [0, 0, 1, 1], [], []>} : vector<8x32xf32>, vector<32x2xf32>, vector<8x2xf32> -> vector<8x2xf32>
    %129 = arith.addf %128, %11 : vector<8x2xf32>
    %130 = vector.extract_strided_slice %109 {offsets = [0, 1], sizes = [8, 1], strides = [1, 1]} : vector<8x2xf32> to vector<8x1xf32>
    %cst_48 = arith.constant -5.000000e-01 : f32
    %131 = vector.broadcast %cst_48 : f32 to vector<8x1xf32>
    %132 = arith.mulf %131, %130 : vector<8x1xf32>
    %133 = vector.extract_strided_slice %109 {offsets = [0, 0], sizes = [8, 1], strides = [1, 1]} : vector<8x2xf32> to vector<8x1xf32>
    %cst_49 = arith.constant 5.000000e-01 : f32
    %134 = vector.broadcast %cst_49 : f32 to vector<8x1xf32>
    %135 = arith.mulf %134, %133 : vector<8x1xf32>
    %136 = tpu.concatenate %132, %135 in 1 : vector<8x1xf32>, vector<8x1xf32> -> vector<8x2xf32>
    %137 = arith.addf %129, %136 : vector<8x2xf32>
    %138 = vector.broadcast %120 : f32 to vector<8x2xf32>
    %139 = arith.mulf %138, %137 : vector<8x2xf32>
    %140 = arith.addf %109, %139 : vector<8x2xf32>
    %cst_50 = arith.constant dense<0.000000e+00> : vector<8x32xf32>
    %141 = tpu.matmul %140, %0, %cst_50 {dimension_numbers = #tpu.dot_dimension_numbers<[1], [0], [0], [1], [0, 0, 1, 1], [], []>} : vector<8x2xf32>, vector<2x32xf32>, vector<8x32xf32> -> vector<8x32xf32>
    %142 = arith.addf %141, %5 : vector<8x32xf32>
    %143 = math.tanh %142 : vector<8x32xf32>
    %cst_51 = arith.constant dense<0.000000e+00> : vector<8x32xf32>
    %144 = tpu.matmul %143, %1, %cst_51 {dimension_numbers = #tpu.dot_dimension_numbers<[1], [0], [0], [1], [0, 0, 1, 1], [], []>} : vector<8x32xf32>, vector<32x32xf32>, vector<8x32xf32> -> vector<8x32xf32>
    %145 = arith.addf %144, %8 : vector<8x32xf32>
    %146 = math.tanh %145 : vector<8x32xf32>
    %cst_52 = arith.constant dense<0.000000e+00> : vector<8x2xf32>
    %147 = tpu.matmul %146, %2, %cst_52 {dimension_numbers = #tpu.dot_dimension_numbers<[1], [0], [0], [1], [0, 0, 1, 1], [], []>} : vector<8x32xf32>, vector<32x2xf32>, vector<8x2xf32> -> vector<8x2xf32>
    %148 = arith.addf %147, %11 : vector<8x2xf32>
    %149 = vector.extract_strided_slice %140 {offsets = [0, 1], sizes = [8, 1], strides = [1, 1]} : vector<8x2xf32> to vector<8x1xf32>
    %cst_53 = arith.constant -5.000000e-01 : f32
    %150 = vector.broadcast %cst_53 : f32 to vector<8x1xf32>
    %151 = arith.mulf %150, %149 : vector<8x1xf32>
    %152 = vector.extract_strided_slice %140 {offsets = [0, 0], sizes = [8, 1], strides = [1, 1]} : vector<8x2xf32> to vector<8x1xf32>
    %cst_54 = arith.constant 5.000000e-01 : f32
    %153 = vector.broadcast %cst_54 : f32 to vector<8x1xf32>
    %154 = arith.mulf %153, %152 : vector<8x1xf32>
    %155 = tpu.concatenate %151, %154 in 1 : vector<8x1xf32>, vector<8x1xf32> -> vector<8x2xf32>
    %156 = arith.addf %148, %155 : vector<8x2xf32>
    %157 = vector.broadcast %119 : f32 to vector<8x2xf32>
    %158 = arith.mulf %157, %156 : vector<8x2xf32>
    %159 = arith.subf %158, %139 : vector<8x2xf32>
    %160 = arith.addf %109, %159 : vector<8x2xf32>
    %cst_55 = arith.constant dense<0.000000e+00> : vector<8x32xf32>
    %161 = tpu.matmul %160, %0, %cst_55 {dimension_numbers = #tpu.dot_dimension_numbers<[1], [0], [0], [1], [0, 0, 1, 1], [], []>} : vector<8x2xf32>, vector<2x32xf32>, vector<8x32xf32> -> vector<8x32xf32>
    %162 = arith.addf %161, %5 : vector<8x32xf32>
    %163 = math.tanh %162 : vector<8x32xf32>
    %cst_56 = arith.constant dense<0.000000e+00> : vector<8x32xf32>
    %164 = tpu.matmul %163, %1, %cst_56 {dimension_numbers = #tpu.dot_dimension_numbers<[1], [0], [0], [1], [0, 0, 1, 1], [], []>} : vector<8x32xf32>, vector<32x32xf32>, vector<8x32xf32> -> vector<8x32xf32>
    %165 = arith.addf %164, %8 : vector<8x32xf32>
    %166 = math.tanh %165 : vector<8x32xf32>
    %cst_57 = arith.constant dense<0.000000e+00> : vector<8x2xf32>
    %167 = tpu.matmul %166, %2, %cst_57 {dimension_numbers = #tpu.dot_dimension_numbers<[1], [0], [0], [1], [0, 0, 1, 1], [], []>} : vector<8x32xf32>, vector<32x2xf32>, vector<8x2xf32> -> vector<8x2xf32>
    %168 = arith.addf %167, %11 : vector<8x2xf32>
    %169 = vector.extract_strided_slice %160 {offsets = [0, 1], sizes = [8, 1], strides = [1, 1]} : vector<8x2xf32> to vector<8x1xf32>
    %cst_58 = arith.constant -5.000000e-01 : f32
    %170 = vector.broadcast %cst_58 : f32 to vector<8x1xf32>
    %171 = arith.mulf %170, %169 : vector<8x1xf32>
    %172 = vector.extract_strided_slice %160 {offsets = [0, 0], sizes = [8, 1], strides = [1, 1]} : vector<8x2xf32> to vector<8x1xf32>
    %cst_59 = arith.constant 5.000000e-01 : f32
    %173 = vector.broadcast %cst_59 : f32 to vector<8x1xf32>
    %174 = arith.mulf %173, %172 : vector<8x1xf32>
    %175 = tpu.concatenate %171, %174 in 1 : vector<8x1xf32>, vector<8x1xf32> -> vector<8x2xf32>
    %176 = arith.addf %168, %175 : vector<8x2xf32>
    %cst_60 = arith.constant 3.000000e+00 : f32
    %177 = vector.broadcast %cst_60 : f32 to vector<8x2xf32>
    %178 = arith.mulf %177, %139 : vector<8x2xf32>
    %179 = arith.subf %178, %158 : vector<8x2xf32>
    %180 = vector.broadcast %119 : f32 to vector<8x2xf32>
    %181 = arith.mulf %180, %176 : vector<8x2xf32>
    %182 = arith.addf %179, %181 : vector<8x2xf32>
    %183 = arith.addf %109, %182 : vector<8x2xf32>
    %cst_61 = arith.constant dense<0.000000e+00> : vector<8x32xf32>
    %184 = tpu.matmul %183, %0, %cst_61 {dimension_numbers = #tpu.dot_dimension_numbers<[1], [0], [0], [1], [0, 0, 1, 1], [], []>} : vector<8x2xf32>, vector<2x32xf32>, vector<8x32xf32> -> vector<8x32xf32>
    %185 = arith.addf %184, %5 : vector<8x32xf32>
    %186 = math.tanh %185 : vector<8x32xf32>
    %cst_62 = arith.constant dense<0.000000e+00> : vector<8x32xf32>
    %187 = tpu.matmul %186, %1, %cst_62 {dimension_numbers = #tpu.dot_dimension_numbers<[1], [0], [0], [1], [0, 0, 1, 1], [], []>} : vector<8x32xf32>, vector<32x32xf32>, vector<8x32xf32> -> vector<8x32xf32>
    %188 = arith.addf %187, %8 : vector<8x32xf32>
    %189 = math.tanh %188 : vector<8x32xf32>
    %cst_63 = arith.constant dense<0.000000e+00> : vector<8x2xf32>
    %190 = tpu.matmul %189, %2, %cst_63 {dimension_numbers = #tpu.dot_dimension_numbers<[1], [0], [0], [1], [0, 0, 1, 1], [], []>} : vector<8x32xf32>, vector<32x2xf32>, vector<8x2xf32> -> vector<8x2xf32>
    %191 = arith.addf %190, %11 : vector<8x2xf32>
    %192 = vector.extract_strided_slice %183 {offsets = [0, 1], sizes = [8, 1], strides = [1, 1]} : vector<8x2xf32> to vector<8x1xf32>
    %cst_64 = arith.constant -5.000000e-01 : f32
    %193 = vector.broadcast %cst_64 : f32 to vector<8x1xf32>
    %194 = arith.mulf %193, %192 : vector<8x1xf32>
    %195 = vector.extract_strided_slice %183 {offsets = [0, 0], sizes = [8, 1], strides = [1, 1]} : vector<8x2xf32> to vector<8x1xf32>
    %cst_65 = arith.constant 5.000000e-01 : f32
    %196 = vector.broadcast %cst_65 : f32 to vector<8x1xf32>
    %197 = arith.mulf %196, %195 : vector<8x1xf32>
    %198 = tpu.concatenate %194, %197 in 1 : vector<8x1xf32>, vector<8x1xf32> -> vector<8x2xf32>
    %199 = arith.addf %191, %198 : vector<8x2xf32>
    %200 = arith.addf %156, %176 : vector<8x2xf32>
    %cst_66 = arith.constant 3.000000e+00 : f32
    %201 = vector.broadcast %cst_66 : f32 to vector<8x2xf32>
    %202 = arith.mulf %201, %200 : vector<8x2xf32>
    %203 = arith.addf %137, %202 : vector<8x2xf32>
    %204 = arith.addf %203, %199 : vector<8x2xf32>
    %205 = vector.broadcast %121 : f32 to vector<8x2xf32>
    %206 = arith.mulf %205, %204 : vector<8x2xf32>
    %207 = arith.addf %109, %206 : vector<8x2xf32>
    %208 = arith.index_cast %c2_i32 : i32 to index
    %c0_67 = arith.constant 0 : index
    %c0_68 = arith.constant 0 : index
    %209 = vector.load %arg9[%208, %c0_67, %c0_68] : memref<8x8x2xf32, #tpu.memory_space<vmem>>, vector<1x8x2xf32>
    %210 = vector.shape_cast %209 : vector<1x8x2xf32> to vector<8x2xf32>
    %211 = vector.shape_cast %207 : vector<8x2xf32> to vector<1x8x2xf32>
    tpu.vector_store %arg9[%208, %c0_67, %c0_68], %211 {strides = array<i32>} : memref<8x8x2xf32, #tpu.memory_space<vmem>>, vector<1x8x2xf32>,
    %c3_i32 = arith.constant 3 : i32
    %212 = arith.index_cast %c3_i32 : i32 to index
    %213 = memref.load %arg1[%212] : memref<8xf32, #tpu.memory_space<smem>>
    %c1_i32_69 = arith.constant 1 : i32
    %214 = arith.subi %c3_i32, %c1_i32_69 : i32
    %215 = arith.index_cast %214 : i32 to index
    %216 = memref.load %arg1[%215] : memref<8xf32, #tpu.memory_space<smem>>
    %217 = arith.subf %213, %216 : f32
    %cst_70 = arith.constant 0.333333343 : f32
    %218 = arith.mulf %217, %cst_70 : f32
    %cst_71 = arith.constant 1.250000e-01 : f32
    %219 = arith.mulf %217, %cst_71 : f32
    %cst_72 = arith.constant dense<0.000000e+00> : vector<8x32xf32>
    %220 = tpu.matmul %207, %0, %cst_72 {dimension_numbers = #tpu.dot_dimension_numbers<[1], [0], [0], [1], [0, 0, 1, 1], [], []>} : vector<8x2xf32>, vector<2x32xf32>, vector<8x32xf32> -> vector<8x32xf32>
    %221 = arith.addf %220, %5 : vector<8x32xf32>
    %222 = math.tanh %221 : vector<8x32xf32>
    %cst_73 = arith.constant dense<0.000000e+00> : vector<8x32xf32>
    %223 = tpu.matmul %222, %1, %cst_73 {dimension_numbers = #tpu.dot_dimension_numbers<[1], [0], [0], [1], [0, 0, 1, 1], [], []>} : vector<8x32xf32>, vector<32x32xf32>, vector<8x32xf32> -> vector<8x32xf32>
    %224 = arith.addf %223, %8 : vector<8x32xf32>
    %225 = math.tanh %224 : vector<8x32xf32>
    %cst_74 = arith.constant dense<0.000000e+00> : vector<8x2xf32>
    %226 = tpu.matmul %225, %2, %cst_74 {dimension_numbers = #tpu.dot_dimension_numbers<[1], [0], [0], [1], [0, 0, 1, 1], [], []>} : vector<8x32xf32>, vector<32x2xf32>, vector<8x2xf32> -> vector<8x2xf32>
    %227 = arith.addf %226, %11 : vector<8x2xf32>
    %228 = vector.extract_strided_slice %207 {offsets = [0, 1], sizes = [8, 1], strides = [1, 1]} : vector<8x2xf32> to vector<8x1xf32>
    %cst_75 = arith.constant -5.000000e-01 : f32
    %229 = vector.broadcast %cst_75 : f32 to vector<8x1xf32>
    %230 = arith.mulf %229, %228 : vector<8x1xf32>
    %231 = vector.extract_strided_slice %207 {offsets = [0, 0], sizes = [8, 1], strides = [1, 1]} : vector<8x2xf32> to vector<8x1xf32>
    %cst_76 = arith.constant 5.000000e-01 : f32
    %232 = vector.broadcast %cst_76 : f32 to vector<8x1xf32>
    %233 = arith.mulf %232, %231 : vector<8x1xf32>
    %234 = tpu.concatenate %230, %233 in 1 : vector<8x1xf32>, vector<8x1xf32> -> vector<8x2xf32>
    %235 = arith.addf %227, %234 : vector<8x2xf32>
    %236 = vector.broadcast %218 : f32 to vector<8x2xf32>
    %237 = arith.mulf %236, %235 : vector<8x2xf32>
    %238 = arith.addf %207, %237 : vector<8x2xf32>
    %cst_77 = arith.constant dense<0.000000e+00> : vector<8x32xf32>
    %239 = tpu.matmul %238, %0, %cst_77 {dimension_numbers = #tpu.dot_dimension_numbers<[1], [0], [0], [1], [0, 0, 1, 1], [], []>} : vector<8x2xf32>, vector<2x32xf32>, vector<8x32xf32> -> vector<8x32xf32>
    %240 = arith.addf %239, %5 : vector<8x32xf32>
    %241 = math.tanh %240 : vector<8x32xf32>
    %cst_78 = arith.constant dense<0.000000e+00> : vector<8x32xf32>
    %242 = tpu.matmul %241, %1, %cst_78 {dimension_numbers = #tpu.dot_dimension_numbers<[1], [0], [0], [1], [0, 0, 1, 1], [], []>} : vector<8x32xf32>, vector<32x32xf32>, vector<8x32xf32> -> vector<8x32xf32>
    %243 = arith.addf %242, %8 : vector<8x32xf32>
    %244 = math.tanh %243 : vector<8x32xf32>
    %cst_79 = arith.constant dense<0.000000e+00> : vector<8x2xf32>
    %245 = tpu.matmul %244, %2, %cst_79 {dimension_numbers = #tpu.dot_dimension_numbers<[1], [0], [0], [1], [0, 0, 1, 1], [], []>} : vector<8x32xf32>, vector<32x2xf32>, vector<8x2xf32> -> vector<8x2xf32>
    %246 = arith.addf %245, %11 : vector<8x2xf32>
    %247 = vector.extract_strided_slice %238 {offsets = [0, 1], sizes = [8, 1], strides = [1, 1]} : vector<8x2xf32> to vector<8x1xf32>
    %cst_80 = arith.constant -5.000000e-01 : f32
    %248 = vector.broadcast %cst_80 : f32 to vector<8x1xf32>
    %249 = arith.mulf %248, %247 : vector<8x1xf32>
    %250 = vector.extract_strided_slice %238 {offsets = [0, 0], sizes = [8, 1], strides = [1, 1]} : vector<8x2xf32> to vector<8x1xf32>
    %cst_81 = arith.constant 5.000000e-01 : f32
    %251 = vector.broadcast %cst_81 : f32 to vector<8x1xf32>
    %252 = arith.mulf %251, %250 : vector<8x1xf32>
    %253 = tpu.concatenate %249, %252 in 1 : vector<8x1xf32>, vector<8x1xf32> -> vector<8x2xf32>
    %254 = arith.addf %246, %253 : vector<8x2xf32>
    %255 = vector.broadcast %217 : f32 to vector<8x2xf32>
    %256 = arith.mulf %255, %254 : vector<8x2xf32>
    %257 = arith.subf %256, %237 : vector<8x2xf32>
    %258 = arith.addf %207, %257 : vector<8x2xf32>
    %cst_82 = arith.constant dense<0.000000e+00> : vector<8x32xf32>
    %259 = tpu.matmul %258, %0, %cst_82 {dimension_numbers = #tpu.dot_dimension_numbers<[1], [0], [0], [1], [0, 0, 1, 1], [], []>} : vector<8x2xf32>, vector<2x32xf32>, vector<8x32xf32> -> vector<8x32xf32>
    %260 = arith.addf %259, %5 : vector<8x32xf32>
    %261 = math.tanh %260 : vector<8x32xf32>
    %cst_83 = arith.constant dense<0.000000e+00> : vector<8x32xf32>
    %262 = tpu.matmul %261, %1, %cst_83 {dimension_numbers = #tpu.dot_dimension_numbers<[1], [0], [0], [1], [0, 0, 1, 1], [], []>} : vector<8x32xf32>, vector<32x32xf32>, vector<8x32xf32> -> vector<8x32xf32>
    %263 = arith.addf %262, %8 : vector<8x32xf32>
    %264 = math.tanh %263 : vector<8x32xf32>
    %cst_84 = arith.constant dense<0.000000e+00> : vector<8x2xf32>
    %265 = tpu.matmul %264, %2, %cst_84 {dimension_numbers = #tpu.dot_dimension_numbers<[1], [0], [0], [1], [0, 0, 1, 1], [], []>} : vector<8x32xf32>, vector<32x2xf32>, vector<8x2xf32> -> vector<8x2xf32>
    %266 = arith.addf %265, %11 : vector<8x2xf32>
    %267 = vector.extract_strided_slice %258 {offsets = [0, 1], sizes = [8, 1], strides = [1, 1]} : vector<8x2xf32> to vector<8x1xf32>
    %cst_85 = arith.constant -5.000000e-01 : f32
    %268 = vector.broadcast %cst_85 : f32 to vector<8x1xf32>
    %269 = arith.mulf %268, %267 : vector<8x1xf32>
    %270 = vector.extract_strided_slice %258 {offsets = [0, 0], sizes = [8, 1], strides = [1, 1]} : vector<8x2xf32> to vector<8x1xf32>
    %cst_86 = arith.constant 5.000000e-01 : f32
    %271 = vector.broadcast %cst_86 : f32 to vector<8x1xf32>
    %272 = arith.mulf %271, %270 : vector<8x1xf32>
    %273 = tpu.concatenate %269, %272 in 1 : vector<8x1xf32>, vector<8x1xf32> -> vector<8x2xf32>
    %274 = arith.addf %266, %273 : vector<8x2xf32>
    %cst_87 = arith.constant 3.000000e+00 : f32
    %275 = vector.broadcast %cst_87 : f32 to vector<8x2xf32>
    %276 = arith.mulf %275, %237 : vector<8x2xf32>
    %277 = arith.subf %276, %256 : vector<8x2xf32>
    %278 = vector.broadcast %217 : f32 to vector<8x2xf32>
    %279 = arith.mulf %278, %274 : vector<8x2xf32>
    %280 = arith.addf %277, %279 : vector<8x2xf32>
    %281 = arith.addf %207, %280 : vector<8x2xf32>
    %cst_88 = arith.constant dense<0.000000e+00> : vector<8x32xf32>
    %282 = tpu.matmul %281, %0, %cst_88 {dimension_numbers = #tpu.dot_dimension_numbers<[1], [0], [0], [1], [0, 0, 1, 1], [], []>} : vector<8x2xf32>, vector<2x32xf32>, vector<8x32xf32> -> vector<8x32xf32>
    %283 = arith.addf %282, %5 : vector<8x32xf32>
    %284 = math.tanh %283 : vector<8x32xf32>
    %cst_89 = arith.constant dense<0.000000e+00> : vector<8x32xf32>
    %285 = tpu.matmul %284, %1, %cst_89 {dimension_numbers = #tpu.dot_dimension_numbers<[1], [0], [0], [1], [0, 0, 1, 1], [], []>} : vector<8x32xf32>, vector<32x32xf32>, vector<8x32xf32> -> vector<8x32xf32>
    %286 = arith.addf %285, %8 : vector<8x32xf32>
    %287 = math.tanh %286 : vector<8x32xf32>
    %cst_90 = arith.constant dense<0.000000e+00> : vector<8x2xf32>
    %288 = tpu.matmul %287, %2, %cst_90 {dimension_numbers = #tpu.dot_dimension_numbers<[1], [0], [0], [1], [0, 0, 1, 1], [], []>} : vector<8x32xf32>, vector<32x2xf32>, vector<8x2xf32> -> vector<8x2xf32>
    %289 = arith.addf %288, %11 : vector<8x2xf32>
    %290 = vector.extract_strided_slice %281 {offsets = [0, 1], sizes = [8, 1], strides = [1, 1]} : vector<8x2xf32> to vector<8x1xf32>
    %cst_91 = arith.constant -5.000000e-01 : f32
    %291 = vector.broadcast %cst_91 : f32 to vector<8x1xf32>
    %292 = arith.mulf %291, %290 : vector<8x1xf32>
    %293 = vector.extract_strided_slice %281 {offsets = [0, 0], sizes = [8, 1], strides = [1, 1]} : vector<8x2xf32> to vector<8x1xf32>
    %cst_92 = arith.constant 5.000000e-01 : f32
    %294 = vector.broadcast %cst_92 : f32 to vector<8x1xf32>
    %295 = arith.mulf %294, %293 : vector<8x1xf32>
    %296 = tpu.concatenate %292, %295 in 1 : vector<8x1xf32>, vector<8x1xf32> -> vector<8x2xf32>
    %297 = arith.addf %289, %296 : vector<8x2xf32>
    %298 = arith.addf %254, %274 : vector<8x2xf32>
    %cst_93 = arith.constant 3.000000e+00 : f32
    %299 = vector.broadcast %cst_93 : f32 to vector<8x2xf32>
    %300 = arith.mulf %299, %298 : vector<8x2xf32>
    %301 = arith.addf %235, %300 : vector<8x2xf32>
    %302 = arith.addf %301, %297 : vector<8x2xf32>
    %303 = vector.broadcast %219 : f32 to vector<8x2xf32>
    %304 = arith.mulf %303, %302 : vector<8x2xf32>
    %305 = arith.addf %207, %304 : vector<8x2xf32>
    %306 = arith.index_cast %c3_i32 : i32 to index
    %c0_94 = arith.constant 0 : index
    %c0_95 = arith.constant 0 : index
    %307 = vector.load %arg9[%306, %c0_94, %c0_95] : memref<8x8x2xf32, #tpu.memory_space<vmem>>, vector<1x8x2xf32>
    %308 = vector.shape_cast %307 : vector<1x8x2xf32> to vector<8x2xf32>
    %309 = vector.shape_cast %305 : vector<8x2xf32> to vector<1x8x2xf32>
    tpu.vector_store %arg9[%306, %c0_94, %c0_95], %309 {strides = array<i32>} : memref<8x8x2xf32, #tpu.memory_space<vmem>>, vector<1x8x2xf32>,
    %c4_i32 = arith.constant 4 : i32
    %310 = arith.index_cast %c4_i32 : i32 to index
    %311 = memref.load %arg1[%310] : memref<8xf32, #tpu.memory_space<smem>>
    %c1_i32_96 = arith.constant 1 : i32
    %312 = arith.subi %c4_i32, %c1_i32_96 : i32
    %313 = arith.index_cast %312 : i32 to index
    %314 = memref.load %arg1[%313] : memref<8xf32, #tpu.memory_space<smem>>
    %315 = arith.subf %311, %314 : f32
    %cst_97 = arith.constant 0.333333343 : f32
    %316 = arith.mulf %315, %cst_97 : f32
    %cst_98 = arith.constant 1.250000e-01 : f32
    %317 = arith.mulf %315, %cst_98 : f32
    %cst_99 = arith.constant dense<0.000000e+00> : vector<8x32xf32>
    %318 = tpu.matmul %305, %0, %cst_99 {dimension_numbers = #tpu.dot_dimension_numbers<[1], [0], [0], [1], [0, 0, 1, 1], [], []>} : vector<8x2xf32>, vector<2x32xf32>, vector<8x32xf32> -> vector<8x32xf32>
    %319 = arith.addf %318, %5 : vector<8x32xf32>
    %320 = math.tanh %319 : vector<8x32xf32>
    %cst_100 = arith.constant dense<0.000000e+00> : vector<8x32xf32>
    %321 = tpu.matmul %320, %1, %cst_100 {dimension_numbers = #tpu.dot_dimension_numbers<[1], [0], [0], [1], [0, 0, 1, 1], [], []>} : vector<8x32xf32>, vector<32x32xf32>, vector<8x32xf32> -> vector<8x32xf32>
    %322 = arith.addf %321, %8 : vector<8x32xf32>
    %323 = math.tanh %322 : vector<8x32xf32>
    %cst_101 = arith.constant dense<0.000000e+00> : vector<8x2xf32>
    %324 = tpu.matmul %323, %2, %cst_101 {dimension_numbers = #tpu.dot_dimension_numbers<[1], [0], [0], [1], [0, 0, 1, 1], [], []>} : vector<8x32xf32>, vector<32x2xf32>, vector<8x2xf32> -> vector<8x2xf32>
    %325 = arith.addf %324, %11 : vector<8x2xf32>
    %326 = vector.extract_strided_slice %305 {offsets = [0, 1], sizes = [8, 1], strides = [1, 1]} : vector<8x2xf32> to vector<8x1xf32>
    %cst_102 = arith.constant -5.000000e-01 : f32
    %327 = vector.broadcast %cst_102 : f32 to vector<8x1xf32>
    %328 = arith.mulf %327, %326 : vector<8x1xf32>
    %329 = vector.extract_strided_slice %305 {offsets = [0, 0], sizes = [8, 1], strides = [1, 1]} : vector<8x2xf32> to vector<8x1xf32>
    %cst_103 = arith.constant 5.000000e-01 : f32
    %330 = vector.broadcast %cst_103 : f32 to vector<8x1xf32>
    %331 = arith.mulf %330, %329 : vector<8x1xf32>
    %332 = tpu.concatenate %328, %331 in 1 : vector<8x1xf32>, vector<8x1xf32> -> vector<8x2xf32>
    %333 = arith.addf %325, %332 : vector<8x2xf32>
    %334 = vector.broadcast %316 : f32 to vector<8x2xf32>
    %335 = arith.mulf %334, %333 : vector<8x2xf32>
    %336 = arith.addf %305, %335 : vector<8x2xf32>
    %cst_104 = arith.constant dense<0.000000e+00> : vector<8x32xf32>
    %337 = tpu.matmul %336, %0, %cst_104 {dimension_numbers = #tpu.dot_dimension_numbers<[1], [0], [0], [1], [0, 0, 1, 1], [], []>} : vector<8x2xf32>, vector<2x32xf32>, vector<8x32xf32> -> vector<8x32xf32>
    %338 = arith.addf %337, %5 : vector<8x32xf32>
    %339 = math.tanh %338 : vector<8x32xf32>
    %cst_105 = arith.constant dense<0.000000e+00> : vector<8x32xf32>
    %340 = tpu.matmul %339, %1, %cst_105 {dimension_numbers = #tpu.dot_dimension_numbers<[1], [0], [0], [1], [0, 0, 1, 1], [], []>} : vector<8x32xf32>, vector<32x32xf32>, vector<8x32xf32> -> vector<8x32xf32>
    %341 = arith.addf %340, %8 : vector<8x32xf32>
    %342 = math.tanh %341 : vector<8x32xf32>
    %cst_106 = arith.constant dense<0.000000e+00> : vector<8x2xf32>
    %343 = tpu.matmul %342, %2, %cst_106 {dimension_numbers = #tpu.dot_dimension_numbers<[1], [0], [0], [1], [0, 0, 1, 1], [], []>} : vector<8x32xf32>, vector<32x2xf32>, vector<8x2xf32> -> vector<8x2xf32>
    %344 = arith.addf %343, %11 : vector<8x2xf32>
    %345 = vector.extract_strided_slice %336 {offsets = [0, 1], sizes = [8, 1], strides = [1, 1]} : vector<8x2xf32> to vector<8x1xf32>
    %cst_107 = arith.constant -5.000000e-01 : f32
    %346 = vector.broadcast %cst_107 : f32 to vector<8x1xf32>
    %347 = arith.mulf %346, %345 : vector<8x1xf32>
    %348 = vector.extract_strided_slice %336 {offsets = [0, 0], sizes = [8, 1], strides = [1, 1]} : vector<8x2xf32> to vector<8x1xf32>
    %cst_108 = arith.constant 5.000000e-01 : f32
    %349 = vector.broadcast %cst_108 : f32 to vector<8x1xf32>
    %350 = arith.mulf %349, %348 : vector<8x1xf32>
    %351 = tpu.concatenate %347, %350 in 1 : vector<8x1xf32>, vector<8x1xf32> -> vector<8x2xf32>
    %352 = arith.addf %344, %351 : vector<8x2xf32>
    %353 = vector.broadcast %315 : f32 to vector<8x2xf32>
    %354 = arith.mulf %353, %352 : vector<8x2xf32>
    %355 = arith.subf %354, %335 : vector<8x2xf32>
    %356 = arith.addf %305, %355 : vector<8x2xf32>
    %cst_109 = arith.constant dense<0.000000e+00> : vector<8x32xf32>
    %357 = tpu.matmul %356, %0, %cst_109 {dimension_numbers = #tpu.dot_dimension_numbers<[1], [0], [0], [1], [0, 0, 1, 1], [], []>} : vector<8x2xf32>, vector<2x32xf32>, vector<8x32xf32> -> vector<8x32xf32>
    %358 = arith.addf %357, %5 : vector<8x32xf32>
    %359 = math.tanh %358 : vector<8x32xf32>
    %cst_110 = arith.constant dense<0.000000e+00> : vector<8x32xf32>
    %360 = tpu.matmul %359, %1, %cst_110 {dimension_numbers = #tpu.dot_dimension_numbers<[1], [0], [0], [1], [0, 0, 1, 1], [], []>} : vector<8x32xf32>, vector<32x32xf32>, vector<8x32xf32> -> vector<8x32xf32>
    %361 = arith.addf %360, %8 : vector<8x32xf32>
    %362 = math.tanh %361 : vector<8x32xf32>
    %cst_111 = arith.constant dense<0.000000e+00> : vector<8x2xf32>
    %363 = tpu.matmul %362, %2, %cst_111 {dimension_numbers = #tpu.dot_dimension_numbers<[1], [0], [0], [1], [0, 0, 1, 1], [], []>} : vector<8x32xf32>, vector<32x2xf32>, vector<8x2xf32> -> vector<8x2xf32>
    %364 = arith.addf %363, %11 : vector<8x2xf32>
    %365 = vector.extract_strided_slice %356 {offsets = [0, 1], sizes = [8, 1], strides = [1, 1]} : vector<8x2xf32> to vector<8x1xf32>
    %cst_112 = arith.constant -5.000000e-01 : f32
    %366 = vector.broadcast %cst_112 : f32 to vector<8x1xf32>
    %367 = arith.mulf %366, %365 : vector<8x1xf32>
    %368 = vector.extract_strided_slice %356 {offsets = [0, 0], sizes = [8, 1], strides = [1, 1]} : vector<8x2xf32> to vector<8x1xf32>
    %cst_113 = arith.constant 5.000000e-01 : f32
    %369 = vector.broadcast %cst_113 : f32 to vector<8x1xf32>
    %370 = arith.mulf %369, %368 : vector<8x1xf32>
    %371 = tpu.concatenate %367, %370 in 1 : vector<8x1xf32>, vector<8x1xf32> -> vector<8x2xf32>
    %372 = arith.addf %364, %371 : vector<8x2xf32>
    %cst_114 = arith.constant 3.000000e+00 : f32
    %373 = vector.broadcast %cst_114 : f32 to vector<8x2xf32>
    %374 = arith.mulf %373, %335 : vector<8x2xf32>
    %375 = arith.subf %374, %354 : vector<8x2xf32>
    %376 = vector.broadcast %315 : f32 to vector<8x2xf32>
    %377 = arith.mulf %376, %372 : vector<8x2xf32>
    %378 = arith.addf %375, %377 : vector<8x2xf32>
    %379 = arith.addf %305, %378 : vector<8x2xf32>
    %cst_115 = arith.constant dense<0.000000e+00> : vector<8x32xf32>
    %380 = tpu.matmul %379, %0, %cst_115 {dimension_numbers = #tpu.dot_dimension_numbers<[1], [0], [0], [1], [0, 0, 1, 1], [], []>} : vector<8x2xf32>, vector<2x32xf32>, vector<8x32xf32> -> vector<8x32xf32>
    %381 = arith.addf %380, %5 : vector<8x32xf32>
    %382 = math.tanh %381 : vector<8x32xf32>
    %cst_116 = arith.constant dense<0.000000e+00> : vector<8x32xf32>
    %383 = tpu.matmul %382, %1, %cst_116 {dimension_numbers = #tpu.dot_dimension_numbers<[1], [0], [0], [1], [0, 0, 1, 1], [], []>} : vector<8x32xf32>, vector<32x32xf32>, vector<8x32xf32> -> vector<8x32xf32>
    %384 = arith.addf %383, %8 : vector<8x32xf32>
    %385 = math.tanh %384 : vector<8x32xf32>
    %cst_117 = arith.constant dense<0.000000e+00> : vector<8x2xf32>
    %386 = tpu.matmul %385, %2, %cst_117 {dimension_numbers = #tpu.dot_dimension_numbers<[1], [0], [0], [1], [0, 0, 1, 1], [], []>} : vector<8x32xf32>, vector<32x2xf32>, vector<8x2xf32> -> vector<8x2xf32>
    %387 = arith.addf %386, %11 : vector<8x2xf32>
    %388 = vector.extract_strided_slice %379 {offsets = [0, 1], sizes = [8, 1], strides = [1, 1]} : vector<8x2xf32> to vector<8x1xf32>
    %cst_118 = arith.constant -5.000000e-01 : f32
    %389 = vector.broadcast %cst_118 : f32 to vector<8x1xf32>
    %390 = arith.mulf %389, %388 : vector<8x1xf32>
    %391 = vector.extract_strided_slice %379 {offsets = [0, 0], sizes = [8, 1], strides = [1, 1]} : vector<8x2xf32> to vector<8x1xf32>
    %cst_119 = arith.constant 5.000000e-01 : f32
    %392 = vector.broadcast %cst_119 : f32 to vector<8x1xf32>
    %393 = arith.mulf %392, %391 : vector<8x1xf32>
    %394 = tpu.concatenate %390, %393 in 1 : vector<8x1xf32>, vector<8x1xf32> -> vector<8x2xf32>
    %395 = arith.addf %387, %394 : vector<8x2xf32>
    %396 = arith.addf %352, %372 : vector<8x2xf32>
    %cst_120 = arith.constant 3.000000e+00 : f32
    %397 = vector.broadcast %cst_120 : f32 to vector<8x2xf32>
    %398 = arith.mulf %397, %396 : vector<8x2xf32>
    %399 = arith.addf %333, %398 : vector<8x2xf32>
    %400 = arith.addf %399, %395 : vector<8x2xf32>
    %401 = vector.broadcast %317 : f32 to vector<8x2xf32>
    %402 = arith.mulf %401, %400 : vector<8x2xf32>
    %403 = arith.addf %305, %402 : vector<8x2xf32>
    %404 = arith.index_cast %c4_i32 : i32 to index
    %c0_121 = arith.constant 0 : index
    %c0_122 = arith.constant 0 : index
    %405 = vector.load %arg9[%404, %c0_121, %c0_122] : memref<8x8x2xf32, #tpu.memory_space<vmem>>, vector<1x8x2xf32>
    %406 = vector.shape_cast %405 : vector<1x8x2xf32> to vector<8x2xf32>
    %407 = vector.shape_cast %403 : vector<8x2xf32> to vector<1x8x2xf32>
    tpu.vector_store %arg9[%404, %c0_121, %c0_122], %407 {strides = array<i32>} : memref<8x8x2xf32, #tpu.memory_space<vmem>>, vector<1x8x2xf32>,
    %c5_i32 = arith.constant 5 : i32
    %408 = arith.index_cast %c5_i32 : i32 to index
    %409 = memref.load %arg1[%408] : memref<8xf32, #tpu.memory_space<smem>>
    %c1_i32_123 = arith.constant 1 : i32
    %410 = arith.subi %c5_i32, %c1_i32_123 : i32
    %411 = arith.index_cast %410 : i32 to index
    %412 = memref.load %arg1[%411] : memref<8xf32, #tpu.memory_space<smem>>
    %413 = arith.subf %409, %412 : f32
    %cst_124 = arith.constant 0.333333343 : f32
    %414 = arith.mulf %413, %cst_124 : f32
    %cst_125 = arith.constant 1.250000e-01 : f32
    %415 = arith.mulf %413, %cst_125 : f32
    %cst_126 = arith.constant dense<0.000000e+00> : vector<8x32xf32>
    %416 = tpu.matmul %403, %0, %cst_126 {dimension_numbers = #tpu.dot_dimension_numbers<[1], [0], [0], [1], [0, 0, 1, 1], [], []>} : vector<8x2xf32>, vector<2x32xf32>, vector<8x32xf32> -> vector<8x32xf32>
    %417 = arith.addf %416, %5 : vector<8x32xf32>
    %418 = math.tanh %417 : vector<8x32xf32>
    %cst_127 = arith.constant dense<0.000000e+00> : vector<8x32xf32>
    %419 = tpu.matmul %418, %1, %cst_127 {dimension_numbers = #tpu.dot_dimension_numbers<[1], [0], [0], [1], [0, 0, 1, 1], [], []>} : vector<8x32xf32>, vector<32x32xf32>, vector<8x32xf32> -> vector<8x32xf32>
    %420 = arith.addf %419, %8 : vector<8x32xf32>
    %421 = math.tanh %420 : vector<8x32xf32>
    %cst_128 = arith.constant dense<0.000000e+00> : vector<8x2xf32>
    %422 = tpu.matmul %421, %2, %cst_128 {dimension_numbers = #tpu.dot_dimension_numbers<[1], [0], [0], [1], [0, 0, 1, 1], [], []>} : vector<8x32xf32>, vector<32x2xf32>, vector<8x2xf32> -> vector<8x2xf32>
    %423 = arith.addf %422, %11 : vector<8x2xf32>
    %424 = vector.extract_strided_slice %403 {offsets = [0, 1], sizes = [8, 1], strides = [1, 1]} : vector<8x2xf32> to vector<8x1xf32>
    %cst_129 = arith.constant -5.000000e-01 : f32
    %425 = vector.broadcast %cst_129 : f32 to vector<8x1xf32>
    %426 = arith.mulf %425, %424 : vector<8x1xf32>
    %427 = vector.extract_strided_slice %403 {offsets = [0, 0], sizes = [8, 1], strides = [1, 1]} : vector<8x2xf32> to vector<8x1xf32>
    %cst_130 = arith.constant 5.000000e-01 : f32
    %428 = vector.broadcast %cst_130 : f32 to vector<8x1xf32>
    %429 = arith.mulf %428, %427 : vector<8x1xf32>
    %430 = tpu.concatenate %426, %429 in 1 : vector<8x1xf32>, vector<8x1xf32> -> vector<8x2xf32>
    %431 = arith.addf %423, %430 : vector<8x2xf32>
    %432 = vector.broadcast %414 : f32 to vector<8x2xf32>
    %433 = arith.mulf %432, %431 : vector<8x2xf32>
    %434 = arith.addf %403, %433 : vector<8x2xf32>
    %cst_131 = arith.constant dense<0.000000e+00> : vector<8x32xf32>
    %435 = tpu.matmul %434, %0, %cst_131 {dimension_numbers = #tpu.dot_dimension_numbers<[1], [0], [0], [1], [0, 0, 1, 1], [], []>} : vector<8x2xf32>, vector<2x32xf32>, vector<8x32xf32> -> vector<8x32xf32>
    %436 = arith.addf %435, %5 : vector<8x32xf32>
    %437 = math.tanh %436 : vector<8x32xf32>
    %cst_132 = arith.constant dense<0.000000e+00> : vector<8x32xf32>
    %438 = tpu.matmul %437, %1, %cst_132 {dimension_numbers = #tpu.dot_dimension_numbers<[1], [0], [0], [1], [0, 0, 1, 1], [], []>} : vector<8x32xf32>, vector<32x32xf32>, vector<8x32xf32> -> vector<8x32xf32>
    %439 = arith.addf %438, %8 : vector<8x32xf32>
    %440 = math.tanh %439 : vector<8x32xf32>
    %cst_133 = arith.constant dense<0.000000e+00> : vector<8x2xf32>
    %441 = tpu.matmul %440, %2, %cst_133 {dimension_numbers = #tpu.dot_dimension_numbers<[1], [0], [0], [1], [0, 0, 1, 1], [], []>} : vector<8x32xf32>, vector<32x2xf32>, vector<8x2xf32> -> vector<8x2xf32>
    %442 = arith.addf %441, %11 : vector<8x2xf32>
    %443 = vector.extract_strided_slice %434 {offsets = [0, 1], sizes = [8, 1], strides = [1, 1]} : vector<8x2xf32> to vector<8x1xf32>
    %cst_134 = arith.constant -5.000000e-01 : f32
    %444 = vector.broadcast %cst_134 : f32 to vector<8x1xf32>
    %445 = arith.mulf %444, %443 : vector<8x1xf32>
    %446 = vector.extract_strided_slice %434 {offsets = [0, 0], sizes = [8, 1], strides = [1, 1]} : vector<8x2xf32> to vector<8x1xf32>
    %cst_135 = arith.constant 5.000000e-01 : f32
    %447 = vector.broadcast %cst_135 : f32 to vector<8x1xf32>
    %448 = arith.mulf %447, %446 : vector<8x1xf32>
    %449 = tpu.concatenate %445, %448 in 1 : vector<8x1xf32>, vector<8x1xf32> -> vector<8x2xf32>
    %450 = arith.addf %442, %449 : vector<8x2xf32>
    %451 = vector.broadcast %413 : f32 to vector<8x2xf32>
    %452 = arith.mulf %451, %450 : vector<8x2xf32>
    %453 = arith.subf %452, %433 : vector<8x2xf32>
    %454 = arith.addf %403, %453 : vector<8x2xf32>
    %cst_136 = arith.constant dense<0.000000e+00> : vector<8x32xf32>
    %455 = tpu.matmul %454, %0, %cst_136 {dimension_numbers = #tpu.dot_dimension_numbers<[1], [0], [0], [1], [0, 0, 1, 1], [], []>} : vector<8x2xf32>, vector<2x32xf32>, vector<8x32xf32> -> vector<8x32xf32>
    %456 = arith.addf %455, %5 : vector<8x32xf32>
    %457 = math.tanh %456 : vector<8x32xf32>
    %cst_137 = arith.constant dense<0.000000e+00> : vector<8x32xf32>
    %458 = tpu.matmul %457, %1, %cst_137 {dimension_numbers = #tpu.dot_dimension_numbers<[1], [0], [0], [1], [0, 0, 1, 1], [], []>} : vector<8x32xf32>, vector<32x32xf32>, vector<8x32xf32> -> vector<8x32xf32>
    %459 = arith.addf %458, %8 : vector<8x32xf32>
    %460 = math.tanh %459 : vector<8x32xf32>
    %cst_138 = arith.constant dense<0.000000e+00> : vector<8x2xf32>
    %461 = tpu.matmul %460, %2, %cst_138 {dimension_numbers = #tpu.dot_dimension_numbers<[1], [0], [0], [1], [0, 0, 1, 1], [], []>} : vector<8x32xf32>, vector<32x2xf32>, vector<8x2xf32> -> vector<8x2xf32>
    %462 = arith.addf %461, %11 : vector<8x2xf32>
    %463 = vector.extract_strided_slice %454 {offsets = [0, 1], sizes = [8, 1], strides = [1, 1]} : vector<8x2xf32> to vector<8x1xf32>
    %cst_139 = arith.constant -5.000000e-01 : f32
    %464 = vector.broadcast %cst_139 : f32 to vector<8x1xf32>
    %465 = arith.mulf %464, %463 : vector<8x1xf32>
    %466 = vector.extract_strided_slice %454 {offsets = [0, 0], sizes = [8, 1], strides = [1, 1]} : vector<8x2xf32> to vector<8x1xf32>
    %cst_140 = arith.constant 5.000000e-01 : f32
    %467 = vector.broadcast %cst_140 : f32 to vector<8x1xf32>
    %468 = arith.mulf %467, %466 : vector<8x1xf32>
    %469 = tpu.concatenate %465, %468 in 1 : vector<8x1xf32>, vector<8x1xf32> -> vector<8x2xf32>
    %470 = arith.addf %462, %469 : vector<8x2xf32>
    %cst_141 = arith.constant 3.000000e+00 : f32
    %471 = vector.broadcast %cst_141 : f32 to vector<8x2xf32>
    %472 = arith.mulf %471, %433 : vector<8x2xf32>
    %473 = arith.subf %472, %452 : vector<8x2xf32>
    %474 = vector.broadcast %413 : f32 to vector<8x2xf32>
    %475 = arith.mulf %474, %470 : vector<8x2xf32>
    %476 = arith.addf %473, %475 : vector<8x2xf32>
    %477 = arith.addf %403, %476 : vector<8x2xf32>
    %cst_142 = arith.constant dense<0.000000e+00> : vector<8x32xf32>
    %478 = tpu.matmul %477, %0, %cst_142 {dimension_numbers = #tpu.dot_dimension_numbers<[1], [0], [0], [1], [0, 0, 1, 1], [], []>} : vector<8x2xf32>, vector<2x32xf32>, vector<8x32xf32> -> vector<8x32xf32>
    %479 = arith.addf %478, %5 : vector<8x32xf32>
    %480 = math.tanh %479 : vector<8x32xf32>
    %cst_143 = arith.constant dense<0.000000e+00> : vector<8x32xf32>
    %481 = tpu.matmul %480, %1, %cst_143 {dimension_numbers = #tpu.dot_dimension_numbers<[1], [0], [0], [1], [0, 0, 1, 1], [], []>} : vector<8x32xf32>, vector<32x32xf32>, vector<8x32xf32> -> vector<8x32xf32>
    %482 = arith.addf %481, %8 : vector<8x32xf32>
    %483 = math.tanh %482 : vector<8x32xf32>
    %cst_144 = arith.constant dense<0.000000e+00> : vector<8x2xf32>
    %484 = tpu.matmul %483, %2, %cst_144 {dimension_numbers = #tpu.dot_dimension_numbers<[1], [0], [0], [1], [0, 0, 1, 1], [], []>} : vector<8x32xf32>, vector<32x2xf32>, vector<8x2xf32> -> vector<8x2xf32>
    %485 = arith.addf %484, %11 : vector<8x2xf32>
    %486 = vector.extract_strided_slice %477 {offsets = [0, 1], sizes = [8, 1], strides = [1, 1]} : vector<8x2xf32> to vector<8x1xf32>
    %cst_145 = arith.constant -5.000000e-01 : f32
    %487 = vector.broadcast %cst_145 : f32 to vector<8x1xf32>
    %488 = arith.mulf %487, %486 : vector<8x1xf32>
    %489 = vector.extract_strided_slice %477 {offsets = [0, 0], sizes = [8, 1], strides = [1, 1]} : vector<8x2xf32> to vector<8x1xf32>
    %cst_146 = arith.constant 5.000000e-01 : f32
    %490 = vector.broadcast %cst_146 : f32 to vector<8x1xf32>
    %491 = arith.mulf %490, %489 : vector<8x1xf32>
    %492 = tpu.concatenate %488, %491 in 1 : vector<8x1xf32>, vector<8x1xf32> -> vector<8x2xf32>
    %493 = arith.addf %485, %492 : vector<8x2xf32>
    %494 = arith.addf %450, %470 : vector<8x2xf32>
    %cst_147 = arith.constant 3.000000e+00 : f32
    %495 = vector.broadcast %cst_147 : f32 to vector<8x2xf32>
    %496 = arith.mulf %495, %494 : vector<8x2xf32>
    %497 = arith.addf %431, %496 : vector<8x2xf32>
    %498 = arith.addf %497, %493 : vector<8x2xf32>
    %499 = vector.broadcast %415 : f32 to vector<8x2xf32>
    %500 = arith.mulf %499, %498 : vector<8x2xf32>
    %501 = arith.addf %403, %500 : vector<8x2xf32>
    %502 = arith.index_cast %c5_i32 : i32 to index
    %c0_148 = arith.constant 0 : index
    %c0_149 = arith.constant 0 : index
    %503 = vector.load %arg9[%502, %c0_148, %c0_149] : memref<8x8x2xf32, #tpu.memory_space<vmem>>, vector<1x8x2xf32>
    %504 = vector.shape_cast %503 : vector<1x8x2xf32> to vector<8x2xf32>
    %505 = vector.shape_cast %501 : vector<8x2xf32> to vector<1x8x2xf32>
    tpu.vector_store %arg9[%502, %c0_148, %c0_149], %505 {strides = array<i32>} : memref<8x8x2xf32, #tpu.memory_space<vmem>>, vector<1x8x2xf32>,
    %c6_i32 = arith.constant 6 : i32
    %506 = arith.index_cast %c6_i32 : i32 to index
    %507 = memref.load %arg1[%506] : memref<8xf32, #tpu.memory_space<smem>>
    %c1_i32_150 = arith.constant 1 : i32
    %508 = arith.subi %c6_i32, %c1_i32_150 : i32
    %509 = arith.index_cast %508 : i32 to index
    %510 = memref.load %arg1[%509] : memref<8xf32, #tpu.memory_space<smem>>
    %511 = arith.subf %507, %510 : f32
    %cst_151 = arith.constant 0.333333343 : f32
    %512 = arith.mulf %511, %cst_151 : f32
    %cst_152 = arith.constant 1.250000e-01 : f32
    %513 = arith.mulf %511, %cst_152 : f32
    %cst_153 = arith.constant dense<0.000000e+00> : vector<8x32xf32>
    %514 = tpu.matmul %501, %0, %cst_153 {dimension_numbers = #tpu.dot_dimension_numbers<[1], [0], [0], [1], [0, 0, 1, 1], [], []>} : vector<8x2xf32>, vector<2x32xf32>, vector<8x32xf32> -> vector<8x32xf32>
    %515 = arith.addf %514, %5 : vector<8x32xf32>
    %516 = math.tanh %515 : vector<8x32xf32>
    %cst_154 = arith.constant dense<0.000000e+00> : vector<8x32xf32>
    %517 = tpu.matmul %516, %1, %cst_154 {dimension_numbers = #tpu.dot_dimension_numbers<[1], [0], [0], [1], [0, 0, 1, 1], [], []>} : vector<8x32xf32>, vector<32x32xf32>, vector<8x32xf32> -> vector<8x32xf32>
    %518 = arith.addf %517, %8 : vector<8x32xf32>
    %519 = math.tanh %518 : vector<8x32xf32>
    %cst_155 = arith.constant dense<0.000000e+00> : vector<8x2xf32>
    %520 = tpu.matmul %519, %2, %cst_155 {dimension_numbers = #tpu.dot_dimension_numbers<[1], [0], [0], [1], [0, 0, 1, 1], [], []>} : vector<8x32xf32>, vector<32x2xf32>, vector<8x2xf32> -> vector<8x2xf32>
    %521 = arith.addf %520, %11 : vector<8x2xf32>
    %522 = vector.extract_strided_slice %501 {offsets = [0, 1], sizes = [8, 1], strides = [1, 1]} : vector<8x2xf32> to vector<8x1xf32>
    %cst_156 = arith.constant -5.000000e-01 : f32
    %523 = vector.broadcast %cst_156 : f32 to vector<8x1xf32>
    %524 = arith.mulf %523, %522 : vector<8x1xf32>
    %525 = vector.extract_strided_slice %501 {offsets = [0, 0], sizes = [8, 1], strides = [1, 1]} : vector<8x2xf32> to vector<8x1xf32>
    %cst_157 = arith.constant 5.000000e-01 : f32
    %526 = vector.broadcast %cst_157 : f32 to vector<8x1xf32>
    %527 = arith.mulf %526, %525 : vector<8x1xf32>
    %528 = tpu.concatenate %524, %527 in 1 : vector<8x1xf32>, vector<8x1xf32> -> vector<8x2xf32>
    %529 = arith.addf %521, %528 : vector<8x2xf32>
    %530 = vector.broadcast %512 : f32 to vector<8x2xf32>
    %531 = arith.mulf %530, %529 : vector<8x2xf32>
    %532 = arith.addf %501, %531 : vector<8x2xf32>
    %cst_158 = arith.constant dense<0.000000e+00> : vector<8x32xf32>
    %533 = tpu.matmul %532, %0, %cst_158 {dimension_numbers = #tpu.dot_dimension_numbers<[1], [0], [0], [1], [0, 0, 1, 1], [], []>} : vector<8x2xf32>, vector<2x32xf32>, vector<8x32xf32> -> vector<8x32xf32>
    %534 = arith.addf %533, %5 : vector<8x32xf32>
    %535 = math.tanh %534 : vector<8x32xf32>
    %cst_159 = arith.constant dense<0.000000e+00> : vector<8x32xf32>
    %536 = tpu.matmul %535, %1, %cst_159 {dimension_numbers = #tpu.dot_dimension_numbers<[1], [0], [0], [1], [0, 0, 1, 1], [], []>} : vector<8x32xf32>, vector<32x32xf32>, vector<8x32xf32> -> vector<8x32xf32>
    %537 = arith.addf %536, %8 : vector<8x32xf32>
    %538 = math.tanh %537 : vector<8x32xf32>
    %cst_160 = arith.constant dense<0.000000e+00> : vector<8x2xf32>
    %539 = tpu.matmul %538, %2, %cst_160 {dimension_numbers = #tpu.dot_dimension_numbers<[1], [0], [0], [1], [0, 0, 1, 1], [], []>} : vector<8x32xf32>, vector<32x2xf32>, vector<8x2xf32> -> vector<8x2xf32>
    %540 = arith.addf %539, %11 : vector<8x2xf32>
    %541 = vector.extract_strided_slice %532 {offsets = [0, 1], sizes = [8, 1], strides = [1, 1]} : vector<8x2xf32> to vector<8x1xf32>
    %cst_161 = arith.constant -5.000000e-01 : f32
    %542 = vector.broadcast %cst_161 : f32 to vector<8x1xf32>
    %543 = arith.mulf %542, %541 : vector<8x1xf32>
    %544 = vector.extract_strided_slice %532 {offsets = [0, 0], sizes = [8, 1], strides = [1, 1]} : vector<8x2xf32> to vector<8x1xf32>
    %cst_162 = arith.constant 5.000000e-01 : f32
    %545 = vector.broadcast %cst_162 : f32 to vector<8x1xf32>
    %546 = arith.mulf %545, %544 : vector<8x1xf32>
    %547 = tpu.concatenate %543, %546 in 1 : vector<8x1xf32>, vector<8x1xf32> -> vector<8x2xf32>
    %548 = arith.addf %540, %547 : vector<8x2xf32>
    %549 = vector.broadcast %511 : f32 to vector<8x2xf32>
    %550 = arith.mulf %549, %548 : vector<8x2xf32>
    %551 = arith.subf %550, %531 : vector<8x2xf32>
    %552 = arith.addf %501, %551 : vector<8x2xf32>
    %cst_163 = arith.constant dense<0.000000e+00> : vector<8x32xf32>
    %553 = tpu.matmul %552, %0, %cst_163 {dimension_numbers = #tpu.dot_dimension_numbers<[1], [0], [0], [1], [0, 0, 1, 1], [], []>} : vector<8x2xf32>, vector<2x32xf32>, vector<8x32xf32> -> vector<8x32xf32>
    %554 = arith.addf %553, %5 : vector<8x32xf32>
    %555 = math.tanh %554 : vector<8x32xf32>
    %cst_164 = arith.constant dense<0.000000e+00> : vector<8x32xf32>
    %556 = tpu.matmul %555, %1, %cst_164 {dimension_numbers = #tpu.dot_dimension_numbers<[1], [0], [0], [1], [0, 0, 1, 1], [], []>} : vector<8x32xf32>, vector<32x32xf32>, vector<8x32xf32> -> vector<8x32xf32>
    %557 = arith.addf %556, %8 : vector<8x32xf32>
    %558 = math.tanh %557 : vector<8x32xf32>
    %cst_165 = arith.constant dense<0.000000e+00> : vector<8x2xf32>
    %559 = tpu.matmul %558, %2, %cst_165 {dimension_numbers = #tpu.dot_dimension_numbers<[1], [0], [0], [1], [0, 0, 1, 1], [], []>} : vector<8x32xf32>, vector<32x2xf32>, vector<8x2xf32> -> vector<8x2xf32>
    %560 = arith.addf %559, %11 : vector<8x2xf32>
    %561 = vector.extract_strided_slice %552 {offsets = [0, 1], sizes = [8, 1], strides = [1, 1]} : vector<8x2xf32> to vector<8x1xf32>
    %cst_166 = arith.constant -5.000000e-01 : f32
    %562 = vector.broadcast %cst_166 : f32 to vector<8x1xf32>
    %563 = arith.mulf %562, %561 : vector<8x1xf32>
    %564 = vector.extract_strided_slice %552 {offsets = [0, 0], sizes = [8, 1], strides = [1, 1]} : vector<8x2xf32> to vector<8x1xf32>
    %cst_167 = arith.constant 5.000000e-01 : f32
    %565 = vector.broadcast %cst_167 : f32 to vector<8x1xf32>
    %566 = arith.mulf %565, %564 : vector<8x1xf32>
    %567 = tpu.concatenate %563, %566 in 1 : vector<8x1xf32>, vector<8x1xf32> -> vector<8x2xf32>
    %568 = arith.addf %560, %567 : vector<8x2xf32>
    %cst_168 = arith.constant 3.000000e+00 : f32
    %569 = vector.broadcast %cst_168 : f32 to vector<8x2xf32>
    %570 = arith.mulf %569, %531 : vector<8x2xf32>
    %571 = arith.subf %570, %550 : vector<8x2xf32>
    %572 = vector.broadcast %511 : f32 to vector<8x2xf32>
    %573 = arith.mulf %572, %568 : vector<8x2xf32>
    %574 = arith.addf %571, %573 : vector<8x2xf32>
    %575 = arith.addf %501, %574 : vector<8x2xf32>
    %cst_169 = arith.constant dense<0.000000e+00> : vector<8x32xf32>
    %576 = tpu.matmul %575, %0, %cst_169 {dimension_numbers = #tpu.dot_dimension_numbers<[1], [0], [0], [1], [0, 0, 1, 1], [], []>} : vector<8x2xf32>, vector<2x32xf32>, vector<8x32xf32> -> vector<8x32xf32>
    %577 = arith.addf %576, %5 : vector<8x32xf32>
    %578 = math.tanh %577 : vector<8x32xf32>
    %cst_170 = arith.constant dense<0.000000e+00> : vector<8x32xf32>
    %579 = tpu.matmul %578, %1, %cst_170 {dimension_numbers = #tpu.dot_dimension_numbers<[1], [0], [0], [1], [0, 0, 1, 1], [], []>} : vector<8x32xf32>, vector<32x32xf32>, vector<8x32xf32> -> vector<8x32xf32>
    %580 = arith.addf %579, %8 : vector<8x32xf32>
    %581 = math.tanh %580 : vector<8x32xf32>
    %cst_171 = arith.constant dense<0.000000e+00> : vector<8x2xf32>
    %582 = tpu.matmul %581, %2, %cst_171 {dimension_numbers = #tpu.dot_dimension_numbers<[1], [0], [0], [1], [0, 0, 1, 1], [], []>} : vector<8x32xf32>, vector<32x2xf32>, vector<8x2xf32> -> vector<8x2xf32>
    %583 = arith.addf %582, %11 : vector<8x2xf32>
    %584 = vector.extract_strided_slice %575 {offsets = [0, 1], sizes = [8, 1], strides = [1, 1]} : vector<8x2xf32> to vector<8x1xf32>
    %cst_172 = arith.constant -5.000000e-01 : f32
    %585 = vector.broadcast %cst_172 : f32 to vector<8x1xf32>
    %586 = arith.mulf %585, %584 : vector<8x1xf32>
    %587 = vector.extract_strided_slice %575 {offsets = [0, 0], sizes = [8, 1], strides = [1, 1]} : vector<8x2xf32> to vector<8x1xf32>
    %cst_173 = arith.constant 5.000000e-01 : f32
    %588 = vector.broadcast %cst_173 : f32 to vector<8x1xf32>
    %589 = arith.mulf %588, %587 : vector<8x1xf32>
    %590 = tpu.concatenate %586, %589 in 1 : vector<8x1xf32>, vector<8x1xf32> -> vector<8x2xf32>
    %591 = arith.addf %583, %590 : vector<8x2xf32>
    %592 = arith.addf %548, %568 : vector<8x2xf32>
    %cst_174 = arith.constant 3.000000e+00 : f32
    %593 = vector.broadcast %cst_174 : f32 to vector<8x2xf32>
    %594 = arith.mulf %593, %592 : vector<8x2xf32>
    %595 = arith.addf %529, %594 : vector<8x2xf32>
    %596 = arith.addf %595, %591 : vector<8x2xf32>
    %597 = vector.broadcast %513 : f32 to vector<8x2xf32>
    %598 = arith.mulf %597, %596 : vector<8x2xf32>
    %599 = arith.addf %501, %598 : vector<8x2xf32>
    %600 = arith.index_cast %c6_i32 : i32 to index
    %c0_175 = arith.constant 0 : index
    %c0_176 = arith.constant 0 : index
    %601 = vector.load %arg9[%600, %c0_175, %c0_176] : memref<8x8x2xf32, #tpu.memory_space<vmem>>, vector<1x8x2xf32>
    %602 = vector.shape_cast %601 : vector<1x8x2xf32> to vector<8x2xf32>
    %603 = vector.shape_cast %599 : vector<8x2xf32> to vector<1x8x2xf32>
    tpu.vector_store %arg9[%600, %c0_175, %c0_176], %603 {strides = array<i32>} : memref<8x8x2xf32, #tpu.memory_space<vmem>>, vector<1x8x2xf32>,
    %c7_i32 = arith.constant 7 : i32
    %604 = arith.index_cast %c7_i32 : i32 to index
    %605 = memref.load %arg1[%604] : memref<8xf32, #tpu.memory_space<smem>>
    %c1_i32_177 = arith.constant 1 : i32
    %606 = arith.subi %c7_i32, %c1_i32_177 : i32
    %607 = arith.index_cast %606 : i32 to index
    %608 = memref.load %arg1[%607] : memref<8xf32, #tpu.memory_space<smem>>
    %609 = arith.subf %605, %608 : f32
    %cst_178 = arith.constant 0.333333343 : f32
    %610 = arith.mulf %609, %cst_178 : f32
    %cst_179 = arith.constant 1.250000e-01 : f32
    %611 = arith.mulf %609, %cst_179 : f32
    %cst_180 = arith.constant dense<0.000000e+00> : vector<8x32xf32>
    %612 = tpu.matmul %599, %0, %cst_180 {dimension_numbers = #tpu.dot_dimension_numbers<[1], [0], [0], [1], [0, 0, 1, 1], [], []>} : vector<8x2xf32>, vector<2x32xf32>, vector<8x32xf32> -> vector<8x32xf32>
    %613 = arith.addf %612, %5 : vector<8x32xf32>
    %614 = math.tanh %613 : vector<8x32xf32>
    %cst_181 = arith.constant dense<0.000000e+00> : vector<8x32xf32>
    %615 = tpu.matmul %614, %1, %cst_181 {dimension_numbers = #tpu.dot_dimension_numbers<[1], [0], [0], [1], [0, 0, 1, 1], [], []>} : vector<8x32xf32>, vector<32x32xf32>, vector<8x32xf32> -> vector<8x32xf32>
    %616 = arith.addf %615, %8 : vector<8x32xf32>
    %617 = math.tanh %616 : vector<8x32xf32>
    %cst_182 = arith.constant dense<0.000000e+00> : vector<8x2xf32>
    %618 = tpu.matmul %617, %2, %cst_182 {dimension_numbers = #tpu.dot_dimension_numbers<[1], [0], [0], [1], [0, 0, 1, 1], [], []>} : vector<8x32xf32>, vector<32x2xf32>, vector<8x2xf32> -> vector<8x2xf32>
    %619 = arith.addf %618, %11 : vector<8x2xf32>
    %620 = vector.extract_strided_slice %599 {offsets = [0, 1], sizes = [8, 1], strides = [1, 1]} : vector<8x2xf32> to vector<8x1xf32>
    %cst_183 = arith.constant -5.000000e-01 : f32
    %621 = vector.broadcast %cst_183 : f32 to vector<8x1xf32>
    %622 = arith.mulf %621, %620 : vector<8x1xf32>
    %623 = vector.extract_strided_slice %599 {offsets = [0, 0], sizes = [8, 1], strides = [1, 1]} : vector<8x2xf32> to vector<8x1xf32>
    %cst_184 = arith.constant 5.000000e-01 : f32
    %624 = vector.broadcast %cst_184 : f32 to vector<8x1xf32>
    %625 = arith.mulf %624, %623 : vector<8x1xf32>
    %626 = tpu.concatenate %622, %625 in 1 : vector<8x1xf32>, vector<8x1xf32> -> vector<8x2xf32>
    %627 = arith.addf %619, %626 : vector<8x2xf32>
    %628 = vector.broadcast %610 : f32 to vector<8x2xf32>
    %629 = arith.mulf %628, %627 : vector<8x2xf32>
    %630 = arith.addf %599, %629 : vector<8x2xf32>
    %cst_185 = arith.constant dense<0.000000e+00> : vector<8x32xf32>
    %631 = tpu.matmul %630, %0, %cst_185 {dimension_numbers = #tpu.dot_dimension_numbers<[1], [0], [0], [1], [0, 0, 1, 1], [], []>} : vector<8x2xf32>, vector<2x32xf32>, vector<8x32xf32> -> vector<8x32xf32>
    %632 = arith.addf %631, %5 : vector<8x32xf32>
    %633 = math.tanh %632 : vector<8x32xf32>
    %cst_186 = arith.constant dense<0.000000e+00> : vector<8x32xf32>
    %634 = tpu.matmul %633, %1, %cst_186 {dimension_numbers = #tpu.dot_dimension_numbers<[1], [0], [0], [1], [0, 0, 1, 1], [], []>} : vector<8x32xf32>, vector<32x32xf32>, vector<8x32xf32> -> vector<8x32xf32>
    %635 = arith.addf %634, %8 : vector<8x32xf32>
    %636 = math.tanh %635 : vector<8x32xf32>
    %cst_187 = arith.constant dense<0.000000e+00> : vector<8x2xf32>
    %637 = tpu.matmul %636, %2, %cst_187 {dimension_numbers = #tpu.dot_dimension_numbers<[1], [0], [0], [1], [0, 0, 1, 1], [], []>} : vector<8x32xf32>, vector<32x2xf32>, vector<8x2xf32> -> vector<8x2xf32>
    %638 = arith.addf %637, %11 : vector<8x2xf32>
    %639 = vector.extract_strided_slice %630 {offsets = [0, 1], sizes = [8, 1], strides = [1, 1]} : vector<8x2xf32> to vector<8x1xf32>
    %cst_188 = arith.constant -5.000000e-01 : f32
    %640 = vector.broadcast %cst_188 : f32 to vector<8x1xf32>
    %641 = arith.mulf %640, %639 : vector<8x1xf32>
    %642 = vector.extract_strided_slice %630 {offsets = [0, 0], sizes = [8, 1], strides = [1, 1]} : vector<8x2xf32> to vector<8x1xf32>
    %cst_189 = arith.constant 5.000000e-01 : f32
    %643 = vector.broadcast %cst_189 : f32 to vector<8x1xf32>
    %644 = arith.mulf %643, %642 : vector<8x1xf32>
    %645 = tpu.concatenate %641, %644 in 1 : vector<8x1xf32>, vector<8x1xf32> -> vector<8x2xf32>
    %646 = arith.addf %638, %645 : vector<8x2xf32>
    %647 = vector.broadcast %609 : f32 to vector<8x2xf32>
    %648 = arith.mulf %647, %646 : vector<8x2xf32>
    %649 = arith.subf %648, %629 : vector<8x2xf32>
    %650 = arith.addf %599, %649 : vector<8x2xf32>
    %cst_190 = arith.constant dense<0.000000e+00> : vector<8x32xf32>
    %651 = tpu.matmul %650, %0, %cst_190 {dimension_numbers = #tpu.dot_dimension_numbers<[1], [0], [0], [1], [0, 0, 1, 1], [], []>} : vector<8x2xf32>, vector<2x32xf32>, vector<8x32xf32> -> vector<8x32xf32>
    %652 = arith.addf %651, %5 : vector<8x32xf32>
    %653 = math.tanh %652 : vector<8x32xf32>
    %cst_191 = arith.constant dense<0.000000e+00> : vector<8x32xf32>
    %654 = tpu.matmul %653, %1, %cst_191 {dimension_numbers = #tpu.dot_dimension_numbers<[1], [0], [0], [1], [0, 0, 1, 1], [], []>} : vector<8x32xf32>, vector<32x32xf32>, vector<8x32xf32> -> vector<8x32xf32>
    %655 = arith.addf %654, %8 : vector<8x32xf32>
    %656 = math.tanh %655 : vector<8x32xf32>
    %cst_192 = arith.constant dense<0.000000e+00> : vector<8x2xf32>
    %657 = tpu.matmul %656, %2, %cst_192 {dimension_numbers = #tpu.dot_dimension_numbers<[1], [0], [0], [1], [0, 0, 1, 1], [], []>} : vector<8x32xf32>, vector<32x2xf32>, vector<8x2xf32> -> vector<8x2xf32>
    %658 = arith.addf %657, %11 : vector<8x2xf32>
    %659 = vector.extract_strided_slice %650 {offsets = [0, 1], sizes = [8, 1], strides = [1, 1]} : vector<8x2xf32> to vector<8x1xf32>
    %cst_193 = arith.constant -5.000000e-01 : f32
    %660 = vector.broadcast %cst_193 : f32 to vector<8x1xf32>
    %661 = arith.mulf %660, %659 : vector<8x1xf32>
    %662 = vector.extract_strided_slice %650 {offsets = [0, 0], sizes = [8, 1], strides = [1, 1]} : vector<8x2xf32> to vector<8x1xf32>
    %cst_194 = arith.constant 5.000000e-01 : f32
    %663 = vector.broadcast %cst_194 : f32 to vector<8x1xf32>
    %664 = arith.mulf %663, %662 : vector<8x1xf32>
    %665 = tpu.concatenate %661, %664 in 1 : vector<8x1xf32>, vector<8x1xf32> -> vector<8x2xf32>
    %666 = arith.addf %658, %665 : vector<8x2xf32>
    %cst_195 = arith.constant 3.000000e+00 : f32
    %667 = vector.broadcast %cst_195 : f32 to vector<8x2xf32>
    %668 = arith.mulf %667, %629 : vector<8x2xf32>
    %669 = arith.subf %668, %648 : vector<8x2xf32>
    %670 = vector.broadcast %609 : f32 to vector<8x2xf32>
    %671 = arith.mulf %670, %666 : vector<8x2xf32>
    %672 = arith.addf %669, %671 : vector<8x2xf32>
    %673 = arith.addf %599, %672 : vector<8x2xf32>
    %cst_196 = arith.constant dense<0.000000e+00> : vector<8x32xf32>
    %674 = tpu.matmul %673, %0, %cst_196 {dimension_numbers = #tpu.dot_dimension_numbers<[1], [0], [0], [1], [0, 0, 1, 1], [], []>} : vector<8x2xf32>, vector<2x32xf32>, vector<8x32xf32> -> vector<8x32xf32>
    %675 = arith.addf %674, %5 : vector<8x32xf32>
    %676 = math.tanh %675 : vector<8x32xf32>
    %cst_197 = arith.constant dense<0.000000e+00> : vector<8x32xf32>
    %677 = tpu.matmul %676, %1, %cst_197 {dimension_numbers = #tpu.dot_dimension_numbers<[1], [0], [0], [1], [0, 0, 1, 1], [], []>} : vector<8x32xf32>, vector<32x32xf32>, vector<8x32xf32> -> vector<8x32xf32>
    %678 = arith.addf %677, %8 : vector<8x32xf32>
    %679 = math.tanh %678 : vector<8x32xf32>
    %cst_198 = arith.constant dense<0.000000e+00> : vector<8x2xf32>
    %680 = tpu.matmul %679, %2, %cst_198 {dimension_numbers = #tpu.dot_dimension_numbers<[1], [0], [0], [1], [0, 0, 1, 1], [], []>} : vector<8x32xf32>, vector<32x2xf32>, vector<8x2xf32> -> vector<8x2xf32>
    %681 = arith.addf %680, %11 : vector<8x2xf32>
    %682 = vector.extract_strided_slice %673 {offsets = [0, 1], sizes = [8, 1], strides = [1, 1]} : vector<8x2xf32> to vector<8x1xf32>
    %cst_199 = arith.constant -5.000000e-01 : f32
    %683 = vector.broadcast %cst_199 : f32 to vector<8x1xf32>
    %684 = arith.mulf %683, %682 : vector<8x1xf32>
    %685 = vector.extract_strided_slice %673 {offsets = [0, 0], sizes = [8, 1], strides = [1, 1]} : vector<8x2xf32> to vector<8x1xf32>
    %cst_200 = arith.constant 5.000000e-01 : f32
    %686 = vector.broadcast %cst_200 : f32 to vector<8x1xf32>
    %687 = arith.mulf %686, %685 : vector<8x1xf32>
    %688 = tpu.concatenate %684, %687 in 1 : vector<8x1xf32>, vector<8x1xf32> -> vector<8x2xf32>
    %689 = arith.addf %681, %688 : vector<8x2xf32>
    %690 = arith.addf %646, %666 : vector<8x2xf32>
    %cst_201 = arith.constant 3.000000e+00 : f32
    %691 = vector.broadcast %cst_201 : f32 to vector<8x2xf32>
    %692 = arith.mulf %691, %690 : vector<8x2xf32>
    %693 = arith.addf %627, %692 : vector<8x2xf32>
    %694 = arith.addf %693, %689 : vector<8x2xf32>
    %695 = vector.broadcast %611 : f32 to vector<8x2xf32>
    %696 = arith.mulf %695, %694 : vector<8x2xf32>
    %697 = arith.addf %599, %696 : vector<8x2xf32>
    %698 = arith.index_cast %c7_i32 : i32 to index
    %c0_202 = arith.constant 0 : index
    %c0_203 = arith.constant 0 : index
    %699 = vector.load %arg9[%698, %c0_202, %c0_203] : memref<8x8x2xf32, #tpu.memory_space<vmem>>, vector<1x8x2xf32>
    %700 = vector.shape_cast %699 : vector<1x8x2xf32> to vector<8x2xf32>
    %701 = vector.shape_cast %697 : vector<8x2xf32> to vector<1x8x2xf32>
    tpu.vector_store %arg9[%698, %c0_202, %c0_203], %701 {strides = array<i32>} : memref<8x8x2xf32, #tpu.memory_space<vmem>>, vector<1x8x2xf32>,
    %c7_i32_204 = arith.constant 7 : i32
    return
  }
  func.func @transform_0(%arg0: i32, %arg1: memref<8xf32, #tpu.memory_space<smem>>) -> (i32, i32) {
    %c0_i32 = arith.constant 0 : i32
    %c0_i32_0 = arith.constant 0 : i32
    %c0_i32_1 = arith.constant 0 : i32
    return %c0_i32, %c0_i32_0 : i32, i32
  }
  func.func @transform_1(%arg0: i32, %arg1: memref<8xf32, #tpu.memory_space<smem>>) -> (i32, i32) {
    %c0_i32 = arith.constant 0 : i32
    %c0_i32_0 = arith.constant 0 : i32
    %c0_i32_1 = arith.constant 0 : i32
    return %c0_i32, %c0_i32_0 : i32, i32
  }
  func.func @transform_2(%arg0: i32, %arg1: memref<8xf32, #tpu.memory_space<smem>>) -> (i32, i32) {
    %c0_i32 = arith.constant 0 : i32
    %c0_i32_0 = arith.constant 0 : i32
    %c0_i32_1 = arith.constant 0 : i32
    return %c0_i32, %c0_i32_0 : i32, i32
  }
  func.func @transform_3(%arg0: i32, %arg1: memref<8xf32, #tpu.memory_space<smem>>) -> (i32, i32) {
    %c0_i32 = arith.constant 0 : i32
    %c0_i32_0 = arith.constant 0 : i32
    %c0_i32_1 = arith.constant 0 : i32
    return %c0_i32, %c0_i32_0 : i32, i32
  }
  func.func @transform_4(%arg0: i32, %arg1: memref<8xf32, #tpu.memory_space<smem>>) -> (i32, i32) {
    %c0_i32 = arith.constant 0 : i32
    %c0_i32_0 = arith.constant 0 : i32
    %c0_i32_1 = arith.constant 0 : i32
    return %c0_i32, %c0_i32_0 : i32, i32
  }
  func.func @transform_5(%arg0: i32, %arg1: memref<8xf32, #tpu.memory_space<smem>>) -> (i32, i32) {
    %c0_i32 = arith.constant 0 : i32
    %c0_i32_0 = arith.constant 0 : i32
    %c0_i32_1 = arith.constant 0 : i32
    return %c0_i32, %c0_i32_0 : i32, i32
  }
  func.func @transform_6(%arg0: i32, %arg1: memref<8xf32, #tpu.memory_space<smem>>) -> (i32, i32) {
    %c0_i32 = arith.constant 0 : i32
    %c0_i32_0 = arith.constant 0 : i32
    %c0_i32_1 = arith.constant 0 : i32
    return %c0_i32, %c0_i32_0 : i32, i32
  }
  func.func @transform_7(%arg0: i32, %arg1: memref<8xf32, #tpu.memory_space<smem>>) -> (i32, i32, i32) {
    %c0_i32 = arith.constant 0 : i32
    %c0_i32_0 = arith.constant 0 : i32
    %c0_i32_1 = arith.constant 0 : i32
    %c0_i32_2 = arith.constant 0 : i32
    return %c0_i32, %c0_i32_0, %c0_i32_1 : i32, i32, i32
  }
}

</mosaic_0001>

<llo_original>
// kernel: tpu_custom_call.1
$region0: #{tpu_custom_call.1}
  #allocation0 [shape = 'u32[]', space=smem, size = 0x4, offset = 0x4, fixed_abs, tag = 'smem constant byte address 0x4 - core index']
  #allocation1 [shape = 'u32[72,128]{1,0:T(1,128)}', space=vmem, size = 0x9000, scoped, tag = 'internal scratch']
  #allocation2 [shape = 's32[1]{0}', space=sflag, size = 0x4, scoped, tag = 'scoped memory for tpu_custom_call.1']
  #allocation3 [shape = 'u8[512]{0}', space=smem, size = 0x200, scoped, tag = 'prefetched SMEM operand 0']
  %s0 = inlined_call_operand.vmem [shape: f32[8], index: 0, kind: input, shape index: {}]
  %s1 = inlined_call_operand.vmem [shape: f32[8,2], index: 1, kind: input, shape index: {}]
  %s2 = inlined_call_operand.vmem [shape: f32[2,32], index: 2, kind: input, shape index: {}]
  %s3 = inlined_call_operand.vmem [shape: f32[1,32], index: 3, kind: input, shape index: {}]
  %s4 = inlined_call_operand.vmem [shape: f32[32,32], index: 4, kind: input, shape index: {}]
  %s5 = inlined_call_operand.vmem [shape: f32[1,32], index: 5, kind: input, shape index: {}]
  %s6 = inlined_call_operand.vmem [shape: f32[32,2], index: 6, kind: input, shape index: {}]
  %s7 = inlined_call_operand.vmem [shape: f32[1,2], index: 7, kind: input, shape index: {}]
  %s8 = inlined_call_operand.vmem [shape: f32[8,8,2], index: 8, kind: output, shape index: {}]
  %s9 = sld [smem:[#allocation0]]
  $region38: #{tpu_custom_call.1} parent=0
    _
  %s11 = ssub.s32 1, %s9
  %s12 = scalar_select 0, %s11, %s9
  %s14 = sshll.u32 %s0, 4
  %s15 = int_to_ptr.vmem [resolvable:$true] %s14
  %17 = dma.vmem_to_smem %s15, 16, [#allocation3], [#allocation2]
  %19 = dma.done [#allocation2], 16
  %20 = sfence
  // Predicated region
  $region2: #{tpu_custom_call.1} parent=0 // pred_check
    _
  $region3: #{tpu_custom_call.1} parent=0 // pred_check_branch
    %22 = sbr.rel (0) target = $region5
  $region4: #{tpu_custom_call.1} parent=0 // pred_region
    _
  $region5: #{tpu_custom_call.1} parent=0 // pred_fallthru
    _
  // Predicated region
  $region6: #{tpu_custom_call.1} parent=0 // pred_check
    _
  $region7: #{tpu_custom_call.1} parent=0 // pred_check_branch
    %24 = sbr.rel (0) target = $region9
  $region8: #{tpu_custom_call.1} parent=0 // pred_region
    _
  $region9: #{tpu_custom_call.1} parent=0 // pred_fallthru
    _
  // Predicated region
  $region10: #{tpu_custom_call.1} parent=0 // pred_check
    _
  $region11: #{tpu_custom_call.1} parent=0 // pred_check_branch
    %26 = sbr.rel (0) target = $region13
  $region12: #{tpu_custom_call.1} parent=0 // pred_region
    _
  $region13: #{tpu_custom_call.1} parent=0 // pred_fallthru
    _
  // Predicated region
  $region14: #{tpu_custom_call.1} parent=0 // pred_check
    _
  $region15: #{tpu_custom_call.1} parent=0 // pred_check_branch
    %28 = sbr.rel (0) target = $region17
  $region16: #{tpu_custom_call.1} parent=0 // pred_region
    _
  $region17: #{tpu_custom_call.1} parent=0 // pred_fallthru
    _
  // Predicated region
  $region18: #{tpu_custom_call.1} parent=0 // pred_check
    _
  $region19: #{tpu_custom_call.1} parent=0 // pred_check_branch
    %30 = sbr.rel (0) target = $region21
  $region20: #{tpu_custom_call.1} parent=0 // pred_region
    _
  $region21: #{tpu_custom_call.1} parent=0 // pred_fallthru
    _
  // Predicated region
  $region22: #{tpu_custom_call.1} parent=0 // pred_check
    _
  $region23: #{tpu_custom_call.1} parent=0 // pred_check_branch
    %32 = sbr.rel (0) target = $region25
  $region24: #{tpu_custom_call.1} parent=0 // pred_region
    _
  $region25: #{tpu_custom_call.1} parent=0 // pred_fallthru
    _
  // Predicated region
  $region26: #{tpu_custom_call.1} parent=0 // pred_check
    _
  $region27: #{tpu_custom_call.1} parent=0 // pred_check_branch
    %34 = sbr.rel (0) target = $region29
  $region28: #{tpu_custom_call.1} parent=0 // pred_region
    _
  $region29: #{tpu_custom_call.1} parent=0 // pred_fallthru
    _
  %v35 = vld [vmem:[%s2] sm:$0x3]
  %v36 = vld [vmem:[%s4] sm:$0xff]
  %v37 = vld [vmem:[%s4 + $0x8] sm:$0xff]
  %v38 = vld [vmem:[%s4 + $0x10] sm:$0xff]
  %v39 = vld [vmem:[%s4 + $0x18] sm:$0xff]
  %v40 = vld [vmem:[%s6] sm:$0xff]
  %v41 = vld [vmem:[%s6 + $0x8] sm:$0xff]
  %v42 = vld [vmem:[%s6 + $0x10] sm:$0xff]
  %v43 = vld [vmem:[%s6 + $0x18] sm:$0xff]
  %v44 = vld [vmem:[%s3] sm:$0x1]
  %v46 = vperm.slane %v44, 0
  %v48 = vld [vmem:[%s5] sm:$0x1]
  %v50 = vperm.slane %v48, 0
  %v52 = vld [vmem:[%s7] sm:$0x1]
  %v54 = vperm.slane %v52, 0
  %v56 = vld [vmem:[%s1] sm:$0xff]
  %vm57 = vcmask 15360
  %58 = vst.msk [vmem:[%s8] sm:$0xff] %vm57, %v56
  %s59 = sld [smem:[#allocation3 + $0x1]]
  %s60 = sld [smem:[#allocation3]]
  %s61 = ssub.f32 %s59, %s60
  %s62 = smul.f32 %s61, 0.33333334
  %s63 = smul.f32 %s61, 0.125
  %v65 = vsel %vm57, %v56, 0
  %vm67 = vcmask 1041408
  %v69 = vsel %vm67, %v35, 0
  %71 = vmatpush.msra.mxu0 0.0
  %72 = vmatpush.msra.mxu0 0.0
  %73 = vmatpush.msra.mxu0 0.0
  %74 = vmatpush.msra.mxu0 0.0
  %75 = vmatpush.msra.mxu0 0.0
  %76 = vmatpush.msra.mxu0 0.0
  %77 = vmatpush.msra.mxu0 0.0
  %78 = vmatpush.msra.mxu0 0.0
  %79 = vmatpush.msra.mxu0 0.0
  %80 = vmatpush.msra.mxu0 0.0
  %81 = vmatpush.msra.mxu0 0.0
  %82 = vmatpush.msra.mxu0 0.0
  %83 = vmatpush.msra.mxu0 0.0
  %84 = vmatpush.msra.mxu0 0.0
  %85 = vmatpush.msra.mxu0 0.0
  %86 = vmatpush.msra.mxu0 %v69
  %87 = vmatmul.f32.gmra.mxu0 %v65
  %v88 = vpop.f32.mrf.mxu0
  %v89 = vadd.f32 %v46, %v88
  %90 = vdwg.mxu0
  %v91 = vtanh.pop %v89
  %vm92 = vcmask 261120
  %v94 = vsel %vm92, %v91, 0
  %96 = vmatpush.msra.mxu0 0.0
  %97 = vmatpush.msra.mxu0 0.0
  %98 = vmatpush.msra.mxu0 0.0
  %99 = vmatpush.msra.mxu0 0.0
  %100 = vmatpush.msra.mxu0 0.0
  %101 = vmatpush.msra.mxu0 0.0
  %102 = vmatpush.msra.mxu0 0.0
  %103 = vmatpush.msra.mxu0 0.0
  %104 = vmatpush.msra.mxu0 0.0
  %105 = vmatpush.msra.mxu0 0.0
  %106 = vmatpush.msra.mxu0 0.0
  %107 = vmatpush.msra.mxu0 0.0
  %108 = vmatpush.msra.mxu0 %v39
  %109 = vmatpush.msra.mxu0 %v38
  %110 = vmatpush.msra.mxu0 %v37
  %111 = vmatpush.msra.mxu0 %v36
  %112 = vmatmul.f32.gmra.mxu0 %v94
  %v113 = vpop.f32.mrf.mxu0
  %v114 = vadd.f32 %v50, %v113
  %115 = vdwg.mxu0
  %v116 = vtanh.pop %v114
  %v118 = vsel %vm92, %v116, 0
  %120 = vmatpush.msra.mxu0 0.0
  %121 = vmatpush.msra.mxu0 0.0
  %122 = vmatpush.msra.mxu0 0.0
  %123 = vmatpush.msra.mxu0 0.0
  %124 = vmatpush.msra.mxu0 0.0
  %125 = vmatpush.msra.mxu0 0.0
  %126 = vmatpush.msra.mxu0 0.0
  %127 = vmatpush.msra.mxu0 0.0
  %128 = vmatpush.msra.mxu0 0.0
  %129 = vmatpush.msra.mxu0 0.0
  %130 = vmatpush.msra.mxu0 0.0
  %131 = vmatpush.msra.mxu0 0.0
  %132 = vmatpush.msra.mxu0 %v43
  %133 = vmatpush.msra.mxu0 %v42
  %134 = vmatpush.msra.mxu0 %v41
  %135 = vmatpush.msra.mxu0 %v40
  %136 = vmatmul.f32.gmra.mxu0 %v118
  %v137 = vpop.f32.mrf.mxu0
  %v138 = vadd.f32 %v54, %v137
  %139 = vdwg.mxu0
  %v140 = vmul.f32 %v56, -0.5
  %v141 = vmul.f32 %v56, 0.5
  %143 = vrot.lane.b32.xlu0 %v140, 127
  %v144 = vpop.permute.xlu0 %143
  %147 = vrot.lane.b32.xlu0 %v141, 1
  %v148 = vpop.permute.xlu0 %147
  %vm150 = vcmask 7168
  %v151 = vsel %vm150, %v144, %v148
  %v152 = vadd.f32 %v138, %v151
  %v153 = vstv %s62
  %v154 = vmul.f32 %v153, %v152
  %v155 = vadd.f32 %v56, %v154
  %v157 = vsel %vm57, %v155, 0
  %159 = vmatpush.msra.mxu0 0.0
  %160 = vmatpush.msra.mxu0 0.0
  %161 = vmatpush.msra.mxu0 0.0
  %162 = vmatpush.msra.mxu0 0.0
  %163 = vmatpush.msra.mxu0 0.0
  %164 = vmatpush.msra.mxu0 0.0
  %165 = vmatpush.msra.mxu0 0.0
  %166 = vmatpush.msra.mxu0 0.0
  %167 = vmatpush.msra.mxu0 0.0
  %168 = vmatpush.msra.mxu0 0.0
  %169 = vmatpush.msra.mxu0 0.0
  %170 = vmatpush.msra.mxu0 0.0
  %171 = vmatpush.msra.mxu0 0.0
  %172 = vmatpush.msra.mxu0 0.0
  %173 = vmatpush.msra.mxu0 0.0
  %174 = vmatpush.msra.mxu0 %v69
  %175 = vmatmul.f32.gmra.mxu0 %v157
  %v176 = vpop.f32.mrf.mxu0
  %v177 = vadd.f32 %v46, %v176
  %178 = vdwg.mxu0
  %v179 = vtanh.pop %v177
  %v181 = vsel %vm92, %v179, 0
  %183 = vmatpush.msra.mxu0 0.0
  %184 = vmatpush.msra.mxu0 0.0
  %185 = vmatpush.msra.mxu0 0.0
  %186 = vmatpush.msra.mxu0 0.0
  %187 = vmatpush.msra.mxu0 0.0
  %188 = vmatpush.msra.mxu0 0.0
  %189 = vmatpush.msra.mxu0 0.0
  %190 = vmatpush.msra.mxu0 0.0
  %191 = vmatpush.msra.mxu0 0.0
  %192 = vmatpush.msra.mxu0 0.0
  %193 = vmatpush.msra.mxu0 0.0
  %194 = vmatpush.msra.mxu0 0.0
  %195 = vmatpush.msra.mxu0 %v39
  %196 = vmatpush.msra.mxu0 %v38
  %197 = vmatpush.msra.mxu0 %v37
  %198 = vmatpush.msra.mxu0 %v36
  %199 = vmatmul.f32.gmra.mxu0 %v181
  %v200 = vpop.f32.mrf.mxu0
  %v201 = vadd.f32 %v50, %v200
  %202 = vdwg.mxu0
  %v203 = vtanh.pop %v201
  %v205 = vsel %vm92, %v203, 0
  %207 = vmatpush.msra.mxu0 0.0
  %208 = vmatpush.msra.mxu0 0.0
  %209 = vmatpush.msra.mxu0 0.0
  %210 = vmatpush.msra.mxu0 0.0
  %211 = vmatpush.msra.mxu0 0.0
  %212 = vmatpush.msra.mxu0 0.0
  %213 = vmatpush.msra.mxu0 0.0
  %214 = vmatpush.msra.mxu0 0.0
  %215 = vmatpush.msra.mxu0 0.0
  %216 = vmatpush.msra.mxu0 0.0
  %217 = vmatpush.msra.mxu0 0.0
  %218 = vmatpush.msra.mxu0 0.0
  %219 = vmatpush.msra.mxu0 %v43
  %220 = vmatpush.msra.mxu0 %v42
  %221 = vmatpush.msra.mxu0 %v41
  %222 = vmatpush.msra.mxu0 %v40
  %223 = vmatmul.f32.gmra.mxu0 %v205
  %v224 = vpop.f32.mrf.mxu0
  %v225 = vadd.f32 %v54, %v224
  %226 = vdwg.mxu0
  %v227 = vmul.f32 %v155, -0.5
  %v228 = vmul.f32 %v155, 0.5
  %230 = vrot.lane.b32.xlu0 %v227, 127
  %v231 = vpop.permute.xlu0 %230
  %234 = vrot.lane.b32.xlu0 %v228, 1
  %v235 = vpop.permute.xlu0 %234
  %v237 = vsel %vm150, %v231, %v235
  %v238 = vadd.f32 %v225, %v237
  %v239 = vstv %s61
  %v240 = vmul.f32 %v239, %v238
  %v241 = vsub.f32 %v240, %v154
  %v242 = vadd.f32 %v56, %v241
  %v244 = vsel %vm57, %v242, 0
  %246 = vmatpush.msra.mxu0 0.0
  %247 = vmatpush.msra.mxu0 0.0
  %248 = vmatpush.msra.mxu0 0.0
  %249 = vmatpush.msra.mxu0 0.0
  %250 = vmatpush.msra.mxu0 0.0
  %251 = vmatpush.msra.mxu0 0.0
  %252 = vmatpush.msra.mxu0 0.0
  %253 = vmatpush.msra.mxu0 0.0
  %254 = vmatpush.msra.mxu0 0.0
  %255 = vmatpush.msra.mxu0 0.0
  %256 = vmatpush.msra.mxu0 0.0
  %257 = vmatpush.msra.mxu0 0.0
  %258 = vmatpush.msra.mxu0 0.0
  %259 = vmatpush.msra.mxu0 0.0
  %260 = vmatpush.msra.mxu0 0.0
  %261 = vmatpush.msra.mxu0 %v69
  %262 = vmatmul.f32.gmra.mxu0 %v244
  %v263 = vpop.f32.mrf.mxu0
  %v264 = vadd.f32 %v46, %v263
  %265 = vdwg.mxu0
  %v266 = vtanh.pop %v264
  %v268 = vsel %vm92, %v266, 0
  %270 = vmatpush.msra.mxu0 0.0
  %271 = vmatpush.msra.mxu0 0.0
  %272 = vmatpush.msra.mxu0 0.0
  %273 = vmatpush.msra.mxu0 0.0
  %274 = vmatpush.msra.mxu0 0.0
  %275 = vmatpush.msra.mxu0 0.0
  %276 = vmatpush.msra.mxu0 0.0
  %277 = vmatpush.msra.mxu0 0.0
  %278 = vmatpush.msra.mxu0 0.0
  %279 = vmatpush.msra.mxu0 0.0
  %280 = vmatpush.msra.mxu0 0.0
  %281 = vmatpush.msra.mxu0 0.0
  %282 = vmatpush.msra.mxu0 %v39
  %283 = vmatpush.msra.mxu0 %v38
  %284 = vmatpush.msra.mxu0 %v37
  %285 = vmatpush.msra.mxu0 %v36
  %286 = vmatmul.f32.gmra.mxu0 %v268
  %v287 = vpop.f32.mrf.mxu0
  %v288 = vadd.f32 %v50, %v287
  %289 = vdwg.mxu0
  %v290 = vtanh.pop %v288
  %v292 = vsel %vm92, %v290, 0
  %294 = vmatpush.msra.mxu0 0.0
  %295 = vmatpush.msra.mxu0 0.0
  %296 = vmatpush.msra.mxu0 0.0
  %297 = vmatpush.msra.mxu0 0.0
  %298 = vmatpush.msra.mxu0 0.0
  %299 = vmatpush.msra.mxu0 0.0
  %300 = vmatpush.msra.mxu0 0.0
  %301 = vmatpush.msra.mxu0 0.0
  %302 = vmatpush.msra.mxu0 0.0
  %303 = vmatpush.msra.mxu0 0.0
  %304 = vmatpush.msra.mxu0 0.0
  %305 = vmatpush.msra.mxu0 0.0
  %306 = vmatpush.msra.mxu0 %v43
  %307 = vmatpush.msra.mxu0 %v42
  %308 = vmatpush.msra.mxu0 %v41
  %309 = vmatpush.msra.mxu0 %v40
  %310 = vmatmul.f32.gmra.mxu0 %v292
  %v311 = vpop.f32.mrf.mxu0
  %v312 = vadd.f32 %v54, %v311
  %313 = vdwg.mxu0
  %v314 = vmul.f32 %v242, -0.5
  %v315 = vmul.f32 %v242, 0.5
  %317 = vrot.lane.b32.xlu0 %v314, 127
  %v318 = vpop.permute.xlu0 %317
  %321 = vrot.lane.b32.xlu0 %v315, 1
  %v322 = vpop.permute.xlu0 %321
  %v324 = vsel %vm150, %v318, %v322
  %v325 = vadd.f32 %v312, %v324
  %v326 = vmul.f32 %v154, 3.0
  %v327 = vsub.f32 %v326, %v240
  %v328 = vmul.f32 %v239, %v325
  %v329 = vadd.f32 %v327, %v328
  %v330 = vadd.f32 %v56, %v329
  %v332 = vsel %vm57, %v330, 0
  %334 = vmatpush.msra.mxu0 0.0
  %335 = vmatpush.msra.mxu0 0.0
  %336 = vmatpush.msra.mxu0 0.0
  %337 = vmatpush.msra.mxu0 0.0
  %338 = vmatpush.msra.mxu0 0.0
  %339 = vmatpush.msra.mxu0 0.0
  %340 = vmatpush.msra.mxu0 0.0
  %341 = vmatpush.msra.mxu0 0.0
  %342 = vmatpush.msra.mxu0 0.0
  %343 = vmatpush.msra.mxu0 0.0
  %344 = vmatpush.msra.mxu0 0.0
  %345 = vmatpush.msra.mxu0 0.0
  %346 = vmatpush.msra.mxu0 0.0
  %347 = vmatpush.msra.mxu0 0.0
  %348 = vmatpush.msra.mxu0 0.0
  %349 = vmatpush.msra.mxu0 %v69
  %350 = vmatmul.f32.gmra.mxu0 %v332
  %v351 = vpop.f32.mrf.mxu0
  %v352 = vadd.f32 %v46, %v351
  %353 = vdwg.mxu0
  %v354 = vtanh.pop %v352
  %v356 = vsel %vm92, %v354, 0
  %358 = vmatpush.msra.mxu0 0.0
  %359 = vmatpush.msra.mxu0 0.0
  %360 = vmatpush.msra.mxu0 0.0
  %361 = vmatpush.msra.mxu0 0.0
  %362 = vmatpush.msra.mxu0 0.0
  %363 = vmatpush.msra.mxu0 0.0
  %364 = vmatpush.msra.mxu0 0.0
  %365 = vmatpush.msra.mxu0 0.0
  %366 = vmatpush.msra.mxu0 0.0
  %367 = vmatpush.msra.mxu0 0.0
  %368 = vmatpush.msra.mxu0 0.0
  %369 = vmatpush.msra.mxu0 0.0
  %370 = vmatpush.msra.mxu0 %v39
  %371 = vmatpush.msra.mxu0 %v38
  %372 = vmatpush.msra.mxu0 %v37
  %373 = vmatpush.msra.mxu0 %v36
  %374 = vmatmul.f32.gmra.mxu0 %v356
  %v375 = vpop.f32.mrf.mxu0
  %v376 = vadd.f32 %v50, %v375
  %377 = vdwg.mxu0
  %v378 = vtanh.pop %v376
  %v380 = vsel %vm92, %v378, 0
  %382 = vmatpush.msra.mxu0 0.0
  %383 = vmatpush.msra.mxu0 0.0
  %384 = vmatpush.msra.mxu0 0.0
  %385 = vmatpush.msra.mxu0 0.0
  %386 = vmatpush.msra.mxu0 0.0
  %387 = vmatpush.msra.mxu0 0.0
  %388 = vmatpush.msra.mxu0 0.0
  %389 = vmatpush.msra.mxu0 0.0
  %390 = vmatpush.msra.mxu0 0.0
  %391 = vmatpush.msra.mxu0 0.0
  %392 = vmatpush.msra.mxu0 0.0
  %393 = vmatpush.msra.mxu0 0.0
  %394 = vmatpush.msra.mxu0 %v43
  %395 = vmatpush.msra.mxu0 %v42
  %396 = vmatpush.msra.mxu0 %v41
  %397 = vmatpush.msra.mxu0 %v40
  %398 = vmatmul.f32.gmra.mxu0 %v380
  %v399 = vpop.f32.mrf.mxu0
  %v400 = vadd.f32 %v54, %v399
  %401 = vdwg.mxu0
  %v402 = vmul.f32 %v330, -0.5
  %v403 = vmul.f32 %v330, 0.5
  %405 = vrot.lane.b32.xlu0 %v402, 127
  %v406 = vpop.permute.xlu0 %405
  %409 = vrot.lane.b32.xlu0 %v403, 1
  %v410 = vpop.permute.xlu0 %409
  %v412 = vsel %vm150, %v406, %v410
  %v413 = vadd.f32 %v400, %v412
  %v414 = vadd.f32 %v238, %v325
  %v415 = vmul.f32 %v414, 3.0
  %v416 = vadd.f32 %v152, %v415
  %v417 = vadd.f32 %v416, %v413
  %v418 = vstv %s63
  %v419 = vmul.f32 %v418, %v417
  %v420 = vadd.f32 %v56, %v419
  %s421 = scalar_lea.vmem %s8, 8
  %422 = vst.msk [vmem:[%s421] sm:$0xff] %vm57, %v420
  %s423 = sld [smem:[#allocation3 + $0x2]]
  %s424 = sld [smem:[#allocation3 + $0x1]]
  %s425 = ssub.f32 %s423, %s424
  %s426 = smul.f32 %s425, 0.33333334
  %s427 = smul.f32 %s425, 0.125
  %v429 = vsel %vm57, %v420, 0
  %431 = vmatpush.msra.mxu0 0.0
  %432 = vmatpush.msra.mxu0 0.0
  %433 = vmatpush.msra.mxu0 0.0
  %434 = vmatpush.msra.mxu0 0.0
  %435 = vmatpush.msra.mxu0 0.0
  %436 = vmatpush.msra.mxu0 0.0
  %437 = vmatpush.msra.mxu0 0.0
  %438 = vmatpush.msra.mxu0 0.0
  %439 = vmatpush.msra.mxu0 0.0
  %440 = vmatpush.msra.mxu0 0.0
  %441 = vmatpush.msra.mxu0 0.0
  %442 = vmatpush.msra.mxu0 0.0
  %443 = vmatpush.msra.mxu0 0.0
  %444 = vmatpush.msra.mxu0 0.0
  %445 = vmatpush.msra.mxu0 0.0
  %446 = vmatpush.msra.mxu0 %v69
  %447 = vmatmul.f32.gmra.mxu0 %v429
  %v448 = vpop.f32.mrf.mxu0
  %v449 = vadd.f32 %v46, %v448
  %450 = vdwg.mxu0
  %v451 = vtanh.pop %v449
  %v453 = vsel %vm92, %v451, 0
  %455 = vmatpush.msra.mxu0 0.0
  %456 = vmatpush.msra.mxu0 0.0
  %457 = vmatpush.msra.mxu0 0.0
  %458 = vmatpush.msra.mxu0 0.0
  %459 = vmatpush.msra.mxu0 0.0
  %460 = vmatpush.msra.mxu0 0.0
  %461 = vmatpush.msra.mxu0 0.0
  %462 = vmatpush.msra.mxu0 0.0
  %463 = vmatpush.msra.mxu0 0.0
  %464 = vmatpush.msra.mxu0 0.0
  %465 = vmatpush.msra.mxu0 0.0
  %466 = vmatpush.msra.mxu0 0.0
  %467 = vmatpush.msra.mxu0 %v39
  %468 = vmatpush.msra.mxu0 %v38
  %469 = vmatpush.msra.mxu0 %v37
  %470 = vmatpush.msra.mxu0 %v36
  %471 = vmatmul.f32.gmra.mxu0 %v453
  %v472 = vpop.f32.mrf.mxu0
  %v473 = vadd.f32 %v50, %v472
  %474 = vdwg.mxu0
  %v475 = vtanh.pop %v473
  %v477 = vsel %vm92, %v475, 0
  %479 = vmatpush.msra.mxu0 0.0
  %480 = vmatpush.msra.mxu0 0.0
  %481 = vmatpush.msra.mxu0 0.0
  %482 = vmatpush.msra.mxu0 0.0
  %483 = vmatpush.msra.mxu0 0.0
  %484 = vmatpush.msra.mxu0 0.0
  %485 = vmatpush.msra.mxu0 0.0
  %486 = vmatpush.msra.mxu0 0.0
  %487 = vmatpush.msra.mxu0 0.0
  %488 = vmatpush.msra.mxu0 0.0
  %489 = vmatpush.msra.mxu0 0.0
  %490 = vmatpush.msra.mxu0 0.0
  %491 = vmatpush.msra.mxu0 %v43
  %492 = vmatpush.msra.mxu0 %v42
  %493 = vmatpush.msra.mxu0 %v41
  %494 = vmatpush.msra.mxu0 %v40
  %495 = vmatmul.f32.gmra.mxu0 %v477
  %v496 = vpop.f32.mrf.mxu0
  %v497 = vadd.f32 %v54, %v496
  %498 = vdwg.mxu0
  %v499 = vmul.f32 %v420, -0.5
  %v500 = vmul.f32 %v420, 0.5
  %502 = vrot.lane.b32.xlu0 %v499, 127
  %v503 = vpop.permute.xlu0 %502
  %506 = vrot.lane.b32.xlu0 %v500, 1
  %v507 = vpop.permute.xlu0 %506
  %v509 = vsel %vm150, %v503, %v507
  %v510 = vadd.f32 %v497, %v509
  %v511 = vstv %s426
  %v512 = vmul.f32 %v511, %v510
  %v513 = vadd.f32 %v420, %v512
  %v515 = vsel %vm57, %v513, 0
  %517 = vmatpush.msra.mxu0 0.0
  %518 = vmatpush.msra.mxu0 0.0
  %519 = vmatpush.msra.mxu0 0.0
  %520 = vmatpush.msra.mxu0 0.0
  %521 = vmatpush.msra.mxu0 0.0
  %522 = vmatpush.msra.mxu0 0.0
  %523 = vmatpush.msra.mxu0 0.0
  %524 = vmatpush.msra.mxu0 0.0
  %525 = vmatpush.msra.mxu0 0.0
  %526 = vmatpush.msra.mxu0 0.0
  %527 = vmatpush.msra.mxu0 0.0
  %528 = vmatpush.msra.mxu0 0.0
  %529 = vmatpush.msra.mxu0 0.0
  %530 = vmatpush.msra.mxu0 0.0
  %531 = vmatpush.msra.mxu0 0.0
  %532 = vmatpush.msra.mxu0 %v69
  %533 = vmatmul.f32.gmra.mxu0 %v515
  %v534 = vpop.f32.mrf.mxu0
  %v535 = vadd.f32 %v46, %v534
  %536 = vdwg.mxu0
  %v537 = vtanh.pop %v535
  %v539 = vsel %vm92, %v537, 0
  %541 = vmatpush.msra.mxu0 0.0
  %542 = vmatpush.msra.mxu0 0.0
  %543 = vmatpush.msra.mxu0 0.0
  %544 = vmatpush.msra.mxu0 0.0
  %545 = vmatpush.msra.mxu0 0.0
  %546 = vmatpush.msra.mxu0 0.0
  %547 = vmatpush.msra.mxu0 0.0
  %548 = vmatpush.msra.mxu0 0.0
  %549 = vmatpush.msra.mxu0 0.0
  %550 = vmatpush.msra.mxu0 0.0
  %551 = vmatpush.msra.mxu0 0.0
  %552 = vmatpush.msra.mxu0 0.0
  %553 = vmatpush.msra.mxu0 %v39
  %554 = vmatpush.msra.mxu0 %v38
  %555 = vmatpush.msra.mxu0 %v37
  %556 = vmatpush.msra.mxu0 %v36
  %557 = vmatmul.f32.gmra.mxu0 %v539
  %v558 = vpop.f32.mrf.mxu0
  %v559 = vadd.f32 %v50, %v558
  %560 = vdwg.mxu0
  %v561 = vtanh.pop %v559
  %v563 = vsel %vm92, %v561, 0
  %565 = vmatpush.msra.mxu0 0.0
  %566 = vmatpush.msra.mxu0 0.0
  %567 = vmatpush.msra.mxu0 0.0
  %568 = vmatpush.msra.mxu0 0.0
  %569 = vmatpush.msra.mxu0 0.0
  %570 = vmatpush.msra.mxu0 0.0
  %571 = vmatpush.msra.mxu0 0.0
  %572 = vmatpush.msra.mxu0 0.0
  %573 = vmatpush.msra.mxu0 0.0
  %574 = vmatpush.msra.mxu0 0.0
  %575 = vmatpush.msra.mxu0 0.0
  %576 = vmatpush.msra.mxu0 0.0
  %577 = vmatpush.msra.mxu0 %v43
  %578 = vmatpush.msra.mxu0 %v42
  %579 = vmatpush.msra.mxu0 %v41
  %580 = vmatpush.msra.mxu0 %v40
  %581 = vmatmul.f32.gmra.mxu0 %v563
  %v582 = vpop.f32.mrf.mxu0
  %v583 = vadd.f32 %v54, %v582
  %584 = vdwg.mxu0
  %v585 = vmul.f32 %v513, -0.5
  %v586 = vmul.f32 %v513, 0.5
  %588 = vrot.lane.b32.xlu0 %v585, 127
  %v589 = vpop.permute.xlu0 %588
  %592 = vrot.lane.b32.xlu0 %v586, 1
  %v593 = vpop.permute.xlu0 %592
  %v595 = vsel %vm150, %v589, %v593
  %v596 = vadd.f32 %v583, %v595
  %v597 = vstv %s425
  %v598 = vmul.f32 %v597, %v596
  %v599 = vsub.f32 %v598, %v512
  %v600 = vadd.f32 %v420, %v599
  %v602 = vsel %vm57, %v600, 0
  %604 = vmatpush.msra.mxu0 0.0
  %605 = vmatpush.msra.mxu0 0.0
  %606 = vmatpush.msra.mxu0 0.0
  %607 = vmatpush.msra.mxu0 0.0
  %608 = vmatpush.msra.mxu0 0.0
  %609 = vmatpush.msra.mxu0 0.0
  %610 = vmatpush.msra.mxu0 0.0
  %611 = vmatpush.msra.mxu0 0.0
  %612 = vmatpush.msra.mxu0 0.0
  %613 = vmatpush.msra.mxu0 0.0
  %614 = vmatpush.msra.mxu0 0.0
  %615 = vmatpush.msra.mxu0 0.0
  %616 = vmatpush.msra.mxu0 0.0
  %617 = vmatpush.msra.mxu0 0.0
  %618 = vmatpush.msra.mxu0 0.0
  %619 = vmatpush.msra.mxu0 %v69
  %620 = vmatmul.f32.gmra.mxu0 %v602
  %v621 = vpop.f32.mrf.mxu0
  %v622 = vadd.f32 %v46, %v621
  %623 = vdwg.mxu0
  %v624 = vtanh.pop %v622
  %v626 = vsel %vm92, %v624, 0
  %628 = vmatpush.msra.mxu0 0.0
  %629 = vmatpush.msra.mxu0 0.0
  %630 = vmatpush.msra.mxu0 0.0
  %631 = vmatpush.msra.mxu0 0.0
  %632 = vmatpush.msra.mxu0 0.0
  %633 = vmatpush.msra.mxu0 0.0
  %634 = vmatpush.msra.mxu0 0.0
  %635 = vmatpush.msra.mxu0 0.0
  %636 = vmatpush.msra.mxu0 0.0
  %637 = vmatpush.msra.mxu0 0.0
  %638 = vmatpush.msra.mxu0 0.0
  %639 = vmatpush.msra.mxu0 0.0
  %640 = vmatpush.msra.mxu0 %v39
  %641 = vmatpush.msra.mxu0 %v38
  %642 = vmatpush.msra.mxu0 %v37
  %643 = vmatpush.msra.mxu0 %v36
  %644 = vmatmul.f32.gmra.mxu0 %v626
  %v645 = vpop.f32.mrf.mxu0
  %v646 = vadd.f32 %v50, %v645
  %647 = vdwg.mxu0
  %v648 = vtanh.pop %v646
  %v650 = vsel %vm92, %v648, 0
  %652 = vmatpush.msra.mxu0 0.0
  %653 = vmatpush.msra.mxu0 0.0
  %654 = vmatpush.msra.mxu0 0.0
  %655 = vmatpush.msra.mxu0 0.0
  %656 = vmatpush.msra.mxu0 0.0
  %657 = vmatpush.msra.mxu0 0.0
  %658 = vmatpush.msra.mxu0 0.0
  %659 = vmatpush.msra.mxu0 0.0
  %660 = vmatpush.msra.mxu0 0.0
  %661 = vmatpush.msra.mxu0 0.0
  %662 = vmatpush.msra.mxu0 0.0
  %663 = vmatpush.msra.mxu0 0.0
  %664 = vmatpush.msra.mxu0 %v43
  %665 = vmatpush.msra.mxu0 %v42
  %666 = vmatpush.msra.mxu0 %v41
  %667 = vmatpush.msra.mxu0 %v40
  %668 = vmatmul.f32.gmra.mxu0 %v650
  %v669 = vpop.f32.mrf.mxu0
  %v670 = vadd.f32 %v54, %v669
  %671 = vdwg.mxu0
  %v672 = vmul.f32 %v600, -0.5
  %v673 = vmul.f32 %v600, 0.5
  %675 = vrot.lane.b32.xlu0 %v672, 127
  %v676 = vpop.permute.xlu0 %675
  %679 = vrot.lane.b32.xlu0 %v673, 1
  %v680 = vpop.permute.xlu0 %679
  %v682 = vsel %vm150, %v676, %v680
  %v683 = vadd.f32 %v670, %v682
  %v684 = vmul.f32 %v512, 3.0
  %v685 = vsub.f32 %v684, %v598
  %v686 = vmul.f32 %v597, %v683
  %v687 = vadd.f32 %v685, %v686
  %v688 = vadd.f32 %v420, %v687
  %v690 = vsel %vm57, %v688, 0
  %692 = vmatpush.msra.mxu0 0.0
  %693 = vmatpush.msra.mxu0 0.0
  %694 = vmatpush.msra.mxu0 0.0
  %695 = vmatpush.msra.mxu0 0.0
  %696 = vmatpush.msra.mxu0 0.0
  %697 = vmatpush.msra.mxu0 0.0
  %698 = vmatpush.msra.mxu0 0.0
  %699 = vmatpush.msra.mxu0 0.0
  %700 = vmatpush.msra.mxu0 0.0
  %701 = vmatpush.msra.mxu0 0.0
  %702 = vmatpush.msra.mxu0 0.0
  %703 = vmatpush.msra.mxu0 0.0
  %704 = vmatpush.msra.mxu0 0.0
  %705 = vmatpush.msra.mxu0 0.0
  %706 = vmatpush.msra.mxu0 0.0
  %707 = vmatpush.msra.mxu0 %v69
  %708 = vmatmul.f32.gmra.mxu0 %v690
  %v709 = vpop.f32.mrf.mxu0
  %v710 = vadd.f32 %v46, %v709
  %711 = vdwg.mxu0
  %v712 = vtanh.pop %v710
  %v714 = vsel %vm92, %v712, 0
  %716 = vmatpush.msra.mxu0 0.0
  %717 = vmatpush.msra.mxu0 0.0
  %718 = vmatpush.msra.mxu0 0.0
  %719 = vmatpush.msra.mxu0 0.0
  %720 = vmatpush.msra.mxu0 0.0
  %721 = vmatpush.msra.mxu0 0.0
  %722 = vmatpush.msra.mxu0 0.0
  %723 = vmatpush.msra.mxu0 0.0
  %724 = vmatpush.msra.mxu0 0.0
  %725 = vmatpush.msra.mxu0 0.0
  %726 = vmatpush.msra.mxu0 0.0
  %727 = vmatpush.msra.mxu0 0.0
  %728 = vmatpush.msra.mxu0 %v39
  %729 = vmatpush.msra.mxu0 %v38
  %730 = vmatpush.msra.mxu0 %v37
  %731 = vmatpush.msra.mxu0 %v36
  %732 = vmatmul.f32.gmra.mxu0 %v714
  %v733 = vpop.f32.mrf.mxu0
  %v734 = vadd.f32 %v50, %v733
  %735 = vdwg.mxu0
  %v736 = vtanh.pop %v734
  %v738 = vsel %vm92, %v736, 0
  %740 = vmatpush.msra.mxu0 0.0
  %741 = vmatpush.msra.mxu0 0.0
  %742 = vmatpush.msra.mxu0 0.0
  %743 = vmatpush.msra.mxu0 0.0
  %744 = vmatpush.msra.mxu0 0.0
  %745 = vmatpush.msra.mxu0 0.0
  %746 = vmatpush.msra.mxu0 0.0
  %747 = vmatpush.msra.mxu0 0.0
  %748 = vmatpush.msra.mxu0 0.0
  %749 = vmatpush.msra.mxu0 0.0
  %750 = vmatpush.msra.mxu0 0.0
  %751 = vmatpush.msra.mxu0 0.0
  %752 = vmatpush.msra.mxu0 %v43
  %753 = vmatpush.msra.mxu0 %v42
  %754 = vmatpush.msra.mxu0 %v41
  %755 = vmatpush.msra.mxu0 %v40
  %756 = vmatmul.f32.gmra.mxu0 %v738
  %v757 = vpop.f32.mrf.mxu0
  %v758 = vadd.f32 %v54, %v757
  %759 = vdwg.mxu0
  %v760 = vmul.f32 %v688, -0.5
  %v761 = vmul.f32 %v688, 0.5
  %763 = vrot.lane.b32.xlu0 %v760, 127
  %v764 = vpop.permute.xlu0 %763
  %767 = vrot.lane.b32.xlu0 %v761, 1
  %v768 = vpop.permute.xlu0 %767
  %v770 = vsel %vm150, %v764, %v768
  %v771 = vadd.f32 %v758, %v770
  %v772 = vadd.f32 %v596, %v683
  %v773 = vmul.f32 %v772, 3.0
  %v774 = vadd.f32 %v510, %v773
  %v775 = vadd.f32 %v774, %v771
  %v776 = vstv %s427
  %v777 = vmul.f32 %v776, %v775
  %v778 = vadd.f32 %v420, %v777
  %s779 = scalar_lea.vmem %s8, 16
  %780 = vst.msk [vmem:[%s779] sm:$0xff] %vm57, %v778
  %s781 = sld [smem:[#allocation3 + $0x3]]
  %s782 = sld [smem:[#allocation3 + $0x2]]
  %s783 = ssub.f32 %s781, %s782
  %s784 = smul.f32 %s783, 0.33333334
  %s785 = smul.f32 %s783, 0.125
  %v787 = vsel %vm57, %v778, 0
  %789 = vmatpush.msra.mxu0 0.0
  %790 = vmatpush.msra.mxu0 0.0
  %791 = vmatpush.msra.mxu0 0.0
  %792 = vmatpush.msra.mxu0 0.0
  %793 = vmatpush.msra.mxu0 0.0
  %794 = vmatpush.msra.mxu0 0.0
  %795 = vmatpush.msra.mxu0 0.0
  %796 = vmatpush.msra.mxu0 0.0
  %797 = vmatpush.msra.mxu0 0.0
  %798 = vmatpush.msra.mxu0 0.0
  %799 = vmatpush.msra.mxu0 0.0
  %800 = vmatpush.msra.mxu0 0.0
  %801 = vmatpush.msra.mxu0 0.0
  %802 = vmatpush.msra.mxu0 0.0
  %803 = vmatpush.msra.mxu0 0.0
  %804 = vmatpush.msra.mxu0 %v69
  %805 = vmatmul.f32.gmra.mxu0 %v787
  %v806 = vpop.f32.mrf.mxu0
  %v807 = vadd.f32 %v46, %v806
  %808 = vdwg.mxu0
  %v809 = vtanh.pop %v807
  %v811 = vsel %vm92, %v809, 0
  %813 = vmatpush.msra.mxu0 0.0
  %814 = vmatpush.msra.mxu0 0.0
  %815 = vmatpush.msra.mxu0 0.0
  %816 = vmatpush.msra.mxu0 0.0
  %817 = vmatpush.msra.mxu0 0.0
  %818 = vmatpush.msra.mxu0 0.0
  %819 = vmatpush.msra.mxu0 0.0
  %820 = vmatpush.msra.mxu0 0.0
  %821 = vmatpush.msra.mxu0 0.0
  %822 = vmatpush.msra.mxu0 0.0
  %823 = vmatpush.msra.mxu0 0.0
  %824 = vmatpush.msra.mxu0 0.0
  %825 = vmatpush.msra.mxu0 %v39
  %826 = vmatpush.msra.mxu0 %v38
  %827 = vmatpush.msra.mxu0 %v37
  %828 = vmatpush.msra.mxu0 %v36
  %829 = vmatmul.f32.gmra.mxu0 %v811
  %v830 = vpop.f32.mrf.mxu0
  %v831 = vadd.f32 %v50, %v830
  %832 = vdwg.mxu0
  %v833 = vtanh.pop %v831
  %v835 = vsel %vm92, %v833, 0
  %837 = vmatpush.msra.mxu0 0.0
  %838 = vmatpush.msra.mxu0 0.0
  %839 = vmatpush.msra.mxu0 0.0
  %840 = vmatpush.msra.mxu0 0.0
  %841 = vmatpush.msra.mxu0 0.0
  %842 = vmatpush.msra.mxu0 0.0
  %843 = vmatpush.msra.mxu0 0.0
  %844 = vmatpush.msra.mxu0 0.0
  %845 = vmatpush.msra.mxu0 0.0
  %846 = vmatpush.msra.mxu0 0.0
  %847 = vmatpush.msra.mxu0 0.0
  %848 = vmatpush.msra.mxu0 0.0
  %849 = vmatpush.msra.mxu0 %v43
  %850 = vmatpush.msra.mxu0 %v42
  %851 = vmatpush.msra.mxu0 %v41
  %852 = vmatpush.msra.mxu0 %v40
  %853 = vmatmul.f32.gmra.mxu0 %v835
  %v854 = vpop.f32.mrf.mxu0
  %v855 = vadd.f32 %v54, %v854
  %856 = vdwg.mxu0
  %v857 = vmul.f32 %v778, -0.5
  %v858 = vmul.f32 %v778, 0.5
  %860 = vrot.lane.b32.xlu0 %v857, 127
  %v861 = vpop.permute.xlu0 %860
  %864 = vrot.lane.b32.xlu0 %v858, 1
  %v865 = vpop.permute.xlu0 %864
  %v867 = vsel %vm150, %v861, %v865
  %v868 = vadd.f32 %v855, %v867
  %v869 = vstv %s784
  %v870 = vmul.f32 %v869, %v868
  %v871 = vadd.f32 %v778, %v870
  %v873 = vsel %vm57, %v871, 0
  %875 = vmatpush.msra.mxu0 0.0
  %876 = vmatpush.msra.mxu0 0.0
  %877 = vmatpush.msra.mxu0 0.0
  %878 = vmatpush.msra.mxu0 0.0
  %879 = vmatpush.msra.mxu0 0.0
  %880 = vmatpush.msra.mxu0 0.0
  %881 = vmatpush.msra.mxu0 0.0
  %882 = vmatpush.msra.mxu0 0.0
  %883 = vmatpush.msra.mxu0 0.0
  %884 = vmatpush.msra.mxu0 0.0
  %885 = vmatpush.msra.mxu0 0.0
  %886 = vmatpush.msra.mxu0 0.0
  %887 = vmatpush.msra.mxu0 0.0
  %888 = vmatpush.msra.mxu0 0.0
  %889 = vmatpush.msra.mxu0 0.0
  %890 = vmatpush.msra.mxu0 %v69
  %891 = vmatmul.f32.gmra.mxu0 %v873
  %v892 = vpop.f32.mrf.mxu0
  %v893 = vadd.f32 %v46, %v892
  %894 = vdwg.mxu0
  %v895 = vtanh.pop %v893
  %v897 = vsel %vm92, %v895, 0
  %899 = vmatpush.msra.mxu0 0.0
  %900 = vmatpush.msra.mxu0 0.0
  %901 = vmatpush.msra.mxu0 0.0
  %902 = vmatpush.msra.mxu0 0.0
  %903 = vmatpush.msra.mxu0 0.0
  %904 = vmatpush.msra.mxu0 0.0
  %905 = vmatpush.msra.mxu0 0.0
  %906 = vmatpush.msra.mxu0 0.0
  %907 = vmatpush.msra.mxu0 0.0
  %908 = vmatpush.msra.mxu0 0.0
  %909 = vmatpush.msra.mxu0 0.0
  %910 = vmatpush.msra.mxu0 0.0
  %911 = vmatpush.msra.mxu0 %v39
  %912 = vmatpush.msra.mxu0 %v38
  %913 = vmatpush.msra.mxu0 %v37
  %914 = vmatpush.msra.mxu0 %v36
  %915 = vmatmul.f32.gmra.mxu0 %v897
  %v916 = vpop.f32.mrf.mxu0
  %v917 = vadd.f32 %v50, %v916
  %918 = vdwg.mxu0
  %v919 = vtanh.pop %v917
  %v921 = vsel %vm92, %v919, 0
  %923 = vmatpush.msra.mxu0 0.0
  %924 = vmatpush.msra.mxu0 0.0
  %925 = vmatpush.msra.mxu0 0.0
  %926 = vmatpush.msra.mxu0 0.0
  %927 = vmatpush.msra.mxu0 0.0
  %928 = vmatpush.msra.mxu0 0.0
  %929 = vmatpush.msra.mxu0 0.0
  %930 = vmatpush.msra.mxu0 0.0
  %931 = vmatpush.msra.mxu0 0.0
  %932 = vmatpush.msra.mxu0 0.0
  %933 = vmatpush.msra.mxu0 0.0
  %934 = vmatpush.msra.mxu0 0.0
  %935 = vmatpush.msra.mxu0 %v43
  %936 = vmatpush.msra.mxu0 %v42
  %937 = vmatpush.msra.mxu0 %v41
  %938 = vmatpush.msra.mxu0 %v40
  %939 = vmatmul.f32.gmra.mxu0 %v921
  %v940 = vpop.f32.mrf.mxu0
  %v941 = vadd.f32 %v54, %v940
  %942 = vdwg.mxu0
  %v943 = vmul.f32 %v871, -0.5
  %v944 = vmul.f32 %v871, 0.5
  %946 = vrot.lane.b32.xlu0 %v943, 127
  %v947 = vpop.permute.xlu0 %946
  %950 = vrot.lane.b32.xlu0 %v944, 1
  %v951 = vpop.permute.xlu0 %950
  %v953 = vsel %vm150, %v947, %v951
  %v954 = vadd.f32 %v941, %v953
  %v955 = vstv %s783
  %v956 = vmul.f32 %v955, %v954
  %v957 = vsub.f32 %v956, %v870
  %v958 = vadd.f32 %v778, %v957
  %v960 = vsel %vm57, %v958, 0
  %962 = vmatpush.msra.mxu0 0.0
  %963 = vmatpush.msra.mxu0 0.0
  %964 = vmatpush.msra.mxu0 0.0
  %965 = vmatpush.msra.mxu0 0.0
  %966 = vmatpush.msra.mxu0 0.0
  %967 = vmatpush.msra.mxu0 0.0
  %968 = vmatpush.msra.mxu0 0.0
  %969 = vmatpush.msra.mxu0 0.0
  %970 = vmatpush.msra.mxu0 0.0
  %971 = vmatpush.msra.mxu0 0.0
  %972 = vmatpush.msra.mxu0 0.0
  %973 = vmatpush.msra.mxu0 0.0
  %974 = vmatpush.msra.mxu0 0.0
  %975 = vmatpush.msra.mxu0 0.0
  %976 = vmatpush.msra.mxu0 0.0
  %977 = vmatpush.msra.mxu0 %v69
  %978 = vmatmul.f32.gmra.mxu0 %v960
  %v979 = vpop.f32.mrf.mxu0
  %v980 = vadd.f32 %v46, %v979
  %981 = vdwg.mxu0
  %v982 = vtanh.pop %v980
  %v984 = vsel %vm92, %v982, 0
  %986 = vmatpush.msra.mxu0 0.0
  %987 = vmatpush.msra.mxu0 0.0
  %988 = vmatpush.msra.mxu0 0.0
  %989 = vmatpush.msra.mxu0 0.0
  %990 = vmatpush.msra.mxu0 0.0
  %991 = vmatpush.msra.mxu0 0.0
  %992 = vmatpush.msra.mxu0 0.0
  %993 = vmatpush.msra.mxu0 0.0
  %994 = vmatpush.msra.mxu0 0.0
  %995 = vmatpush.msra.mxu0 0.0
  %996 = vmatpush.msra.mxu0 0.0
  %997 = vmatpush.msra.mxu0 0.0
  %998 = vmatpush.msra.mxu0 %v39
  %999 = vmatpush.msra.mxu0 %v38
  %1000 = vmatpush.msra.mxu0 %v37
  %1001 = vmatpush.msra.mxu0 %v36
  %1002 = vmatmul.f32.gmra.mxu0 %v984
  %v1003 = vpop.f32.mrf.mxu0
  %v1004 = vadd.f32 %v50, %v1003
  %1005 = vdwg.mxu0
  %v1006 = vtanh.pop %v1004
  %v1008 = vsel %vm92, %v1006, 0
  %1010 = vmatpush.msra.mxu0 0.0
  %1011 = vmatpush.msra.mxu0 0.0
  %1012 = vmatpush.msra.mxu0 0.0
  %1013 = vmatpush.msra.mxu0 0.0
  %1014 = vmatpush.msra.mxu0 0.0
  %1015 = vmatpush.msra.mxu0 0.0
  %1016 = vmatpush.msra.mxu0 0.0
  %1017 = vmatpush.msra.mxu0 0.0
  %1018 = vmatpush.msra.mxu0 0.0
  %1019 = vmatpush.msra.mxu0 0.0
  %1020 = vmatpush.msra.mxu0 0.0
  %1021 = vmatpush.msra.mxu0 0.0
  %1022 = vmatpush.msra.mxu0 %v43
  %1023 = vmatpush.msra.mxu0 %v42
  %1024 = vmatpush.msra.mxu0 %v41
  %1025 = vmatpush.msra.mxu0 %v40
  %1026 = vmatmul.f32.gmra.mxu0 %v1008
  %v1027 = vpop.f32.mrf.mxu0
  %v1028 = vadd.f32 %v54, %v1027
  %1029 = vdwg.mxu0
  %v1030 = vmul.f32 %v958, -0.5
  %v1031 = vmul.f32 %v958, 0.5
  %1033 = vrot.lane.b32.xlu0 %v1030, 127
  %v1034 = vpop.permute.xlu0 %1033
  %1037 = vrot.lane.b32.xlu0 %v1031, 1
  %v1038 = vpop.permute.xlu0 %1037
  %v1040 = vsel %vm150, %v1034, %v1038
  %v1041 = vadd.f32 %v1028, %v1040
  %v1042 = vmul.f32 %v870, 3.0
  %v1043 = vsub.f32 %v1042, %v956
  %v1044 = vmul.f32 %v955, %v1041
  %v1045 = vadd.f32 %v1043, %v1044
  %v1046 = vadd.f32 %v778, %v1045
  %v1048 = vsel %vm57, %v1046, 0
  %1050 = vmatpush.msra.mxu0 0.0
  %1051 = vmatpush.msra.mxu0 0.0
  %1052 = vmatpush.msra.mxu0 0.0
  %1053 = vmatpush.msra.mxu0 0.0
  %1054 = vmatpush.msra.mxu0 0.0
  %1055 = vmatpush.msra.mxu0 0.0
  %1056 = vmatpush.msra.mxu0 0.0
  %1057 = vmatpush.msra.mxu0 0.0
  %1058 = vmatpush.msra.mxu0 0.0
  %1059 = vmatpush.msra.mxu0 0.0
  %1060 = vmatpush.msra.mxu0 0.0
  %1061 = vmatpush.msra.mxu0 0.0
  %1062 = vmatpush.msra.mxu0 0.0
  %1063 = vmatpush.msra.mxu0 0.0
  %1064 = vmatpush.msra.mxu0 0.0
  %1065 = vmatpush.msra.mxu0 %v69
  %1066 = vmatmul.f32.gmra.mxu0 %v1048
  %v1067 = vpop.f32.mrf.mxu0
  %v1068 = vadd.f32 %v46, %v1067
  %1069 = vdwg.mxu0
  %v1070 = vtanh.pop %v1068
  %v1072 = vsel %vm92, %v1070, 0
  %1074 = vmatpush.msra.mxu0 0.0
  %1075 = vmatpush.msra.mxu0 0.0
  %1076 = vmatpush.msra.mxu0 0.0
  %1077 = vmatpush.msra.mxu0 0.0
  %1078 = vmatpush.msra.mxu0 0.0
  %1079 = vmatpush.msra.mxu0 0.0
  %1080 = vmatpush.msra.mxu0 0.0
  %1081 = vmatpush.msra.mxu0 0.0
  %1082 = vmatpush.msra.mxu0 0.0
  %1083 = vmatpush.msra.mxu0 0.0
  %1084 = vmatpush.msra.mxu0 0.0
  %1085 = vmatpush.msra.mxu0 0.0
  %1086 = vmatpush.msra.mxu0 %v39
  %1087 = vmatpush.msra.mxu0 %v38
  %1088 = vmatpush.msra.mxu0 %v37
  %1089 = vmatpush.msra.mxu0 %v36
  %1090 = vmatmul.f32.gmra.mxu0 %v1072
  %v1091 = vpop.f32.mrf.mxu0
  %v1092 = vadd.f32 %v50, %v1091
  %1093 = vdwg.mxu0
  %v1094 = vtanh.pop %v1092
  %v1096 = vsel %vm92, %v1094, 0
  %1098 = vmatpush.msra.mxu0 0.0
  %1099 = vmatpush.msra.mxu0 0.0
  %1100 = vmatpush.msra.mxu0 0.0
  %1101 = vmatpush.msra.mxu0 0.0
  %1102 = vmatpush.msra.mxu0 0.0
  %1103 = vmatpush.msra.mxu0 0.0
  %1104 = vmatpush.msra.mxu0 0.0
  %1105 = vmatpush.msra.mxu0 0.0
  %1106 = vmatpush.msra.mxu0 0.0
  %1107 = vmatpush.msra.mxu0 0.0
  %1108 = vmatpush.msra.mxu0 0.0
  %1109 = vmatpush.msra.mxu0 0.0
  %1110 = vmatpush.msra.mxu0 %v43
  %1111 = vmatpush.msra.mxu0 %v42
  %1112 = vmatpush.msra.mxu0 %v41
  %1113 = vmatpush.msra.mxu0 %v40
  %1114 = vmatmul.f32.gmra.mxu0 %v1096
  %v1115 = vpop.f32.mrf.mxu0
  %v1116 = vadd.f32 %v54, %v1115
  %1117 = vdwg.mxu0
  %v1118 = vmul.f32 %v1046, -0.5
  %v1119 = vmul.f32 %v1046, 0.5
  %1121 = vrot.lane.b32.xlu0 %v1118, 127
  %v1122 = vpop.permute.xlu0 %1121
  %1125 = vrot.lane.b32.xlu0 %v1119, 1
  %v1126 = vpop.permute.xlu0 %1125
  %v1128 = vsel %vm150, %v1122, %v1126
  %v1129 = vadd.f32 %v1116, %v1128
  %v1130 = vadd.f32 %v954, %v1041
  %v1131 = vmul.f32 %v1130, 3.0
  %v1132 = vadd.f32 %v868, %v1131
  %v1133 = vadd.f32 %v1132, %v1129
  %v1134 = vstv %s785
  %v1135 = vmul.f32 %v1134, %v1133
  %v1136 = vadd.f32 %v778, %v1135
  %s1137 = scalar_lea.vmem %s8, 24
  %1138 = vst.msk [vmem:[%s1137] sm:$0xff] %vm57, %v1136
  %s1139 = sld [smem:[#allocation3 + $0x4]]
  %s1140 = sld [smem:[#allocation3 + $0x3]]
  %s1141 = ssub.f32 %s1139, %s1140
  %s1142 = smul.f32 %s1141, 0.33333334
  %s1143 = smul.f32 %s1141, 0.125
  %v1145 = vsel %vm57, %v1136, 0
  %1147 = vmatpush.msra.mxu0 0.0
  %1148 = vmatpush.msra.mxu0 0.0
  %1149 = vmatpush.msra.mxu0 0.0
  %1150 = vmatpush.msra.mxu0 0.0
  %1151 = vmatpush.msra.mxu0 0.0
  %1152 = vmatpush.msra.mxu0 0.0
  %1153 = vmatpush.msra.mxu0 0.0
  %1154 = vmatpush.msra.mxu0 0.0
  %1155 = vmatpush.msra.mxu0 0.0
  %1156 = vmatpush.msra.mxu0 0.0
  %1157 = vmatpush.msra.mxu0 0.0
  %1158 = vmatpush.msra.mxu0 0.0
  %1159 = vmatpush.msra.mxu0 0.0
  %1160 = vmatpush.msra.mxu0 0.0
  %1161 = vmatpush.msra.mxu0 0.0
  %1162 = vmatpush.msra.mxu0 %v69
  %1163 = vmatmul.f32.gmra.mxu0 %v1145
  %v1164 = vpop.f32.mrf.mxu0
  %v1165 = vadd.f32 %v46, %v1164
  %1166 = vdwg.mxu0
  %v1167 = vtanh.pop %v1165
  %v1169 = vsel %vm92, %v1167, 0
  %1171 = vmatpush.msra.mxu0 0.0
  %1172 = vmatpush.msra.mxu0 0.0
  %1173 = vmatpush.msra.mxu0 0.0
  %1174 = vmatpush.msra.mxu0 0.0
  %1175 = vmatpush.msra.mxu0 0.0
  %1176 = vmatpush.msra.mxu0 0.0
  %1177 = vmatpush.msra.mxu0 0.0
  %1178 = vmatpush.msra.mxu0 0.0
  %1179 = vmatpush.msra.mxu0 0.0
  %1180 = vmatpush.msra.mxu0 0.0
  %1181 = vmatpush.msra.mxu0 0.0
  %1182 = vmatpush.msra.mxu0 0.0
  %1183 = vmatpush.msra.mxu0 %v39
  %1184 = vmatpush.msra.mxu0 %v38
  %1185 = vmatpush.msra.mxu0 %v37
  %1186 = vmatpush.msra.mxu0 %v36
  %1187 = vmatmul.f32.gmra.mxu0 %v1169
  %v1188 = vpop.f32.mrf.mxu0
  %v1189 = vadd.f32 %v50, %v1188
  %1190 = vdwg.mxu0
  %v1191 = vtanh.pop %v1189
  %v1193 = vsel %vm92, %v1191, 0
  %1195 = vmatpush.msra.mxu0 0.0
  %1196 = vmatpush.msra.mxu0 0.0
  %1197 = vmatpush.msra.mxu0 0.0
  %1198 = vmatpush.msra.mxu0 0.0
  %1199 = vmatpush.msra.mxu0 0.0
  %1200 = vmatpush.msra.mxu0 0.0
  %1201 = vmatpush.msra.mxu0 0.0
  %1202 = vmatpush.msra.mxu0 0.0
  %1203 = vmatpush.msra.mxu0 0.0
  %1204 = vmatpush.msra.mxu0 0.0
  %1205 = vmatpush.msra.mxu0 0.0
  %1206 = vmatpush.msra.mxu0 0.0
  %1207 = vmatpush.msra.mxu0 %v43
  %1208 = vmatpush.msra.mxu0 %v42
  %1209 = vmatpush.msra.mxu0 %v41
  %1210 = vmatpush.msra.mxu0 %v40
  %1211 = vmatmul.f32.gmra.mxu0 %v1193
  %v1212 = vpop.f32.mrf.mxu0
  %v1213 = vadd.f32 %v54, %v1212
  %1214 = vdwg.mxu0
  %v1215 = vmul.f32 %v1136, -0.5
  %v1216 = vmul.f32 %v1136, 0.5
  %1218 = vrot.lane.b32.xlu0 %v1215, 127
  %v1219 = vpop.permute.xlu0 %1218
  %1222 = vrot.lane.b32.xlu0 %v1216, 1
  %v1223 = vpop.permute.xlu0 %1222
  %v1225 = vsel %vm150, %v1219, %v1223
  %v1226 = vadd.f32 %v1213, %v1225
  %v1227 = vstv %s1142
  %v1228 = vmul.f32 %v1227, %v1226
  %v1229 = vadd.f32 %v1136, %v1228
  %v1231 = vsel %vm57, %v1229, 0
  %1233 = vmatpush.msra.mxu0 0.0
  %1234 = vmatpush.msra.mxu0 0.0
  %1235 = vmatpush.msra.mxu0 0.0
  %1236 = vmatpush.msra.mxu0 0.0
  %1237 = vmatpush.msra.mxu0 0.0
  %1238 = vmatpush.msra.mxu0 0.0
  %1239 = vmatpush.msra.mxu0 0.0
  %1240 = vmatpush.msra.mxu0 0.0
  %1241 = vmatpush.msra.mxu0 0.0
  %1242 = vmatpush.msra.mxu0 0.0
  %1243 = vmatpush.msra.mxu0 0.0
  %1244 = vmatpush.msra.mxu0 0.0
  %1245 = vmatpush.msra.mxu0 0.0
  %1246 = vmatpush.msra.mxu0 0.0
  %1247 = vmatpush.msra.mxu0 0.0
  %1248 = vmatpush.msra.mxu0 %v69
  %1249 = vmatmul.f32.gmra.mxu0 %v1231
  %v1250 = vpop.f32.mrf.mxu0
  %v1251 = vadd.f32 %v46, %v1250
  %1252 = vdwg.mxu0
  %v1253 = vtanh.pop %v1251
  %v1255 = vsel %vm92, %v1253, 0
  %1257 = vmatpush.msra.mxu0 0.0
  %1258 = vmatpush.msra.mxu0 0.0
  %1259 = vmatpush.msra.mxu0 0.0
  %1260 = vmatpush.msra.mxu0 0.0
  %1261 = vmatpush.msra.mxu0 0.0
  %1262 = vmatpush.msra.mxu0 0.0
  %1263 = vmatpush.msra.mxu0 0.0
  %1264 = vmatpush.msra.mxu0 0.0
  %1265 = vmatpush.msra.mxu0 0.0
  %1266 = vmatpush.msra.mxu0 0.0
  %1267 = vmatpush.msra.mxu0 0.0
  %1268 = vmatpush.msra.mxu0 0.0
  %1269 = vmatpush.msra.mxu0 %v39
  %1270 = vmatpush.msra.mxu0 %v38
  %1271 = vmatpush.msra.mxu0 %v37
  %1272 = vmatpush.msra.mxu0 %v36
  %1273 = vmatmul.f32.gmra.mxu0 %v1255
  %v1274 = vpop.f32.mrf.mxu0
  %v1275 = vadd.f32 %v50, %v1274
  %1276 = vdwg.mxu0
  %v1277 = vtanh.pop %v1275
  %v1279 = vsel %vm92, %v1277, 0
  %1281 = vmatpush.msra.mxu0 0.0
  %1282 = vmatpush.msra.mxu0 0.0
  %1283 = vmatpush.msra.mxu0 0.0
  %1284 = vmatpush.msra.mxu0 0.0
  %1285 = vmatpush.msra.mxu0 0.0
  %1286 = vmatpush.msra.mxu0 0.0
  %1287 = vmatpush.msra.mxu0 0.0
  %1288 = vmatpush.msra.mxu0 0.0
  %1289 = vmatpush.msra.mxu0 0.0
  %1290 = vmatpush.msra.mxu0 0.0
  %1291 = vmatpush.msra.mxu0 0.0
  %1292 = vmatpush.msra.mxu0 0.0
  %1293 = vmatpush.msra.mxu0 %v43
  %1294 = vmatpush.msra.mxu0 %v42
  %1295 = vmatpush.msra.mxu0 %v41
  %1296 = vmatpush.msra.mxu0 %v40
  %1297 = vmatmul.f32.gmra.mxu0 %v1279
  %v1298 = vpop.f32.mrf.mxu0
  %v1299 = vadd.f32 %v54, %v1298
  %1300 = vdwg.mxu0
  %v1301 = vmul.f32 %v1229, -0.5
  %v1302 = vmul.f32 %v1229, 0.5
  %1304 = vrot.lane.b32.xlu0 %v1301, 127
  %v1305 = vpop.permute.xlu0 %1304
  %1308 = vrot.lane.b32.xlu0 %v1302, 1
  %v1309 = vpop.permute.xlu0 %1308
  %v1311 = vsel %vm150, %v1305, %v1309
  %v1312 = vadd.f32 %v1299, %v1311
  %v1313 = vstv %s1141
  %v1314 = vmul.f32 %v1313, %v1312
  %v1315 = vsub.f32 %v1314, %v1228
  %v1316 = vadd.f32 %v1136, %v1315
  %v1318 = vsel %vm57, %v1316, 0
  %1320 = vmatpush.msra.mxu0 0.0
  %1321 = vmatpush.msra.mxu0 0.0
  %1322 = vmatpush.msra.mxu0 0.0
  %1323 = vmatpush.msra.mxu0 0.0
  %1324 = vmatpush.msra.mxu0 0.0
  %1325 = vmatpush.msra.mxu0 0.0
  %1326 = vmatpush.msra.mxu0 0.0
  %1327 = vmatpush.msra.mxu0 0.0
  %1328 = vmatpush.msra.mxu0 0.0
  %1329 = vmatpush.msra.mxu0 0.0
  %1330 = vmatpush.msra.mxu0 0.0
  %1331 = vmatpush.msra.mxu0 0.0
  %1332 = vmatpush.msra.mxu0 0.0
  %1333 = vmatpush.msra.mxu0 0.0
  %1334 = vmatpush.msra.mxu0 0.0
  %1335 = vmatpush.msra.mxu0 %v69
  %1336 = vmatmul.f32.gmra.mxu0 %v1318
  %v1337 = vpop.f32.mrf.mxu0
  %v1338 = vadd.f32 %v46, %v1337
  %1339 = vdwg.mxu0
  %v1340 = vtanh.pop %v1338
  %v1342 = vsel %vm92, %v1340, 0
  %1344 = vmatpush.msra.mxu0 0.0
  %1345 = vmatpush.msra.mxu0 0.0
  %1346 = vmatpush.msra.mxu0 0.0
  %1347 = vmatpush.msra.mxu0 0.0
  %1348 = vmatpush.msra.mxu0 0.0
  %1349 = vmatpush.msra.mxu0 0.0
  %1350 = vmatpush.msra.mxu0 0.0
  %1351 = vmatpush.msra.mxu0 0.0
  %1352 = vmatpush.msra.mxu0 0.0
  %1353 = vmatpush.msra.mxu0 0.0
  %1354 = vmatpush.msra.mxu0 0.0
  %1355 = vmatpush.msra.mxu0 0.0
  %1356 = vmatpush.msra.mxu0 %v39
  %1357 = vmatpush.msra.mxu0 %v38
  %1358 = vmatpush.msra.mxu0 %v37
  %1359 = vmatpush.msra.mxu0 %v36
  %1360 = vmatmul.f32.gmra.mxu0 %v1342
  %v1361 = vpop.f32.mrf.mxu0
  %v1362 = vadd.f32 %v50, %v1361
  %1363 = vdwg.mxu0
  %v1364 = vtanh.pop %v1362
  %v1366 = vsel %vm92, %v1364, 0
  %1368 = vmatpush.msra.mxu0 0.0
  %1369 = vmatpush.msra.mxu0 0.0
  %1370 = vmatpush.msra.mxu0 0.0
  %1371 = vmatpush.msra.mxu0 0.0
  %1372 = vmatpush.msra.mxu0 0.0
  %1373 = vmatpush.msra.mxu0 0.0
  %1374 = vmatpush.msra.mxu0 0.0
  %1375 = vmatpush.msra.mxu0 0.0
  %1376 = vmatpush.msra.mxu0 0.0
  %1377 = vmatpush.msra.mxu0 0.0
  %1378 = vmatpush.msra.mxu0 0.0
  %1379 = vmatpush.msra.mxu0 0.0
  %1380 = vmatpush.msra.mxu0 %v43
  %1381 = vmatpush.msra.mxu0 %v42
  %1382 = vmatpush.msra.mxu0 %v41
  %1383 = vmatpush.msra.mxu0 %v40
  %1384 = vmatmul.f32.gmra.mxu0 %v1366
  %v1385 = vpop.f32.mrf.mxu0
  %v1386 = vadd.f32 %v54, %v1385
  %1387 = vdwg.mxu0
  %v1388 = vmul.f32 %v1316, -0.5
  %v1389 = vmul.f32 %v1316, 0.5
  %1391 = vrot.lane.b32.xlu0 %v1388, 127
  %v1392 = vpop.permute.xlu0 %1391
  %1395 = vrot.lane.b32.xlu0 %v1389, 1
  %v1396 = vpop.permute.xlu0 %1395
  %v1398 = vsel %vm150, %v1392, %v1396
  %v1399 = vadd.f32 %v1386, %v1398
  %v1400 = vmul.f32 %v1228, 3.0
  %v1401 = vsub.f32 %v1400, %v1314
  %v1402 = vmul.f32 %v1313, %v1399
  %v1403 = vadd.f32 %v1401, %v1402
  %v1404 = vadd.f32 %v1136, %v1403
  %v1406 = vsel %vm57, %v1404, 0
  %1408 = vmatpush.msra.mxu0 0.0
  %1409 = vmatpush.msra.mxu0 0.0
  %1410 = vmatpush.msra.mxu0 0.0
  %1411 = vmatpush.msra.mxu0 0.0
  %1412 = vmatpush.msra.mxu0 0.0
  %1413 = vmatpush.msra.mxu0 0.0
  %1414 = vmatpush.msra.mxu0 0.0
  %1415 = vmatpush.msra.mxu0 0.0
  %1416 = vmatpush.msra.mxu0 0.0
  %1417 = vmatpush.msra.mxu0 0.0
  %1418 = vmatpush.msra.mxu0 0.0
  %1419 = vmatpush.msra.mxu0 0.0
  %1420 = vmatpush.msra.mxu0 0.0
  %1421 = vmatpush.msra.mxu0 0.0
  %1422 = vmatpush.msra.mxu0 0.0
  %1423 = vmatpush.msra.mxu0 %v69
  %1424 = vmatmul.f32.gmra.mxu0 %v1406
  %v1425 = vpop.f32.mrf.mxu0
  %v1426 = vadd.f32 %v46, %v1425
  %1427 = vdwg.mxu0
  %v1428 = vtanh.pop %v1426
  %v1430 = vsel %vm92, %v1428, 0
  %1432 = vmatpush.msra.mxu0 0.0
  %1433 = vmatpush.msra.mxu0 0.0
  %1434 = vmatpush.msra.mxu0 0.0
  %1435 = vmatpush.msra.mxu0 0.0
  %1436 = vmatpush.msra.mxu0 0.0
  %1437 = vmatpush.msra.mxu0 0.0
  %1438 = vmatpush.msra.mxu0 0.0
  %1439 = vmatpush.msra.mxu0 0.0
  %1440 = vmatpush.msra.mxu0 0.0
  %1441 = vmatpush.msra.mxu0 0.0
  %1442 = vmatpush.msra.mxu0 0.0
  %1443 = vmatpush.msra.mxu0 0.0
  %1444 = vmatpush.msra.mxu0 %v39
  %1445 = vmatpush.msra.mxu0 %v38
  %1446 = vmatpush.msra.mxu0 %v37
  %1447 = vmatpush.msra.mxu0 %v36
  %1448 = vmatmul.f32.gmra.mxu0 %v1430
  %v1449 = vpop.f32.mrf.mxu0
  %v1450 = vadd.f32 %v50, %v1449
  %1451 = vdwg.mxu0
  %v1452 = vtanh.pop %v1450
  %v1454 = vsel %vm92, %v1452, 0
  %1456 = vmatpush.msra.mxu0 0.0
  %1457 = vmatpush.msra.mxu0 0.0
  %1458 = vmatpush.msra.mxu0 0.0
  %1459 = vmatpush.msra.mxu0 0.0
  %1460 = vmatpush.msra.mxu0 0.0
  %1461 = vmatpush.msra.mxu0 0.0
  %1462 = vmatpush.msra.mxu0 0.0
  %1463 = vmatpush.msra.mxu0 0.0
  %1464 = vmatpush.msra.mxu0 0.0
  %1465 = vmatpush.msra.mxu0 0.0
  %1466 = vmatpush.msra.mxu0 0.0
  %1467 = vmatpush.msra.mxu0 0.0
  %1468 = vmatpush.msra.mxu0 %v43
  %1469 = vmatpush.msra.mxu0 %v42
  %1470 = vmatpush.msra.mxu0 %v41
  %1471 = vmatpush.msra.mxu0 %v40
  %1472 = vmatmul.f32.gmra.mxu0 %v1454
  %v1473 = vpop.f32.mrf.mxu0
  %v1474 = vadd.f32 %v54, %v1473
  %1475 = vdwg.mxu0
  %v1476 = vmul.f32 %v1404, -0.5
  %v1477 = vmul.f32 %v1404, 0.5
  %1479 = vrot.lane.b32.xlu0 %v1476, 127
  %v1480 = vpop.permute.xlu0 %1479
  %1483 = vrot.lane.b32.xlu0 %v1477, 1
  %v1484 = vpop.permute.xlu0 %1483
  %v1486 = vsel %vm150, %v1480, %v1484
  %v1487 = vadd.f32 %v1474, %v1486
  %v1488 = vadd.f32 %v1312, %v1399
  %v1489 = vmul.f32 %v1488, 3.0
  %v1490 = vadd.f32 %v1226, %v1489
  %v1491 = vadd.f32 %v1490, %v1487
  %v1492 = vstv %s1143
  %v1493 = vmul.f32 %v1492, %v1491
  %v1494 = vadd.f32 %v1136, %v1493
  %s1495 = scalar_lea.vmem %s8, 32
  %1496 = vst.msk [vmem:[%s1495] sm:$0xff] %vm57, %v1494
  %s1497 = sld [smem:[#allocation3 + $0x5]]
  %s1498 = sld [smem:[#allocation3 + $0x4]]
  %s1499 = ssub.f32 %s1497, %s1498
  %s1500 = smul.f32 %s1499, 0.33333334
  %s1501 = smul.f32 %s1499, 0.125
  %v1503 = vsel %vm57, %v1494, 0
  %1505 = vmatpush.msra.mxu0 0.0
  %1506 = vmatpush.msra.mxu0 0.0
  %1507 = vmatpush.msra.mxu0 0.0
  %1508 = vmatpush.msra.mxu0 0.0
  %1509 = vmatpush.msra.mxu0 0.0
  %1510 = vmatpush.msra.mxu0 0.0
  %1511 = vmatpush.msra.mxu0 0.0
  %1512 = vmatpush.msra.mxu0 0.0
  %1513 = vmatpush.msra.mxu0 0.0
  %1514 = vmatpush.msra.mxu0 0.0
  %1515 = vmatpush.msra.mxu0 0.0
  %1516 = vmatpush.msra.mxu0 0.0
  %1517 = vmatpush.msra.mxu0 0.0
  %1518 = vmatpush.msra.mxu0 0.0
  %1519 = vmatpush.msra.mxu0 0.0
  %1520 = vmatpush.msra.mxu0 %v69
  %1521 = vmatmul.f32.gmra.mxu0 %v1503
  %v1522 = vpop.f32.mrf.mxu0
  %v1523 = vadd.f32 %v46, %v1522
  %1524 = vdwg.mxu0
  %v1525 = vtanh.pop %v1523
  %v1527 = vsel %vm92, %v1525, 0
  %1529 = vmatpush.msra.mxu0 0.0
  %1530 = vmatpush.msra.mxu0 0.0
  %1531 = vmatpush.msra.mxu0 0.0
  %1532 = vmatpush.msra.mxu0 0.0
  %1533 = vmatpush.msra.mxu0 0.0
  %1534 = vmatpush.msra.mxu0 0.0
  %1535 = vmatpush.msra.mxu0 0.0
  %1536 = vmatpush.msra.mxu0 0.0
  %1537 = vmatpush.msra.mxu0 0.0
  %1538 = vmatpush.msra.mxu0 0.0
  %1539 = vmatpush.msra.mxu0 0.0
  %1540 = vmatpush.msra.mxu0 0.0
  %1541 = vmatpush.msra.mxu0 %v39
  %1542 = vmatpush.msra.mxu0 %v38
  %1543 = vmatpush.msra.mxu0 %v37
  %1544 = vmatpush.msra.mxu0 %v36
  %1545 = vmatmul.f32.gmra.mxu0 %v1527
  %v1546 = vpop.f32.mrf.mxu0
  %v1547 = vadd.f32 %v50, %v1546
  %1548 = vdwg.mxu0
  %v1549 = vtanh.pop %v1547
  %v1551 = vsel %vm92, %v1549, 0
  %1553 = vmatpush.msra.mxu0 0.0
  %1554 = vmatpush.msra.mxu0 0.0
  %1555 = vmatpush.msra.mxu0 0.0
  %1556 = vmatpush.msra.mxu0 0.0
  %1557 = vmatpush.msra.mxu0 0.0
  %1558 = vmatpush.msra.mxu0 0.0
  %1559 = vmatpush.msra.mxu0 0.0
  %1560 = vmatpush.msra.mxu0 0.0
  %1561 = vmatpush.msra.mxu0 0.0
  %1562 = vmatpush.msra.mxu0 0.0
  %1563 = vmatpush.msra.mxu0 0.0
  %1564 = vmatpush.msra.mxu0 0.0
  %1565 = vmatpush.msra.mxu0 %v43
  %1566 = vmatpush.msra.mxu0 %v42
  %1567 = vmatpush.msra.mxu0 %v41
  %1568 = vmatpush.msra.mxu0 %v40
  %1569 = vmatmul.f32.gmra.mxu0 %v1551
  %v1570 = vpop.f32.mrf.mxu0
  %v1571 = vadd.f32 %v54, %v1570
  %1572 = vdwg.mxu0
  %v1573 = vmul.f32 %v1494, -0.5
  %v1574 = vmul.f32 %v1494, 0.5
  %1576 = vrot.lane.b32.xlu0 %v1573, 127
  %v1577 = vpop.permute.xlu0 %1576
  %1580 = vrot.lane.b32.xlu0 %v1574, 1
  %v1581 = vpop.permute.xlu0 %1580
  %v1583 = vsel %vm150, %v1577, %v1581
  %v1584 = vadd.f32 %v1571, %v1583
  %v1585 = vstv %s1500
  %v1586 = vmul.f32 %v1585, %v1584
  %v1587 = vadd.f32 %v1494, %v1586
  %v1589 = vsel %vm57, %v1587, 0
  %1591 = vmatpush.msra.mxu0 0.0
  %1592 = vmatpush.msra.mxu0 0.0
  %1593 = vmatpush.msra.mxu0 0.0
  %1594 = vmatpush.msra.mxu0 0.0
  %1595 = vmatpush.msra.mxu0 0.0
  %1596 = vmatpush.msra.mxu0 0.0
  %1597 = vmatpush.msra.mxu0 0.0
  %1598 = vmatpush.msra.mxu0 0.0
  %1599 = vmatpush.msra.mxu0 0.0
  %1600 = vmatpush.msra.mxu0 0.0
  %1601 = vmatpush.msra.mxu0 0.0
  %1602 = vmatpush.msra.mxu0 0.0
  %1603 = vmatpush.msra.mxu0 0.0
  %1604 = vmatpush.msra.mxu0 0.0
  %1605 = vmatpush.msra.mxu0 0.0
  %1606 = vmatpush.msra.mxu0 %v69
  %1607 = vmatmul.f32.gmra.mxu0 %v1589
  %v1608 = vpop.f32.mrf.mxu0
  %v1609 = vadd.f32 %v46, %v1608
  %1610 = vdwg.mxu0
  %v1611 = vtanh.pop %v1609
  %v1613 = vsel %vm92, %v1611, 0
  %1615 = vmatpush.msra.mxu0 0.0
  %1616 = vmatpush.msra.mxu0 0.0
  %1617 = vmatpush.msra.mxu0 0.0
  %1618 = vmatpush.msra.mxu0 0.0
  %1619 = vmatpush.msra.mxu0 0.0
  %1620 = vmatpush.msra.mxu0 0.0
  %1621 = vmatpush.msra.mxu0 0.0
  %1622 = vmatpush.msra.mxu0 0.0
  %1623 = vmatpush.msra.mxu0 0.0
  %1624 = vmatpush.msra.mxu0 0.0
  %1625 = vmatpush.msra.mxu0 0.0
  %1626 = vmatpush.msra.mxu0 0.0
  %1627 = vmatpush.msra.mxu0 %v39
  %1628 = vmatpush.msra.mxu0 %v38
  %1629 = vmatpush.msra.mxu0 %v37
  %1630 = vmatpush.msra.mxu0 %v36
  %1631 = vmatmul.f32.gmra.mxu0 %v1613
  %v1632 = vpop.f32.mrf.mxu0
  %v1633 = vadd.f32 %v50, %v1632
  %1634 = vdwg.mxu0
  %v1635 = vtanh.pop %v1633
  %v1637 = vsel %vm92, %v1635, 0
  %1639 = vmatpush.msra.mxu0 0.0
  %1640 = vmatpush.msra.mxu0 0.0
  %1641 = vmatpush.msra.mxu0 0.0
  %1642 = vmatpush.msra.mxu0 0.0
  %1643 = vmatpush.msra.mxu0 0.0
  %1644 = vmatpush.msra.mxu0 0.0
  %1645 = vmatpush.msra.mxu0 0.0
  %1646 = vmatpush.msra.mxu0 0.0
  %1647 = vmatpush.msra.mxu0 0.0
  %1648 = vmatpush.msra.mxu0 0.0
  %1649 = vmatpush.msra.mxu0 0.0
  %1650 = vmatpush.msra.mxu0 0.0
  %1651 = vmatpush.msra.mxu0 %v43
  %1652 = vmatpush.msra.mxu0 %v42
  %1653 = vmatpush.msra.mxu0 %v41
  %1654 = vmatpush.msra.mxu0 %v40
  %1655 = vmatmul.f32.gmra.mxu0 %v1637
  %v1656 = vpop.f32.mrf.mxu0
  %v1657 = vadd.f32 %v54, %v1656
  %1658 = vdwg.mxu0
  %v1659 = vmul.f32 %v1587, -0.5
  %v1660 = vmul.f32 %v1587, 0.5
  %1662 = vrot.lane.b32.xlu0 %v1659, 127
  %v1663 = vpop.permute.xlu0 %1662
  %1666 = vrot.lane.b32.xlu0 %v1660, 1
  %v1667 = vpop.permute.xlu0 %1666
  %v1669 = vsel %vm150, %v1663, %v1667
  %v1670 = vadd.f32 %v1657, %v1669
  %v1671 = vstv %s1499
  %v1672 = vmul.f32 %v1671, %v1670
  %v1673 = vsub.f32 %v1672, %v1586
  %v1674 = vadd.f32 %v1494, %v1673
  %v1676 = vsel %vm57, %v1674, 0
  %1678 = vmatpush.msra.mxu0 0.0
  %1679 = vmatpush.msra.mxu0 0.0
  %1680 = vmatpush.msra.mxu0 0.0
  %1681 = vmatpush.msra.mxu0 0.0
  %1682 = vmatpush.msra.mxu0 0.0
  %1683 = vmatpush.msra.mxu0 0.0
  %1684 = vmatpush.msra.mxu0 0.0
  %1685 = vmatpush.msra.mxu0 0.0
  %1686 = vmatpush.msra.mxu0 0.0
  %1687 = vmatpush.msra.mxu0 0.0
  %1688 = vmatpush.msra.mxu0 0.0
  %1689 = vmatpush.msra.mxu0 0.0
  %1690 = vmatpush.msra.mxu0 0.0
  %1691 = vmatpush.msra.mxu0 0.0
  %1692 = vmatpush.msra.mxu0 0.0
  %1693 = vmatpush.msra.mxu0 %v69
  %1694 = vmatmul.f32.gmra.mxu0 %v1676
  %v1695 = vpop.f32.mrf.mxu0
  %v1696 = vadd.f32 %v46, %v1695
  %1697 = vdwg.mxu0
  %v1698 = vtanh.pop %v1696
  %v1700 = vsel %vm92, %v1698, 0
  %1702 = vmatpush.msra.mxu0 0.0
  %1703 = vmatpush.msra.mxu0 0.0
  %1704 = vmatpush.msra.mxu0 0.0
  %1705 = vmatpush.msra.mxu0 0.0
  %1706 = vmatpush.msra.mxu0 0.0
  %1707 = vmatpush.msra.mxu0 0.0
  %1708 = vmatpush.msra.mxu0 0.0
  %1709 = vmatpush.msra.mxu0 0.0
  %1710 = vmatpush.msra.mxu0 0.0
  %1711 = vmatpush.msra.mxu0 0.0
  %1712 = vmatpush.msra.mxu0 0.0
  %1713 = vmatpush.msra.mxu0 0.0
  %1714 = vmatpush.msra.mxu0 %v39
  %1715 = vmatpush.msra.mxu0 %v38
  %1716 = vmatpush.msra.mxu0 %v37
  %1717 = vmatpush.msra.mxu0 %v36
  %1718 = vmatmul.f32.gmra.mxu0 %v1700
  %v1719 = vpop.f32.mrf.mxu0
  %v1720 = vadd.f32 %v50, %v1719
  %1721 = vdwg.mxu0
  %v1722 = vtanh.pop %v1720
  %v1724 = vsel %vm92, %v1722, 0
  %1726 = vmatpush.msra.mxu0 0.0
  %1727 = vmatpush.msra.mxu0 0.0
  %1728 = vmatpush.msra.mxu0 0.0
  %1729 = vmatpush.msra.mxu0 0.0
  %1730 = vmatpush.msra.mxu0 0.0
  %1731 = vmatpush.msra.mxu0 0.0
  %1732 = vmatpush.msra.mxu0 0.0
  %1733 = vmatpush.msra.mxu0 0.0
  %1734 = vmatpush.msra.mxu0 0.0
  %1735 = vmatpush.msra.mxu0 0.0
  %1736 = vmatpush.msra.mxu0 0.0
  %1737 = vmatpush.msra.mxu0 0.0
  %1738 = vmatpush.msra.mxu0 %v43
  %1739 = vmatpush.msra.mxu0 %v42
  %1740 = vmatpush.msra.mxu0 %v41
  %1741 = vmatpush.msra.mxu0 %v40
  %1742 = vmatmul.f32.gmra.mxu0 %v1724
  %v1743 = vpop.f32.mrf.mxu0
  %v1744 = vadd.f32 %v54, %v1743
  %1745 = vdwg.mxu0
  %v1746 = vmul.f32 %v1674, -0.5
  %v1747 = vmul.f32 %v1674, 0.5
  %1749 = vrot.lane.b32.xlu0 %v1746, 127
  %v1750 = vpop.permute.xlu0 %1749
  %1753 = vrot.lane.b32.xlu0 %v1747, 1
  %v1754 = vpop.permute.xlu0 %1753
  %v1756 = vsel %vm150, %v1750, %v1754
  %v1757 = vadd.f32 %v1744, %v1756
  %v1758 = vmul.f32 %v1586, 3.0
  %v1759 = vsub.f32 %v1758, %v1672
  %v1760 = vmul.f32 %v1671, %v1757
  %v1761 = vadd.f32 %v1759, %v1760
  %v1762 = vadd.f32 %v1494, %v1761
  %v1764 = vsel %vm57, %v1762, 0
  %1766 = vmatpush.msra.mxu0 0.0
  %1767 = vmatpush.msra.mxu0 0.0
  %1768 = vmatpush.msra.mxu0 0.0
  %1769 = vmatpush.msra.mxu0 0.0
  %1770 = vmatpush.msra.mxu0 0.0
  %1771 = vmatpush.msra.mxu0 0.0
  %1772 = vmatpush.msra.mxu0 0.0
  %1773 = vmatpush.msra.mxu0 0.0
  %1774 = vmatpush.msra.mxu0 0.0
  %1775 = vmatpush.msra.mxu0 0.0
  %1776 = vmatpush.msra.mxu0 0.0
  %1777 = vmatpush.msra.mxu0 0.0
  %1778 = vmatpush.msra.mxu0 0.0
  %1779 = vmatpush.msra.mxu0 0.0
  %1780 = vmatpush.msra.mxu0 0.0
  %1781 = vmatpush.msra.mxu0 %v69
  %1782 = vmatmul.f32.gmra.mxu0 %v1764
  %v1783 = vpop.f32.mrf.mxu0
  %v1784 = vadd.f32 %v46, %v1783
  %1785 = vdwg.mxu0
  %v1786 = vtanh.pop %v1784
  %v1788 = vsel %vm92, %v1786, 0
  %1790 = vmatpush.msra.mxu0 0.0
  %1791 = vmatpush.msra.mxu0 0.0
  %1792 = vmatpush.msra.mxu0 0.0
  %1793 = vmatpush.msra.mxu0 0.0
  %1794 = vmatpush.msra.mxu0 0.0
  %1795 = vmatpush.msra.mxu0 0.0
  %1796 = vmatpush.msra.mxu0 0.0
  %1797 = vmatpush.msra.mxu0 0.0
  %1798 = vmatpush.msra.mxu0 0.0
  %1799 = vmatpush.msra.mxu0 0.0
  %1800 = vmatpush.msra.mxu0 0.0
  %1801 = vmatpush.msra.mxu0 0.0
  %1802 = vmatpush.msra.mxu0 %v39
  %1803 = vmatpush.msra.mxu0 %v38
  %1804 = vmatpush.msra.mxu0 %v37
  %1805 = vmatpush.msra.mxu0 %v36
  %1806 = vmatmul.f32.gmra.mxu0 %v1788
  %v1807 = vpop.f32.mrf.mxu0
  %v1808 = vadd.f32 %v50, %v1807
  %1809 = vdwg.mxu0
  %v1810 = vtanh.pop %v1808
  %v1812 = vsel %vm92, %v1810, 0
  %1814 = vmatpush.msra.mxu0 0.0
  %1815 = vmatpush.msra.mxu0 0.0
  %1816 = vmatpush.msra.mxu0 0.0
  %1817 = vmatpush.msra.mxu0 0.0
  %1818 = vmatpush.msra.mxu0 0.0
  %1819 = vmatpush.msra.mxu0 0.0
  %1820 = vmatpush.msra.mxu0 0.0
  %1821 = vmatpush.msra.mxu0 0.0
  %1822 = vmatpush.msra.mxu0 0.0
  %1823 = vmatpush.msra.mxu0 0.0
  %1824 = vmatpush.msra.mxu0 0.0
  %1825 = vmatpush.msra.mxu0 0.0
  %1826 = vmatpush.msra.mxu0 %v43
  %1827 = vmatpush.msra.mxu0 %v42
  %1828 = vmatpush.msra.mxu0 %v41
  %1829 = vmatpush.msra.mxu0 %v40
  %1830 = vmatmul.f32.gmra.mxu0 %v1812
  %v1831 = vpop.f32.mrf.mxu0
  %v1832 = vadd.f32 %v54, %v1831
  %1833 = vdwg.mxu0
  %v1834 = vmul.f32 %v1762, -0.5
  %v1835 = vmul.f32 %v1762, 0.5
  %1837 = vrot.lane.b32.xlu0 %v1834, 127
  %v1838 = vpop.permute.xlu0 %1837
  %1841 = vrot.lane.b32.xlu0 %v1835, 1
  %v1842 = vpop.permute.xlu0 %1841
  %v1844 = vsel %vm150, %v1838, %v1842
  %v1845 = vadd.f32 %v1832, %v1844
  %v1846 = vadd.f32 %v1670, %v1757
  %v1847 = vmul.f32 %v1846, 3.0
  %v1848 = vadd.f32 %v1584, %v1847
  %v1849 = vadd.f32 %v1848, %v1845
  %v1850 = vstv %s1501
  %v1851 = vmul.f32 %v1850, %v1849
  %v1852 = vadd.f32 %v1494, %v1851
  %s1853 = scalar_lea.vmem %s8, 40
  %1854 = vst.msk [vmem:[%s1853] sm:$0xff] %vm57, %v1852
  %s1855 = sld [smem:[#allocation3 + $0x6]]
  %s1856 = sld [smem:[#allocation3 + $0x5]]
  %s1857 = ssub.f32 %s1855, %s1856
  %s1858 = smul.f32 %s1857, 0.33333334
  %s1859 = smul.f32 %s1857, 0.125
  %v1861 = vsel %vm57, %v1852, 0
  %1863 = vmatpush.msra.mxu0 0.0
  %1864 = vmatpush.msra.mxu0 0.0
  %1865 = vmatpush.msra.mxu0 0.0
  %1866 = vmatpush.msra.mxu0 0.0
  %1867 = vmatpush.msra.mxu0 0.0
  %1868 = vmatpush.msra.mxu0 0.0
  %1869 = vmatpush.msra.mxu0 0.0
  %1870 = vmatpush.msra.mxu0 0.0
  %1871 = vmatpush.msra.mxu0 0.0
  %1872 = vmatpush.msra.mxu0 0.0
  %1873 = vmatpush.msra.mxu0 0.0
  %1874 = vmatpush.msra.mxu0 0.0
  %1875 = vmatpush.msra.mxu0 0.0
  %1876 = vmatpush.msra.mxu0 0.0
  %1877 = vmatpush.msra.mxu0 0.0
  %1878 = vmatpush.msra.mxu0 %v69
  %1879 = vmatmul.f32.gmra.mxu0 %v1861
  %v1880 = vpop.f32.mrf.mxu0
  %v1881 = vadd.f32 %v46, %v1880
  %1882 = vdwg.mxu0
  %v1883 = vtanh.pop %v1881
  %v1885 = vsel %vm92, %v1883, 0
  %1887 = vmatpush.msra.mxu0 0.0
  %1888 = vmatpush.msra.mxu0 0.0
  %1889 = vmatpush.msra.mxu0 0.0
  %1890 = vmatpush.msra.mxu0 0.0
  %1891 = vmatpush.msra.mxu0 0.0
  %1892 = vmatpush.msra.mxu0 0.0
  %1893 = vmatpush.msra.mxu0 0.0
  %1894 = vmatpush.msra.mxu0 0.0
  %1895 = vmatpush.msra.mxu0 0.0
  %1896 = vmatpush.msra.mxu0 0.0
  %1897 = vmatpush.msra.mxu0 0.0
  %1898 = vmatpush.msra.mxu0 0.0
  %1899 = vmatpush.msra.mxu0 %v39
  %1900 = vmatpush.msra.mxu0 %v38
  %1901 = vmatpush.msra.mxu0 %v37
  %1902 = vmatpush.msra.mxu0 %v36
  %1903 = vmatmul.f32.gmra.mxu0 %v1885
  %v1904 = vpop.f32.mrf.mxu0
  %v1905 = vadd.f32 %v50, %v1904
  %1906 = vdwg.mxu0
  %v1907 = vtanh.pop %v1905
  %v1909 = vsel %vm92, %v1907, 0
  %1911 = vmatpush.msra.mxu0 0.0
  %1912 = vmatpush.msra.mxu0 0.0
  %1913 = vmatpush.msra.mxu0 0.0
  %1914 = vmatpush.msra.mxu0 0.0
  %1915 = vmatpush.msra.mxu0 0.0
  %1916 = vmatpush.msra.mxu0 0.0
  %1917 = vmatpush.msra.mxu0 0.0
  %1918 = vmatpush.msra.mxu0 0.0
  %1919 = vmatpush.msra.mxu0 0.0
  %1920 = vmatpush.msra.mxu0 0.0
  %1921 = vmatpush.msra.mxu0 0.0
  %1922 = vmatpush.msra.mxu0 0.0
  %1923 = vmatpush.msra.mxu0 %v43
  %1924 = vmatpush.msra.mxu0 %v42
  %1925 = vmatpush.msra.mxu0 %v41
  %1926 = vmatpush.msra.mxu0 %v40
  %1927 = vmatmul.f32.gmra.mxu0 %v1909
  %v1928 = vpop.f32.mrf.mxu0
  %v1929 = vadd.f32 %v54, %v1928
  %1930 = vdwg.mxu0
  %v1931 = vmul.f32 %v1852, -0.5
  %v1932 = vmul.f32 %v1852, 0.5
  %1934 = vrot.lane.b32.xlu0 %v1931, 127
  %v1935 = vpop.permute.xlu0 %1934
  %1938 = vrot.lane.b32.xlu0 %v1932, 1
  %v1939 = vpop.permute.xlu0 %1938
  %v1941 = vsel %vm150, %v1935, %v1939
  %v1942 = vadd.f32 %v1929, %v1941
  %v1943 = vstv %s1858
  %v1944 = vmul.f32 %v1943, %v1942
  %v1945 = vadd.f32 %v1852, %v1944
  %v1947 = vsel %vm57, %v1945, 0
  %1949 = vmatpush.msra.mxu0 0.0
  %1950 = vmatpush.msra.mxu0 0.0
  %1951 = vmatpush.msra.mxu0 0.0
  %1952 = vmatpush.msra.mxu0 0.0
  %1953 = vmatpush.msra.mxu0 0.0
  %1954 = vmatpush.msra.mxu0 0.0
  %1955 = vmatpush.msra.mxu0 0.0
  %1956 = vmatpush.msra.mxu0 0.0
  %1957 = vmatpush.msra.mxu0 0.0
  %1958 = vmatpush.msra.mxu0 0.0
  %1959 = vmatpush.msra.mxu0 0.0
  %1960 = vmatpush.msra.mxu0 0.0
  %1961 = vmatpush.msra.mxu0 0.0
  %1962 = vmatpush.msra.mxu0 0.0
  %1963 = vmatpush.msra.mxu0 0.0
  %1964 = vmatpush.msra.mxu0 %v69
  %1965 = vmatmul.f32.gmra.mxu0 %v1947
  %v1966 = vpop.f32.mrf.mxu0
  %v1967 = vadd.f32 %v46, %v1966
  %1968 = vdwg.mxu0
  %v1969 = vtanh.pop %v1967
  %v1971 = vsel %vm92, %v1969, 0
  %1973 = vmatpush.msra.mxu0 0.0
  %1974 = vmatpush.msra.mxu0 0.0
  %1975 = vmatpush.msra.mxu0 0.0
  %1976 = vmatpush.msra.mxu0 0.0
  %1977 = vmatpush.msra.mxu0 0.0
  %1978 = vmatpush.msra.mxu0 0.0
  %1979 = vmatpush.msra.mxu0 0.0
  %1980 = vmatpush.msra.mxu0 0.0
  %1981 = vmatpush.msra.mxu0 0.0
  %1982 = vmatpush.msra.mxu0 0.0
  %1983 = vmatpush.msra.mxu0 0.0
  %1984 = vmatpush.msra.mxu0 0.0
  %1985 = vmatpush.msra.mxu0 %v39
  %1986 = vmatpush.msra.mxu0 %v38
  %1987 = vmatpush.msra.mxu0 %v37
  %1988 = vmatpush.msra.mxu0 %v36
  %1989 = vmatmul.f32.gmra.mxu0 %v1971
  %v1990 = vpop.f32.mrf.mxu0
  %v1991 = vadd.f32 %v50, %v1990
  %1992 = vdwg.mxu0
  %v1993 = vtanh.pop %v1991
  %v1995 = vsel %vm92, %v1993, 0
  %1997 = vmatpush.msra.mxu0 0.0
  %1998 = vmatpush.msra.mxu0 0.0
  %1999 = vmatpush.msra.mxu0 0.0
  %2000 = vmatpush.msra.mxu0 0.0
  %2001 = vmatpush.msra.mxu0 0.0
  %2002 = vmatpush.msra.mxu0 0.0
  %2003 = vmatpush.msra.mxu0 0.0
  %2004 = vmatpush.msra.mxu0 0.0
  %2005 = vmatpush.msra.mxu0 0.0
  %2006 = vmatpush.msra.mxu0 0.0
  %2007 = vmatpush.msra.mxu0 0.0
  %2008 = vmatpush.msra.mxu0 0.0
  %2009 = vmatpush.msra.mxu0 %v43
  %2010 = vmatpush.msra.mxu0 %v42
  %2011 = vmatpush.msra.mxu0 %v41
  %2012 = vmatpush.msra.mxu0 %v40
  %2013 = vmatmul.f32.gmra.mxu0 %v1995
  %v2014 = vpop.f32.mrf.mxu0
  %v2015 = vadd.f32 %v54, %v2014
  %2016 = vdwg.mxu0
  %v2017 = vmul.f32 %v1945, -0.5
  %v2018 = vmul.f32 %v1945, 0.5
  %2020 = vrot.lane.b32.xlu0 %v2017, 127
  %v2021 = vpop.permute.xlu0 %2020
  %2024 = vrot.lane.b32.xlu0 %v2018, 1
  %v2025 = vpop.permute.xlu0 %2024
  %v2027 = vsel %vm150, %v2021, %v2025
  %v2028 = vadd.f32 %v2015, %v2027
  %v2029 = vstv %s1857
  %v2030 = vmul.f32 %v2029, %v2028
  %v2031 = vsub.f32 %v2030, %v1944
  %v2032 = vadd.f32 %v1852, %v2031
  %v2034 = vsel %vm57, %v2032, 0
  %2036 = vmatpush.msra.mxu0 0.0
  %2037 = vmatpush.msra.mxu0 0.0
  %2038 = vmatpush.msra.mxu0 0.0
  %2039 = vmatpush.msra.mxu0 0.0
  %2040 = vmatpush.msra.mxu0 0.0
  %2041 = vmatpush.msra.mxu0 0.0
  %2042 = vmatpush.msra.mxu0 0.0
  %2043 = vmatpush.msra.mxu0 0.0
  %2044 = vmatpush.msra.mxu0 0.0
  %2045 = vmatpush.msra.mxu0 0.0
  %2046 = vmatpush.msra.mxu0 0.0
  %2047 = vmatpush.msra.mxu0 0.0
  %2048 = vmatpush.msra.mxu0 0.0
  %2049 = vmatpush.msra.mxu0 0.0
  %2050 = vmatpush.msra.mxu0 0.0
  %2051 = vmatpush.msra.mxu0 %v69
  %2052 = vmatmul.f32.gmra.mxu0 %v2034
  %v2053 = vpop.f32.mrf.mxu0
  %v2054 = vadd.f32 %v46, %v2053
  %2055 = vdwg.mxu0
  %v2056 = vtanh.pop %v2054
  %v2058 = vsel %vm92, %v2056, 0
  %2060 = vmatpush.msra.mxu0 0.0
  %2061 = vmatpush.msra.mxu0 0.0
  %2062 = vmatpush.msra.mxu0 0.0
  %2063 = vmatpush.msra.mxu0 0.0
  %2064 = vmatpush.msra.mxu0 0.0
  %2065 = vmatpush.msra.mxu0 0.0
  %2066 = vmatpush.msra.mxu0 0.0
  %2067 = vmatpush.msra.mxu0 0.0
  %2068 = vmatpush.msra.mxu0 0.0
  %2069 = vmatpush.msra.mxu0 0.0
  %2070 = vmatpush.msra.mxu0 0.0
  %2071 = vmatpush.msra.mxu0 0.0
  %2072 = vmatpush.msra.mxu0 %v39
  %2073 = vmatpush.msra.mxu0 %v38
  %2074 = vmatpush.msra.mxu0 %v37
  %2075 = vmatpush.msra.mxu0 %v36
  %2076 = vmatmul.f32.gmra.mxu0 %v2058
  %v2077 = vpop.f32.mrf.mxu0
  %v2078 = vadd.f32 %v50, %v2077
  %2079 = vdwg.mxu0
  %v2080 = vtanh.pop %v2078
  %v2082 = vsel %vm92, %v2080, 0
  %2084 = vmatpush.msra.mxu0 0.0
  %2085 = vmatpush.msra.mxu0 0.0
  %2086 = vmatpush.msra.mxu0 0.0
  %2087 = vmatpush.msra.mxu0 0.0
  %2088 = vmatpush.msra.mxu0 0.0
  %2089 = vmatpush.msra.mxu0 0.0
  %2090 = vmatpush.msra.mxu0 0.0
  %2091 = vmatpush.msra.mxu0 0.0
  %2092 = vmatpush.msra.mxu0 0.0
  %2093 = vmatpush.msra.mxu0 0.0
  %2094 = vmatpush.msra.mxu0 0.0
  %2095 = vmatpush.msra.mxu0 0.0
  %2096 = vmatpush.msra.mxu0 %v43
  %2097 = vmatpush.msra.mxu0 %v42
  %2098 = vmatpush.msra.mxu0 %v41
  %2099 = vmatpush.msra.mxu0 %v40
  %2100 = vmatmul.f32.gmra.mxu0 %v2082
  %v2101 = vpop.f32.mrf.mxu0
  %v2102 = vadd.f32 %v54, %v2101
  %2103 = vdwg.mxu0
  %v2104 = vmul.f32 %v2032, -0.5
  %v2105 = vmul.f32 %v2032, 0.5
  %2107 = vrot.lane.b32.xlu0 %v2104, 127
  %v2108 = vpop.permute.xlu0 %2107
  %2111 = vrot.lane.b32.xlu0 %v2105, 1
  %v2112 = vpop.permute.xlu0 %2111
  %v2114 = vsel %vm150, %v2108, %v2112
  %v2115 = vadd.f32 %v2102, %v2114
  %v2116 = vmul.f32 %v1944, 3.0
  %v2117 = vsub.f32 %v2116, %v2030
  %v2118 = vmul.f32 %v2029, %v2115
  %v2119 = vadd.f32 %v2117, %v2118
  %v2120 = vadd.f32 %v1852, %v2119
  %v2122 = vsel %vm57, %v2120, 0
  %2124 = vmatpush.msra.mxu0 0.0
  %2125 = vmatpush.msra.mxu0 0.0
  %2126 = vmatpush.msra.mxu0 0.0
  %2127 = vmatpush.msra.mxu0 0.0
  %2128 = vmatpush.msra.mxu0 0.0
  %2129 = vmatpush.msra.mxu0 0.0
  %2130 = vmatpush.msra.mxu0 0.0
  %2131 = vmatpush.msra.mxu0 0.0
  %2132 = vmatpush.msra.mxu0 0.0
  %2133 = vmatpush.msra.mxu0 0.0
  %2134 = vmatpush.msra.mxu0 0.0
  %2135 = vmatpush.msra.mxu0 0.0
  %2136 = vmatpush.msra.mxu0 0.0
  %2137 = vmatpush.msra.mxu0 0.0
  %2138 = vmatpush.msra.mxu0 0.0
  %2139 = vmatpush.msra.mxu0 %v69
  %2140 = vmatmul.f32.gmra.mxu0 %v2122
  %v2141 = vpop.f32.mrf.mxu0
  %v2142 = vadd.f32 %v46, %v2141
  %2143 = vdwg.mxu0
  %v2144 = vtanh.pop %v2142
  %v2146 = vsel %vm92, %v2144, 0
  %2148 = vmatpush.msra.mxu0 0.0
  %2149 = vmatpush.msra.mxu0 0.0
  %2150 = vmatpush.msra.mxu0 0.0
  %2151 = vmatpush.msra.mxu0 0.0
  %2152 = vmatpush.msra.mxu0 0.0
  %2153 = vmatpush.msra.mxu0 0.0
  %2154 = vmatpush.msra.mxu0 0.0
  %2155 = vmatpush.msra.mxu0 0.0
  %2156 = vmatpush.msra.mxu0 0.0
  %2157 = vmatpush.msra.mxu0 0.0
  %2158 = vmatpush.msra.mxu0 0.0
  %2159 = vmatpush.msra.mxu0 0.0
  %2160 = vmatpush.msra.mxu0 %v39
  %2161 = vmatpush.msra.mxu0 %v38
  %2162 = vmatpush.msra.mxu0 %v37
  %2163 = vmatpush.msra.mxu0 %v36
  %2164 = vmatmul.f32.gmra.mxu0 %v2146
  %v2165 = vpop.f32.mrf.mxu0
  %v2166 = vadd.f32 %v50, %v2165
  %2167 = vdwg.mxu0
  %v2168 = vtanh.pop %v2166
  %v2170 = vsel %vm92, %v2168, 0
  %2172 = vmatpush.msra.mxu0 0.0
  %2173 = vmatpush.msra.mxu0 0.0
  %2174 = vmatpush.msra.mxu0 0.0
  %2175 = vmatpush.msra.mxu0 0.0
  %2176 = vmatpush.msra.mxu0 0.0
  %2177 = vmatpush.msra.mxu0 0.0
  %2178 = vmatpush.msra.mxu0 0.0
  %2179 = vmatpush.msra.mxu0 0.0
  %2180 = vmatpush.msra.mxu0 0.0
  %2181 = vmatpush.msra.mxu0 0.0
  %2182 = vmatpush.msra.mxu0 0.0
  %2183 = vmatpush.msra.mxu0 0.0
  %2184 = vmatpush.msra.mxu0 %v43
  %2185 = vmatpush.msra.mxu0 %v42
  %2186 = vmatpush.msra.mxu0 %v41
  %2187 = vmatpush.msra.mxu0 %v40
  %2188 = vmatmul.f32.gmra.mxu0 %v2170
  %v2189 = vpop.f32.mrf.mxu0
  %v2190 = vadd.f32 %v54, %v2189
  %2191 = vdwg.mxu0
  %v2192 = vmul.f32 %v2120, -0.5
  %v2193 = vmul.f32 %v2120, 0.5
  %2195 = vrot.lane.b32.xlu0 %v2192, 127
  %v2196 = vpop.permute.xlu0 %2195
  %2199 = vrot.lane.b32.xlu0 %v2193, 1
  %v2200 = vpop.permute.xlu0 %2199
  %v2202 = vsel %vm150, %v2196, %v2200
  %v2203 = vadd.f32 %v2190, %v2202
  %v2204 = vadd.f32 %v2028, %v2115
  %v2205 = vmul.f32 %v2204, 3.0
  %v2206 = vadd.f32 %v1942, %v2205
  %v2207 = vadd.f32 %v2206, %v2203
  %v2208 = vstv %s1859
  %v2209 = vmul.f32 %v2208, %v2207
  %v2210 = vadd.f32 %v1852, %v2209
  %s2211 = scalar_lea.vmem %s8, 48
  %2212 = vst.msk [vmem:[%s2211] sm:$0xff] %vm57, %v2210
  %s2213 = sld [smem:[#allocation3 + $0x7]]
  %s2214 = sld [smem:[#allocation3 + $0x6]]
  %s2215 = ssub.f32 %s2213, %s2214
  %s2216 = smul.f32 %s2215, 0.33333334
  %s2217 = smul.f32 %s2215, 0.125
  %v2219 = vsel %vm57, %v2210, 0
  %2221 = vmatpush.msra.mxu0 0.0
  %2222 = vmatpush.msra.mxu0 0.0
  %2223 = vmatpush.msra.mxu0 0.0
  %2224 = vmatpush.msra.mxu0 0.0
  %2225 = vmatpush.msra.mxu0 0.0
  %2226 = vmatpush.msra.mxu0 0.0
  %2227 = vmatpush.msra.mxu0 0.0
  %2228 = vmatpush.msra.mxu0 0.0
  %2229 = vmatpush.msra.mxu0 0.0
  %2230 = vmatpush.msra.mxu0 0.0
  %2231 = vmatpush.msra.mxu0 0.0
  %2232 = vmatpush.msra.mxu0 0.0
  %2233 = vmatpush.msra.mxu0 0.0
  %2234 = vmatpush.msra.mxu0 0.0
  %2235 = vmatpush.msra.mxu0 0.0
  %2236 = vmatpush.msra.mxu0 %v69
  %2237 = vmatmul.f32.gmra.mxu0 %v2219
  %v2238 = vpop.f32.mrf.mxu0
  %v2239 = vadd.f32 %v46, %v2238
  %2240 = vdwg.mxu0
  %v2241 = vtanh.pop %v2239
  %v2243 = vsel %vm92, %v2241, 0
  %2245 = vmatpush.msra.mxu0 0.0
  %2246 = vmatpush.msra.mxu0 0.0
  %2247 = vmatpush.msra.mxu0 0.0
  %2248 = vmatpush.msra.mxu0 0.0
  %2249 = vmatpush.msra.mxu0 0.0
  %2250 = vmatpush.msra.mxu0 0.0
  %2251 = vmatpush.msra.mxu0 0.0
  %2252 = vmatpush.msra.mxu0 0.0
  %2253 = vmatpush.msra.mxu0 0.0
  %2254 = vmatpush.msra.mxu0 0.0
  %2255 = vmatpush.msra.mxu0 0.0
  %2256 = vmatpush.msra.mxu0 0.0
  %2257 = vmatpush.msra.mxu0 %v39
  %2258 = vmatpush.msra.mxu0 %v38
  %2259 = vmatpush.msra.mxu0 %v37
  %2260 = vmatpush.msra.mxu0 %v36
  %2261 = vmatmul.f32.gmra.mxu0 %v2243
  %v2262 = vpop.f32.mrf.mxu0
  %v2263 = vadd.f32 %v50, %v2262
  %2264 = vdwg.mxu0
  %v2265 = vtanh.pop %v2263
  %v2267 = vsel %vm92, %v2265, 0
  %2269 = vmatpush.msra.mxu0 0.0
  %2270 = vmatpush.msra.mxu0 0.0
  %2271 = vmatpush.msra.mxu0 0.0
  %2272 = vmatpush.msra.mxu0 0.0
  %2273 = vmatpush.msra.mxu0 0.0
  %2274 = vmatpush.msra.mxu0 0.0
  %2275 = vmatpush.msra.mxu0 0.0
  %2276 = vmatpush.msra.mxu0 0.0
  %2277 = vmatpush.msra.mxu0 0.0
  %2278 = vmatpush.msra.mxu0 0.0
  %2279 = vmatpush.msra.mxu0 0.0
  %2280 = vmatpush.msra.mxu0 0.0
  %2281 = vmatpush.msra.mxu0 %v43
  %2282 = vmatpush.msra.mxu0 %v42
  %2283 = vmatpush.msra.mxu0 %v41
  %2284 = vmatpush.msra.mxu0 %v40
  %2285 = vmatmul.f32.gmra.mxu0 %v2267
  %v2286 = vpop.f32.mrf.mxu0
  %v2287 = vadd.f32 %v54, %v2286
  %2288 = vdwg.mxu0
  %v2289 = vmul.f32 %v2210, -0.5
  %v2290 = vmul.f32 %v2210, 0.5
  %2292 = vrot.lane.b32.xlu0 %v2289, 127
  %v2293 = vpop.permute.xlu0 %2292
  %2296 = vrot.lane.b32.xlu0 %v2290, 1
  %v2297 = vpop.permute.xlu0 %2296
  %v2299 = vsel %vm150, %v2293, %v2297
  %v2300 = vadd.f32 %v2287, %v2299
  %v2301 = vstv %s2216
  %v2302 = vmul.f32 %v2301, %v2300
  %v2303 = vadd.f32 %v2210, %v2302
  %v2305 = vsel %vm57, %v2303, 0
  %2307 = vmatpush.msra.mxu0 0.0
  %2308 = vmatpush.msra.mxu0 0.0
  %2309 = vmatpush.msra.mxu0 0.0
  %2310 = vmatpush.msra.mxu0 0.0
  %2311 = vmatpush.msra.mxu0 0.0
  %2312 = vmatpush.msra.mxu0 0.0
  %2313 = vmatpush.msra.mxu0 0.0
  %2314 = vmatpush.msra.mxu0 0.0
  %2315 = vmatpush.msra.mxu0 0.0
  %2316 = vmatpush.msra.mxu0 0.0
  %2317 = vmatpush.msra.mxu0 0.0
  %2318 = vmatpush.msra.mxu0 0.0
  %2319 = vmatpush.msra.mxu0 0.0
  %2320 = vmatpush.msra.mxu0 0.0
  %2321 = vmatpush.msra.mxu0 0.0
  %2322 = vmatpush.msra.mxu0 %v69
  %2323 = vmatmul.f32.gmra.mxu0 %v2305
  %v2324 = vpop.f32.mrf.mxu0
  %v2325 = vadd.f32 %v46, %v2324
  %2326 = vdwg.mxu0
  %v2327 = vtanh.pop %v2325
  %v2329 = vsel %vm92, %v2327, 0
  %2331 = vmatpush.msra.mxu0 0.0
  %2332 = vmatpush.msra.mxu0 0.0
  %2333 = vmatpush.msra.mxu0 0.0
  %2334 = vmatpush.msra.mxu0 0.0
  %2335 = vmatpush.msra.mxu0 0.0
  %2336 = vmatpush.msra.mxu0 0.0
  %2337 = vmatpush.msra.mxu0 0.0
  %2338 = vmatpush.msra.mxu0 0.0
  %2339 = vmatpush.msra.mxu0 0.0
  %2340 = vmatpush.msra.mxu0 0.0
  %2341 = vmatpush.msra.mxu0 0.0
  %2342 = vmatpush.msra.mxu0 0.0
  %2343 = vmatpush.msra.mxu0 %v39
  %2344 = vmatpush.msra.mxu0 %v38
  %2345 = vmatpush.msra.mxu0 %v37
  %2346 = vmatpush.msra.mxu0 %v36
  %2347 = vmatmul.f32.gmra.mxu0 %v2329
  %v2348 = vpop.f32.mrf.mxu0
  %v2349 = vadd.f32 %v50, %v2348
  %2350 = vdwg.mxu0
  %v2351 = vtanh.pop %v2349
  %v2353 = vsel %vm92, %v2351, 0
  %2355 = vmatpush.msra.mxu0 0.0
  %2356 = vmatpush.msra.mxu0 0.0
  %2357 = vmatpush.msra.mxu0 0.0
  %2358 = vmatpush.msra.mxu0 0.0
  %2359 = vmatpush.msra.mxu0 0.0
  %2360 = vmatpush.msra.mxu0 0.0
  %2361 = vmatpush.msra.mxu0 0.0
  %2362 = vmatpush.msra.mxu0 0.0
  %2363 = vmatpush.msra.mxu0 0.0
  %2364 = vmatpush.msra.mxu0 0.0
  %2365 = vmatpush.msra.mxu0 0.0
  %2366 = vmatpush.msra.mxu0 0.0
  %2367 = vmatpush.msra.mxu0 %v43
  %2368 = vmatpush.msra.mxu0 %v42
  %2369 = vmatpush.msra.mxu0 %v41
  %2370 = vmatpush.msra.mxu0 %v40
  %2371 = vmatmul.f32.gmra.mxu0 %v2353
  %v2372 = vpop.f32.mrf.mxu0
  %v2373 = vadd.f32 %v54, %v2372
  %2374 = vdwg.mxu0
  %v2375 = vmul.f32 %v2303, -0.5
  %v2376 = vmul.f32 %v2303, 0.5
  %2378 = vrot.lane.b32.xlu0 %v2375, 127
  %v2379 = vpop.permute.xlu0 %2378
  %2382 = vrot.lane.b32.xlu0 %v2376, 1
  %v2383 = vpop.permute.xlu0 %2382
  %v2385 = vsel %vm150, %v2379, %v2383
  %v2386 = vadd.f32 %v2373, %v2385
  %v2387 = vstv %s2215
  %v2388 = vmul.f32 %v2387, %v2386
  %v2389 = vsub.f32 %v2388, %v2302
  %v2390 = vadd.f32 %v2210, %v2389
  %v2392 = vsel %vm57, %v2390, 0
  %2394 = vmatpush.msra.mxu0 0.0
  %2395 = vmatpush.msra.mxu0 0.0
  %2396 = vmatpush.msra.mxu0 0.0
  %2397 = vmatpush.msra.mxu0 0.0
  %2398 = vmatpush.msra.mxu0 0.0
  %2399 = vmatpush.msra.mxu0 0.0
  %2400 = vmatpush.msra.mxu0 0.0
  %2401 = vmatpush.msra.mxu0 0.0
  %2402 = vmatpush.msra.mxu0 0.0
  %2403 = vmatpush.msra.mxu0 0.0
  %2404 = vmatpush.msra.mxu0 0.0
  %2405 = vmatpush.msra.mxu0 0.0
  %2406 = vmatpush.msra.mxu0 0.0
  %2407 = vmatpush.msra.mxu0 0.0
  %2408 = vmatpush.msra.mxu0 0.0
  %2409 = vmatpush.msra.mxu0 %v69
  %2410 = vmatmul.f32.gmra.mxu0 %v2392
  %v2411 = vpop.f32.mrf.mxu0
  %v2412 = vadd.f32 %v46, %v2411
  %2413 = vdwg.mxu0
  %v2414 = vtanh.pop %v2412
  %v2416 = vsel %vm92, %v2414, 0
  %2418 = vmatpush.msra.mxu0 0.0
  %2419 = vmatpush.msra.mxu0 0.0
  %2420 = vmatpush.msra.mxu0 0.0
  %2421 = vmatpush.msra.mxu0 0.0
  %2422 = vmatpush.msra.mxu0 0.0
  %2423 = vmatpush.msra.mxu0 0.0
  %2424 = vmatpush.msra.mxu0 0.0
  %2425 = vmatpush.msra.mxu0 0.0
  %2426 = vmatpush.msra.mxu0 0.0
  %2427 = vmatpush.msra.mxu0 0.0
  %2428 = vmatpush.msra.mxu0 0.0
  %2429 = vmatpush.msra.mxu0 0.0
  %2430 = vmatpush.msra.mxu0 %v39
  %2431 = vmatpush.msra.mxu0 %v38
  %2432 = vmatpush.msra.mxu0 %v37
  %2433 = vmatpush.msra.mxu0 %v36
  %2434 = vmatmul.f32.gmra.mxu0 %v2416
  %v2435 = vpop.f32.mrf.mxu0
  %v2436 = vadd.f32 %v50, %v2435
  %2437 = vdwg.mxu0
  %v2438 = vtanh.pop %v2436
  %v2440 = vsel %vm92, %v2438, 0
  %2442 = vmatpush.msra.mxu0 0.0
  %2443 = vmatpush.msra.mxu0 0.0
  %2444 = vmatpush.msra.mxu0 0.0
  %2445 = vmatpush.msra.mxu0 0.0
  %2446 = vmatpush.msra.mxu0 0.0
  %2447 = vmatpush.msra.mxu0 0.0
  %2448 = vmatpush.msra.mxu0 0.0
  %2449 = vmatpush.msra.mxu0 0.0
  %2450 = vmatpush.msra.mxu0 0.0
  %2451 = vmatpush.msra.mxu0 0.0
  %2452 = vmatpush.msra.mxu0 0.0
  %2453 = vmatpush.msra.mxu0 0.0
  %2454 = vmatpush.msra.mxu0 %v43
  %2455 = vmatpush.msra.mxu0 %v42
  %2456 = vmatpush.msra.mxu0 %v41
  %2457 = vmatpush.msra.mxu0 %v40
  %2458 = vmatmul.f32.gmra.mxu0 %v2440
  %v2459 = vpop.f32.mrf.mxu0
  %v2460 = vadd.f32 %v54, %v2459
  %2461 = vdwg.mxu0
  %v2462 = vmul.f32 %v2390, -0.5
  %v2463 = vmul.f32 %v2390, 0.5
  %2465 = vrot.lane.b32.xlu0 %v2462, 127
  %v2466 = vpop.permute.xlu0 %2465
  %2469 = vrot.lane.b32.xlu0 %v2463, 1
  %v2470 = vpop.permute.xlu0 %2469
  %v2472 = vsel %vm150, %v2466, %v2470
  %v2473 = vadd.f32 %v2460, %v2472
  %v2474 = vmul.f32 %v2302, 3.0
  %v2475 = vsub.f32 %v2474, %v2388
  %v2476 = vmul.f32 %v2387, %v2473
  %v2477 = vadd.f32 %v2475, %v2476
  %v2478 = vadd.f32 %v2210, %v2477
  %v2480 = vsel %vm57, %v2478, 0
  %2482 = vmatpush.msra.mxu0 0.0
  %2483 = vmatpush.msra.mxu0 0.0
  %2484 = vmatpush.msra.mxu0 0.0
  %2485 = vmatpush.msra.mxu0 0.0
  %2486 = vmatpush.msra.mxu0 0.0
  %2487 = vmatpush.msra.mxu0 0.0
  %2488 = vmatpush.msra.mxu0 0.0
  %2489 = vmatpush.msra.mxu0 0.0
  %2490 = vmatpush.msra.mxu0 0.0
  %2491 = vmatpush.msra.mxu0 0.0
  %2492 = vmatpush.msra.mxu0 0.0
  %2493 = vmatpush.msra.mxu0 0.0
  %2494 = vmatpush.msra.mxu0 0.0
  %2495 = vmatpush.msra.mxu0 0.0
  %2496 = vmatpush.msra.mxu0 0.0
  %2497 = vmatpush.msra.mxu0 %v69
  %2498 = vmatmul.f32.gmra.mxu0 %v2480
  %v2499 = vpop.f32.mrf.mxu0
  %v2500 = vadd.f32 %v46, %v2499
  %2501 = vdwg.mxu0
  %v2502 = vtanh.pop %v2500
  %v2504 = vsel %vm92, %v2502, 0
  %2506 = vmatpush.msra.mxu0 0.0
  %2507 = vmatpush.msra.mxu0 0.0
  %2508 = vmatpush.msra.mxu0 0.0
  %2509 = vmatpush.msra.mxu0 0.0
  %2510 = vmatpush.msra.mxu0 0.0
  %2511 = vmatpush.msra.mxu0 0.0
  %2512 = vmatpush.msra.mxu0 0.0
  %2513 = vmatpush.msra.mxu0 0.0
  %2514 = vmatpush.msra.mxu0 0.0
  %2515 = vmatpush.msra.mxu0 0.0
  %2516 = vmatpush.msra.mxu0 0.0
  %2517 = vmatpush.msra.mxu0 0.0
  %2518 = vmatpush.msra.mxu0 %v39
  %2519 = vmatpush.msra.mxu0 %v38
  %2520 = vmatpush.msra.mxu0 %v37
  %2521 = vmatpush.msra.mxu0 %v36
  %2522 = vmatmul.f32.gmra.mxu0 %v2504
  %v2523 = vpop.f32.mrf.mxu0
  %v2524 = vadd.f32 %v50, %v2523
  %2525 = vdwg.mxu0
  %v2526 = vtanh.pop %v2524
  %v2528 = vsel %vm92, %v2526, 0
  %2530 = vmatpush.msra.mxu0 0.0
  %2531 = vmatpush.msra.mxu0 0.0
  %2532 = vmatpush.msra.mxu0 0.0
  %2533 = vmatpush.msra.mxu0 0.0
  %2534 = vmatpush.msra.mxu0 0.0
  %2535 = vmatpush.msra.mxu0 0.0
  %2536 = vmatpush.msra.mxu0 0.0
  %2537 = vmatpush.msra.mxu0 0.0
  %2538 = vmatpush.msra.mxu0 0.0
  %2539 = vmatpush.msra.mxu0 0.0
  %2540 = vmatpush.msra.mxu0 0.0
  %2541 = vmatpush.msra.mxu0 0.0
  %2542 = vmatpush.msra.mxu0 %v43
  %2543 = vmatpush.msra.mxu0 %v42
  %2544 = vmatpush.msra.mxu0 %v41
  %2545 = vmatpush.msra.mxu0 %v40
  %2546 = vmatmul.f32.gmra.mxu0 %v2528
  %v2547 = vpop.f32.mrf.mxu0
  %v2548 = vadd.f32 %v54, %v2547
  %2549 = vdwg.mxu0
  %v2550 = vmul.f32 %v2478, -0.5
  %v2551 = vmul.f32 %v2478, 0.5
  %2553 = vrot.lane.b32.xlu0 %v2550, 127
  %v2554 = vpop.permute.xlu0 %2553
  %2557 = vrot.lane.b32.xlu0 %v2551, 1
  %v2558 = vpop.permute.xlu0 %2557
  %v2560 = vsel %vm150, %v2554, %v2558
  %v2561 = vadd.f32 %v2548, %v2560
  %v2562 = vadd.f32 %v2386, %v2473
  %v2563 = vmul.f32 %v2562, 3.0
  %v2564 = vadd.f32 %v2300, %v2563
  %v2565 = vadd.f32 %v2564, %v2561
  %v2566 = vstv %s2217
  %v2567 = vmul.f32 %v2566, %v2565
  %v2568 = vadd.f32 %v2210, %v2567
  %s2569 = scalar_lea.vmem %s8, 56
  %2570 = vst.msk [vmem:[%s2569] sm:$0xff] %vm57, %v2568
  // Predicated region
  $region30: #{tpu_custom_call.1} parent=0 // pred_check
    _
  $region31: #{tpu_custom_call.1} parent=0 // pred_check_branch
    %2572 = sbr.rel (0) target = $region33
  $region32: #{tpu_custom_call.1} parent=0 // pred_region
    _
  $region33: #{tpu_custom_call.1} parent=0 // pred_fallthru
    _
  // Predicated region
  $region34: #{tpu_custom_call.1} parent=0 // pred_check
    _
  $region35: #{tpu_custom_call.1} parent=0 // pred_check_branch
    %2574 = sbr.rel (0) target = $region37
  $region36: #{tpu_custom_call.1} parent=0 // pred_region
    _
  $region37: #{tpu_custom_call.1} parent=0 // pred_fallthru
    _

</llo_original>
